<compile_context>
chip_gen: v7x
topology: tpu7x:2x2x1
jax: 0.10.0
libtpu: 0.0.40
codegen_flags: <defaults>
</compile_context>

<pallas_src>
import jax
import jax.numpy as jnp
from jax.experimental import pallas as pl
from jax.experimental.pallas import tpu as pltpu

# ---- model hyper-parameters (small, consistent with the module) ----
INPUT_C, INPUT_H, INPUT_W = 4, 16, 16
INPUT_DIM = INPUT_C * INPUT_H * INPUT_W          # 1024 (== 28**2 role)
NCLASSES = 10
NC_PAD = 32                                      # class dim padded to 32 lanes
LATENT_DIM = 32
HIDDEN_DIM = 128
TAU = 0.99
NEG_BIG = -1e9                                   # bias fill for padded classes

# packed output slab layout (lane offsets), total width 256, vreg-aligned:
#   [0:32]     z_q
#   [32:96]    [z_mu | z_logvar]
#   [96:128]   pad
#   [128:192]  [z_mu_prior | z_logvar_prior]
#   [192:224]  log_alpha (first NCLASSES valid)
#   [224:256]  y_q       (first NCLASSES valid)
SLAB_DIM = 256
NOISE_DIM = NC_PAD + LATENT_DIM                  # [gumbel_pad(32) | eps(32)]


def _round_up(x, m):
    return (x + m - 1) // m * m


def _pick_batch_tile(batch):
    """TB multiple of 16 (bf16 sublanes), capped at 256 (v5e scoped VMEM),
    and >= 2 grid steps when the batch allows (v7x has 2 TensorCores)."""
    if batch >= 512:
        return 256
    if batch >= 256:
        return 128
    if batch >= 32:
        return _round_up(batch, 32) // 2
    return _round_up(max(batch, 1), 16)


# --------------------------------------------------------------------------
# Kernel
# --------------------------------------------------------------------------
def gumbel_gmssae_kernel(
    # batch-tiled inputs
    x_ref, noise_ref,
    # fused classifier-L1 / encoder-L1(x rows), classifier trunk
    fw1, fb1, cw2, cb2, cw3, cb3,
    # fused y_q weight: encoder-L1(y rows) | mu_prior | logvar_prior
    yw, yb,
    # encoder trunk + fused mu/logvar heads
    ew2, eb2, ehw1, ehb1, ehw2, ehb2,
    # decoder trunk + mu head
    dw1, db1, dw2, db2, dmw1, dmb1, dmw2, dmb2,
    # outputs
    x_hat_ref, slab_ref,
):
    f32 = jnp.float32
    bf16 = jnp.bfloat16

    def dense(a, w_ref, b_ref):
        # bf16 MXU operands, fp32 accumulation, fp32 bias add.
        return jnp.dot(a.astype(bf16), w_ref[...],
                       preferred_element_type=f32) + b_ref[...]

    def relu(a):
        return jnp.maximum(a, 0.0)

    xb = x_ref[...]                                  # (TB, D) bf16 already
    noise = noise_ref[...]                           # (TB, 64) fp32
    g = noise[:, :NC_PAD]
    eps = noise[:, NC_PAD:]

    # ---- fused first layer: x @ [cw1 | ew1x] in ONE N=256 MXU pass ----
    h_both = jnp.dot(xb, fw1[...], preferred_element_type=f32) + fb1[...]
    h_cls = relu(h_both[:, :HIDDEN_DIM])             # classifier L1
    h_enc_x = h_both[:, HIDDEN_DIM:]                 # encoder L1 x-contribution

    # ---- classifier -> log_alpha (padded classes carry a -1e9 bias) ----
    h = relu(dense(h_cls, cw2, cb2))
    log_alpha = dense(h, cw3, cb3)                   # (TB, NC_PAD)

    # ---- sample_y: RelaxedOneHotCategorical(tau, logits).rsample()
    #      == softmax((logits + gumbel)/tau); padded classes get weight 0 ----
    scores = (log_alpha + g) * (1.0 / TAU)
    m = jnp.max(scores, axis=-1, keepdims=True)
    e = jnp.exp(scores - m)
    y_q = e * pl.reciprocal(jnp.sum(e, axis=-1, keepdims=True), approx=True)

    # ---- fused y_q matmul: encoder y-contribution | [mu_prior|logvar_prior] ----
    y_out = jnp.dot(y_q.astype(bf16), yw[...],
                    preferred_element_type=f32) + yb[...]      # (TB, 192)
    z_pr = y_out[:, HIDDEN_DIM:]                     # (TB, 2L) priors

    # ---- encoder(concat(x, y_q)) ----
    he = relu(h_enc_x + y_out[:, :HIDDEN_DIM])
    he = relu(dense(he, ew2, eb2))

    # ---- fused mu/logvar heads: one 256-wide pass + block-diag (256,64) ----
    hh = relu(dense(he, ehw1, ehb1))                 # (TB, 2H)
    z_ml = dense(hh, ehw2, ehb2)                     # (TB, 2L) = [z_mu|z_logvar]
    z_mu = z_ml[:, :LATENT_DIM]
    z_logvar = z_ml[:, LATENT_DIM:]

    # ---- sample_z: z = mu + exp(0.5 * logvar) * eps ----
    z_q = z_mu + jnp.exp(0.5 * z_logvar) * eps

    # ---- decoder ----
    hd = relu(dense(z_q, dw1, db1))
    hd = relu(dense(hd, dw2, db2))
    hd = relu(dense(hd, dmw1, dmb1))
    x_hat_ref[...] = dense(hd, dmw2, dmb2).astype(x_hat_ref.dtype)  # bf16 out

    # ---- single lane-dense, vreg-aligned packed output slab ----
    pad = jnp.zeros((xb.shape[0], 128 - LATENT_DIM - 2 * LATENT_DIM), f32)
    slab_ref[...] = jnp.concatenate(
        [z_q, z_ml, pad, z_pr, log_alpha, y_q], axis=-1)


# --------------------------------------------------------------------------
# Parameters
# --------------------------------------------------------------------------
def init_params(key):
    """Deterministic PyTorch-default-style init (U(-1/sqrt(fan_in), +...))."""
    keys = iter(jax.random.split(key, 32))

    def lin(fan_in, fan_out):
        kw, kb = jax.random.split(next(keys))
        bound = float(fan_in) ** -0.5
        w = jax.random.uniform(kw, (fan_in, fan_out), jnp.float32, -bound, bound)
        b = jax.random.uniform(kb, (1, fan_out), jnp.float32, -bound, bound)
        return w, b

    cw1, cb1 = lin(INPUT_DIM, HIDDEN_DIM)
    cw2, cb2 = lin(HIDDEN_DIM, HIDDEN_DIM)
    cw3, cb3 = lin(HIDDEN_DIM, NCLASSES)
    ew1, eb1 = lin(INPUT_DIM + NCLASSES, HIDDEN_DIM)
    ew1x, ew1y = ew1[:INPUT_DIM], ew1[INPUT_DIM:]
    ew2, eb2 = lin(HIDDEN_DIM, HIDDEN_DIM)
    emw1, emb1 = lin(HIDDEN_DIM, HIDDEN_DIM)
    emw2, emb2 = lin(HIDDEN_DIM, LATENT_DIM)
    evw1, evb1 = lin(HIDDEN_DIM, HIDDEN_DIM)
    evw2, evb2 = lin(HIDDEN_DIM, LATENT_DIM)
    dw1, db1 = lin(LATENT_DIM, HIDDEN_DIM)
    dw2, db2 = lin(HIDDEN_DIM, HIDDEN_DIM)
    dmw1, dmb1 = lin(HIDDEN_DIM, HIDDEN_DIM)
    dmw2, dmb2 = lin(HIDDEN_DIM, INPUT_DIM)
    pmw, pmb = lin(NCLASSES, LATENT_DIM)
    pvw, pvb = lin(NCLASSES, LATENT_DIM)
    return [cw1, cb1, cw2, cb2, cw3, cb3,
            ew1x, ew1y, eb1, ew2, eb2,
            emw1, emb1, emw2, emb2,
            evw1, evb1, evw2, evb2,
            dw1, db1, dw2, db2,
            dmw1, dmb1, dmw2, dmb2,
            pmw, pmb, pvw, pvb]


def prepare_params(params):
    """Pad class dims to NC_PAD, fuse (cw1|ew1x), (ew1y|priors) and the
    mu/logvar heads, and cast matmul weights to bf16 (biases stay fp32).
    Call ONCE and reuse the result (hoisted out of the forward)."""
    (cw1, cb1, cw2, cb2, cw3, cb3,
     ew1x, ew1y, eb1, ew2, eb2,
     emw1, emb1, emw2, emb2,
     evw1, evb1, evw2, evb2,
     dw1, db1, dw2, db2,
     dmw1, dmb1, dmw2, dmb2,
     pmw, pmb, pvw, pvb) = params
    f32, bf16 = jnp.float32, jnp.bfloat16
    cpad = NC_PAD - NCLASSES

    # pad the 10-wide class dimension up to NC_PAD lanes
    cw3p = jnp.pad(cw3, ((0, 0), (0, cpad)))
    cb3p = jnp.pad(cb3, ((0, 0), (0, cpad)), constant_values=NEG_BIG)
    ew1yp = jnp.pad(ew1y, ((0, cpad), (0, 0)))
    pmwp = jnp.pad(pmw, ((0, cpad), (0, 0)))
    pvwp = jnp.pad(pvw, ((0, cpad), (0, 0)))

    # fused classifier-L1 | encoder-L1(x rows): (1024, 256)
    fw1 = jnp.concatenate([cw1, ew1x], axis=1)
    fb1 = jnp.concatenate([cb1, eb1], axis=1)

    # fused y_q weight: encoder-L1(y rows) | mu_prior | logvar_prior -> (32,192)
    yw = jnp.concatenate([ew1yp, pmwp, pvwp], axis=1)
    yb = jnp.concatenate([jnp.zeros((1, HIDDEN_DIM), f32), pmb, pvb], axis=1)

    # fused encoder mu/logvar heads
    ehw1 = jnp.concatenate([emw1, evw1], axis=1)                 # (H, 2H)
    ehb1 = jnp.concatenate([emb1, evb1], axis=1)                 # (1, 2H)
    zblk = jnp.zeros((HIDDEN_DIM, LATENT_DIM), f32)
    ehw2 = jnp.concatenate(                                      # (2H, 2L) blkdiag
        [jnp.concatenate([emw2, zblk], axis=1),
         jnp.concatenate([zblk, evw2], axis=1)], axis=0)
    ehb2 = jnp.concatenate([emb2, evb2], axis=1)                 # (1, 2L)

    def W(a):
        return a.astype(bf16)

    def B(a):
        return a.astype(f32)

    return [W(fw1), B(fb1), W(cw2), B(cb2), W(cw3p), B(cb3p),
            W(yw), B(yb),
            W(ew2), B(eb2), W(ehw1), B(ehb1), W(ehw2), B(ehb2),
            W(dw1), B(db1), W(dw2), B(db2),
            W(dmw1), B(dmb1), W(dmw2), B(dmb2)]


# --------------------------------------------------------------------------
# Forward wrapper (takes PRE-FUSED kparams from prepare_params)
# --------------------------------------------------------------------------
def gumbel_gmssae_forward(x_img, kparams, gumbel_noise, normal_noise):
    """Returns (x_hat[bf16], z_q, y_q, log_alpha, z_mu, z_logvar,
    z_mu_prior, z_logvar_prior)."""
    B = x_img.shape[0]
    x = x_img.reshape(B, -1).astype(jnp.bfloat16)          # nn.Flatten(), bf16 in

    TB = _pick_batch_tile(B)
    B_pad = _round_up(B, TB)
    grid = (B_pad // TB,)

    x_p = jnp.pad(x, ((0, B_pad - B), (0, 0)))
    # single lane-dense noise slab: [gumbel padded to 32 | eps(32)]
    noise = jnp.concatenate(
        [jnp.pad(gumbel_noise.astype(jnp.float32),
                 ((0, 0), (0, NC_PAD - NCLASSES))),
         normal_noise.astype(jnp.float32)], axis=-1)
    noise_p = jnp.pad(noise, ((0, B_pad - B), (0, 0)))

    inputs = [x_p, noise_p] + list(kparams)

    in_specs = [pl.BlockSpec((TB, INPUT_DIM), lambda b: (b, 0)),
                pl.BlockSpec((TB, NOISE_DIM), lambda b: (b, 0))]
    # weights/biases: constant index_map -> DMA'd once, VMEM-resident
    in_specs += [pl.BlockSpec(p.shape, lambda b: (0, 0)) for p in kparams]

    out_shape = (
        jax.ShapeDtypeStruct((B_pad, INPUT_DIM), jnp.bfloat16),  # x_hat (bf16)
        jax.ShapeDtypeStruct((B_pad, SLAB_DIM), jnp.float32),    # packed slab
    )
    out_specs = (
        pl.BlockSpec((TB, INPUT_DIM), lambda b: (b, 0)),
        pl.BlockSpec((TB, SLAB_DIM), lambda b: (b, 0)),
    )

    # advisory cost estimate so XLA can overlap the custom call
    flops_per_row = 2 * (
        INPUT_DIM * 2 * HIDDEN_DIM                    # fused cw1|ew1x
        + HIDDEN_DIM * HIDDEN_DIM                     # cw2
        + HIDDEN_DIM * NC_PAD                         # cw3
        + NC_PAD * (HIDDEN_DIM + 2 * LATENT_DIM)      # fused ew1y|priors
        + HIDDEN_DIM * HIDDEN_DIM                     # ew2
        + HIDDEN_DIM * 2 * HIDDEN_DIM                 # ehw1
        + 2 * HIDDEN_DIM * 2 * LATENT_DIM             # ehw2
        + LATENT_DIM * HIDDEN_DIM                     # dw1
        + HIDDEN_DIM * HIDDEN_DIM                     # dw2
        + HIDDEN_DIM * HIDDEN_DIM                     # dmw1
        + HIDDEN_DIM * INPUT_DIM)                     # dmw2
    weight_bytes = sum(int(p.size) * p.dtype.itemsize for p in kparams)
    bytes_accessed = (B_pad * INPUT_DIM * 2           # x in (bf16)
                      + B_pad * NOISE_DIM * 4         # noise in
                      + weight_bytes                  # weights (one pass)
                      + B_pad * INPUT_DIM * 2         # x_hat out (bf16)
                      + B_pad * SLAB_DIM * 4)         # slab out
    cost = pl.CostEstimate(flops=flops_per_row * B_pad,
                           transcendentals=(NC_PAD + LATENT_DIM + 1) * B_pad,
                           bytes_accessed=bytes_accessed)

    x_hat_p, slab_p = pl.pallas_call(
        gumbel_gmssae_kernel,
        grid=grid,
        in_specs=in_specs,
        out_specs=out_specs,
        out_shape=out_shape,
        cost_estimate=cost,
        compiler_params=pltpu.CompilerParams(
            dimension_semantics=("parallel",),
            vmem_limit_bytes=32 * 1024 * 1024),
    )(*inputs)

    x_hat = x_hat_p[:B]                # bf16 logits (cast in consumer if needed)
    slab = slab_p[:B]
    L = LATENT_DIM
    z_q = slab[:, 0:L]
    z_mu = slab[:, L:2 * L]
    z_logvar = slab[:, 2 * L:3 * L]
    z_mu_prior = slab[:, 128:128 + L]
    z_logvar_prior = slab[:, 128 + L:128 + 2 * L]
    log_alpha = slab[:, 192:192 + NCLASSES]
    y_q = slab[:, 224:224 + NCLASSES]
    return (x_hat, z_q, y_q, log_alpha, z_mu, z_logvar,
            z_mu_prior, z_logvar_prior)


# --------------------------------------------------------------------------
# Pure-JAX reference (same bf16-matmul numerics, no Pallas)
# --------------------------------------------------------------------------
def _bf16_dot(a, w):
    return jnp.dot(a.astype(jnp.bfloat16), w.astype(jnp.bfloat16),
                   preferred_element_type=jnp.float32)


def _reference_forward(x_img, params, gumbel_noise, normal_noise):
    (cw1, cb1, cw2, cb2, cw3, cb3,
     ew1x, ew1y, eb1, ew2, eb2,
     emw1, emb1, emw2, emb2,
     evw1, evb1, evw2, evb2,
     dw1, db1, dw2, db2,
     dmw1, dmb1, dmw2, dmb2,
     pmw, pmb, pvw, pvb) = params
    relu = lambda a: jnp.maximum(a, 0.0)
    x = x_img.reshape(x_img.shape[0], -1)
    h = relu(_bf16_dot(x, cw1) + cb1)
    h = relu(_bf16_dot(h, cw2) + cb2)
    log_alpha = _bf16_dot(h, cw3) + cb3
    y_q = jax.nn.softmax((log_alpha + gumbel_noise) / TAU, axis=-1)
    he = relu(_bf16_dot(x, ew1x) + _bf16_dot(y_q, ew1y) + eb1)
    he = relu(_bf16_dot(he, ew2) + eb2)
    z_mu = _bf16_dot(relu(_bf16_dot(he, emw1) + emb1), emw2) + emb2
    z_logvar = _bf16_dot(relu(_bf16_dot(he, evw1) + evb1), evw2) + evb2
    z_q = z_mu + jnp.exp(0.5 * z_logvar) * normal_noise
    hd = relu(_bf16_dot(z_q, dw1) + db1)
    hd = relu(_bf16_dot(hd, dw2) + db2)
    hd = relu(_bf16_dot(hd, dmw1) + dmb1)
    x_hat = _bf16_dot(hd, dmw2) + dmb2
    z_mu_prior = _bf16_dot(y_q, pmw) + pmb
    z_logvar_prior = _bf16_dot(y_q, pvw) + pvb
    return (x_hat, z_q, y_q, log_alpha, z_mu, z_logvar,
            z_mu_prior, z_logvar_prior)


if __name__ == "__main__":
    key = jax.random.PRNGKey(0)
    k_x, k_p, k_g, k_e = jax.random.split(key, 4)

    B = 2
    x_img = jax.random.normal(k_x, (B, INPUT_C, INPUT_H, INPUT_W), jnp.float32)
    params = init_params(k_p)
    # prepare_params hoisted out of the forward: run once, reuse every call
    kparams = jax.block_until_ready(prepare_params(params))

    # Gumbel noise for RelaxedOneHotCategorical.rsample and N(0,1) for z.
    u = jax.random.uniform(k_g, (B, NCLASSES), jnp.float32, 1e-10, 1.0)
    gumbel_noise = -jnp.log(-jnp.log(u))
    normal_noise = jax.random.normal(k_e, (B, LATENT_DIM), jnp.float32)

    outs = gumbel_gmssae_forward(x_img, kparams, gumbel_noise, normal_noise)
    outs = jax.block_until_ready(outs)

    # Sanity check against the pure-JAX reference (bf16 matmuls in both;
    # x_hat is bf16 from the kernel -> cast up for the comparison).
    refs = _reference_forward(x_img, params, gumbel_noise, normal_noise)
    for o, r in zip(outs, refs):
        o = o.astype(jnp.float32)
        assert o.shape == r.shape, (o.shape, r.shape)
        assert jnp.allclose(o, r, atol=3e-2, rtol=3e-2), float(
            jnp.max(jnp.abs(o - r)))

    print("KERNEL_OK")
</pallas_src>

<mosaic_0001>
module attributes {stable_mosaic.version = 11 : i64} {
  func.func @gumbel_gmssae_kernel(%arg0: i32, %arg1: memref<16x1024xbf16, #tpu.memory_space<vmem>>, %arg2: memref<16x64xf32, #tpu.memory_space<vmem>>, %arg3: memref<1024x256xbf16, #tpu.memory_space<vmem>>, %arg4: memref<1x256xf32, #tpu.memory_space<vmem>>, %arg5: memref<128x128xbf16, #tpu.memory_space<vmem>>, %arg6: memref<1x128xf32, #tpu.memory_space<vmem>>, %arg7: memref<128x32xbf16, #tpu.memory_space<vmem>>, %arg8: memref<1x32xf32, #tpu.memory_space<vmem>>, %arg9: memref<32x192xbf16, #tpu.memory_space<vmem>>, %arg10: memref<1x192xf32, #tpu.memory_space<vmem>>, %arg11: memref<128x128xbf16, #tpu.memory_space<vmem>>, %arg12: memref<1x128xf32, #tpu.memory_space<vmem>>, %arg13: memref<128x256xbf16, #tpu.memory_space<vmem>>, %arg14: memref<1x256xf32, #tpu.memory_space<vmem>>, %arg15: memref<256x64xbf16, #tpu.memory_space<vmem>>, %arg16: memref<1x64xf32, #tpu.memory_space<vmem>>, %arg17: memref<32x128xbf16, #tpu.memory_space<vmem>>, %arg18: memref<1x128xf32, #tpu.memory_space<vmem>>, %arg19: memref<128x128xbf16, #tpu.memory_space<vmem>>, %arg20: memref<1x128xf32, #tpu.memory_space<vmem>>, %arg21: memref<128x128xbf16, #tpu.memory_space<vmem>>, %arg22: memref<1x128xf32, #tpu.memory_space<vmem>>, %arg23: memref<128x1024xbf16, #tpu.memory_space<vmem>>, %arg24: memref<1x1024xf32, #tpu.memory_space<vmem>>, %arg25: memref<16x1024xbf16, #tpu.memory_space<vmem>>, %arg26: memref<16x256xf32, #tpu.memory_space<vmem>>) attributes {dimension_semantics = [#tpu.dimension_semantics<parallel>], iteration_bounds = array<i64: 1>, scalar_prefetch = 0 : i64, scratch_operands = 0 : i64, tpu.core_type = #tpu.core_type<tc>, window_params = [{transform_indices = @transform_0, window_bounds = array<i64: 16, 1024>}, {transform_indices = @transform_1, window_bounds = array<i64: 16, 64>}, {pipeline_mode = #tpu.pipeline_mode<synchronous>, transform_indices = @transform_2, window_bounds = array<i64: 1024, 256>}, {pipeline_mode = #tpu.pipeline_mode<synchronous>, transform_indices = @transform_3, window_bounds = array<i64: 1, 256>}, {pipeline_mode = #tpu.pipeline_mode<synchronous>, transform_indices = @transform_4, window_bounds = array<i64: 128, 128>}, {pipeline_mode = #tpu.pipeline_mode<synchronous>, transform_indices = @transform_5, window_bounds = array<i64: 1, 128>}, {pipeline_mode = #tpu.pipeline_mode<synchronous>, transform_indices = @transform_6, window_bounds = array<i64: 128, 32>}, {pipeline_mode = #tpu.pipeline_mode<synchronous>, transform_indices = @transform_7, window_bounds = array<i64: 1, 32>}, {pipeline_mode = #tpu.pipeline_mode<synchronous>, transform_indices = @transform_8, window_bounds = array<i64: 32, 192>}, {pipeline_mode = #tpu.pipeline_mode<synchronous>, transform_indices = @transform_9, window_bounds = array<i64: 1, 192>}, {pipeline_mode = #tpu.pipeline_mode<synchronous>, transform_indices = @transform_10, window_bounds = array<i64: 128, 128>}, {pipeline_mode = #tpu.pipeline_mode<synchronous>, transform_indices = @transform_11, window_bounds = array<i64: 1, 128>}, {pipeline_mode = #tpu.pipeline_mode<synchronous>, transform_indices = @transform_12, window_bounds = array<i64: 128, 256>}, {pipeline_mode = #tpu.pipeline_mode<synchronous>, transform_indices = @transform_13, window_bounds = array<i64: 1, 256>}, {pipeline_mode = #tpu.pipeline_mode<synchronous>, transform_indices = @transform_14, window_bounds = array<i64: 256, 64>}, {pipeline_mode = #tpu.pipeline_mode<synchronous>, transform_indices = @transform_15, window_bounds = array<i64: 1, 64>}, {pipeline_mode = #tpu.pipeline_mode<synchronous>, transform_indices = @transform_16, window_bounds = array<i64: 32, 128>}, {pipeline_mode = #tpu.pipeline_mode<synchronous>, transform_indices = @transform_17, window_bounds = array<i64: 1, 128>}, {pipeline_mode = #tpu.pipeline_mode<synchronous>, transform_indices = @transform_18, window_bounds = array<i64: 128, 128>}, {pipeline_mode = #tpu.pipeline_mode<synchronous>, transform_indices = @transform_19, window_bounds = array<i64: 1, 128>}, {pipeline_mode = #tpu.pipeline_mode<synchronous>, transform_indices = @transform_20, window_bounds = array<i64: 128, 128>}, {pipeline_mode = #tpu.pipeline_mode<synchronous>, transform_indices = @transform_21, window_bounds = array<i64: 1, 128>}, {pipeline_mode = #tpu.pipeline_mode<synchronous>, transform_indices = @transform_22, window_bounds = array<i64: 128, 1024>}, {pipeline_mode = #tpu.pipeline_mode<synchronous>, transform_indices = @transform_23, window_bounds = array<i64: 1, 1024>}, {transform_indices = @transform_24, window_bounds = array<i64: 16, 1024>}, {transform_indices = @transform_25, window_bounds = array<i64: 16, 256>}]} {
    %c0 = arith.constant 0 : index
    %c0_0 = arith.constant 0 : index
    %0 = vector.load %arg1[%c0, %c0_0] : memref<16x1024xbf16, #tpu.memory_space<vmem>>, vector<16x1024xbf16>
    %c0_1 = arith.constant 0 : index
    %c0_2 = arith.constant 0 : index
    %1 = vector.load %arg2[%c0_1, %c0_2] : memref<16x64xf32, #tpu.memory_space<vmem>>, vector<16x64xf32>
    %2 = vector.extract_strided_slice %1 {offsets = [0, 0], sizes = [16, 32], strides = [1, 1]} : vector<16x64xf32> to vector<16x32xf32>
    %3 = vector.extract_strided_slice %1 {offsets = [0, 32], sizes = [16, 32], strides = [1, 1]} : vector<16x64xf32> to vector<16x32xf32>
    %c0_3 = arith.constant 0 : index
    %c0_4 = arith.constant 0 : index
    %4 = vector.load %arg3[%c0_3, %c0_4] : memref<1024x256xbf16, #tpu.memory_space<vmem>>, vector<1024x256xbf16>
    %cst = arith.constant dense<0.000000e+00> : vector<16x256xf32>
    %5 = tpu.matmul %0, %4, %cst {dimension_numbers = #tpu.dot_dimension_numbers<[1], [0], [0], [1], [0, 0, 1, 1], [], []>} : vector<16x1024xbf16>, vector<1024x256xbf16>, vector<16x256xf32> -> vector<16x256xf32>
    %c0_5 = arith.constant 0 : index
    %c0_6 = arith.constant 0 : index
    %6 = vector.load %arg4[%c0_5, %c0_6] : memref<1x256xf32, #tpu.memory_space<vmem>>, vector<1x256xf32>
    %7 = vector.broadcast %6 : vector<1x256xf32> to vector<16x256xf32>
    %8 = arith.addf %5, %7 : vector<16x256xf32>
    %9 = vector.extract_strided_slice %8 {offsets = [0, 0], sizes = [16, 128], strides = [1, 1]} : vector<16x256xf32> to vector<16x128xf32>
    %cst_7 = arith.constant 0.000000e+00 : f32
    %10 = vector.broadcast %cst_7 : f32 to vector<16x128xf32>
    %11 = arith.maximumf %9, %10 : vector<16x128xf32>
    %12 = vector.extract_strided_slice %8 {offsets = [0, 128], sizes = [16, 128], strides = [1, 1]} : vector<16x256xf32> to vector<16x128xf32>
    %13 = arith.truncf %11 : vector<16x128xf32> to vector<16x128xbf16>
    %c0_8 = arith.constant 0 : index
    %c0_9 = arith.constant 0 : index
    %14 = vector.load %arg5[%c0_8, %c0_9] : memref<128x128xbf16, #tpu.memory_space<vmem>>, vector<128x128xbf16>
    %cst_10 = arith.constant dense<0.000000e+00> : vector<16x128xf32>
    %15 = tpu.matmul %13, %14, %cst_10 {dimension_numbers = #tpu.dot_dimension_numbers<[1], [0], [0], [1], [0, 0, 1, 1], [], []>} : vector<16x128xbf16>, vector<128x128xbf16>, vector<16x128xf32> -> vector<16x128xf32>
    %c0_11 = arith.constant 0 : index
    %c0_12 = arith.constant 0 : index
    %16 = vector.load %arg6[%c0_11, %c0_12] : memref<1x128xf32, #tpu.memory_space<vmem>>, vector<1x128xf32>
    %17 = vector.broadcast %16 : vector<1x128xf32> to vector<16x128xf32>
    %18 = arith.addf %15, %17 : vector<16x128xf32>
    %cst_13 = arith.constant 0.000000e+00 : f32
    %19 = vector.broadcast %cst_13 : f32 to vector<16x128xf32>
    %20 = arith.maximumf %18, %19 : vector<16x128xf32>
    %21 = arith.truncf %20 : vector<16x128xf32> to vector<16x128xbf16>
    %c0_14 = arith.constant 0 : index
    %c0_15 = arith.constant 0 : index
    %22 = vector.load %arg7[%c0_14, %c0_15] : memref<128x32xbf16, #tpu.memory_space<vmem>>, vector<128x32xbf16>
    %cst_16 = arith.constant dense<0.000000e+00> : vector<16x32xf32>
    %23 = tpu.matmul %21, %22, %cst_16 {dimension_numbers = #tpu.dot_dimension_numbers<[1], [0], [0], [1], [0, 0, 1, 1], [], []>} : vector<16x128xbf16>, vector<128x32xbf16>, vector<16x32xf32> -> vector<16x32xf32>
    %c0_17 = arith.constant 0 : index
    %c0_18 = arith.constant 0 : index
    %24 = vector.load %arg8[%c0_17, %c0_18] : memref<1x32xf32, #tpu.memory_space<vmem>>, vector<1x32xf32>
    %25 = vector.broadcast %24 : vector<1x32xf32> to vector<16x32xf32>
    %26 = arith.addf %23, %25 : vector<16x32xf32>
    %27 = arith.addf %26, %2 : vector<16x32xf32>
    %cst_19 = arith.constant 1.01010096 : f32
    %28 = vector.broadcast %cst_19 : f32 to vector<16x32xf32>
    %29 = arith.mulf %27, %28 : vector<16x32xf32>
    %cst_20 = arith.constant dense<0xFF800000> : vector<16xf32>
    %30 = vector.multi_reduction <maximumf>, %29, %cst_20 [1] : vector<16x32xf32> to vector<16xf32>
    %31 = vector.shape_cast %30 : vector<16xf32> to vector<16x1xf32>
    %32 = vector.broadcast %31 : vector<16x1xf32> to vector<16x32xf32>
    %33 = arith.subf %29, %32 : vector<16x32xf32>
    %34 = math.exp %33 : vector<16x32xf32>
    %cst_21 = arith.constant dense<0.000000e+00> : vector<16xf32>
    %35 = vector.multi_reduction <add>, %34, %cst_21 [1] : vector<16x32xf32> to vector<16xf32>
    %36 = vector.shape_cast %35 : vector<16xf32> to vector<16x1xf32>
    %37 = tpu.reciprocal %36 {approx = true} : vector<16x1xf32> -> vector<16x1xf32>
    %38 = vector.broadcast %37 : vector<16x1xf32> to vector<16x32xf32>
    %39 = arith.mulf %34, %38 : vector<16x32xf32>
    %40 = arith.truncf %39 : vector<16x32xf32> to vector<16x32xbf16>
    %c0_22 = arith.constant 0 : index
    %c0_23 = arith.constant 0 : index
    %41 = vector.load %arg9[%c0_22, %c0_23] : memref<32x192xbf16, #tpu.memory_space<vmem>>, vector<32x192xbf16>
    %cst_24 = arith.constant dense<0.000000e+00> : vector<16x192xf32>
    %42 = tpu.matmul %40, %41, %cst_24 {dimension_numbers = #tpu.dot_dimension_numbers<[1], [0], [0], [1], [0, 0, 1, 1], [], []>} : vector<16x32xbf16>, vector<32x192xbf16>, vector<16x192xf32> -> vector<16x192xf32>
    %c0_25 = arith.constant 0 : index
    %c0_26 = arith.constant 0 : index
    %43 = vector.load %arg10[%c0_25, %c0_26] : memref<1x192xf32, #tpu.memory_space<vmem>>, vector<1x192xf32>
    %44 = vector.broadcast %43 : vector<1x192xf32> to vector<16x192xf32>
    %45 = arith.addf %42, %44 : vector<16x192xf32>
    %46 = vector.extract_strided_slice %45 {offsets = [0, 128], sizes = [16, 64], strides = [1, 1]} : vector<16x192xf32> to vector<16x64xf32>
    %47 = vector.extract_strided_slice %45 {offsets = [0, 0], sizes = [16, 128], strides = [1, 1]} : vector<16x192xf32> to vector<16x128xf32>
    %48 = arith.addf %12, %47 : vector<16x128xf32>
    %cst_27 = arith.constant 0.000000e+00 : f32
    %49 = vector.broadcast %cst_27 : f32 to vector<16x128xf32>
    %50 = arith.maximumf %48, %49 : vector<16x128xf32>
    %51 = arith.truncf %50 : vector<16x128xf32> to vector<16x128xbf16>
    %c0_28 = arith.constant 0 : index
    %c0_29 = arith.constant 0 : index
    %52 = vector.load %arg11[%c0_28, %c0_29] : memref<128x128xbf16, #tpu.memory_space<vmem>>, vector<128x128xbf16>
    %cst_30 = arith.constant dense<0.000000e+00> : vector<16x128xf32>
    %53 = tpu.matmul %51, %52, %cst_30 {dimension_numbers = #tpu.dot_dimension_numbers<[1], [0], [0], [1], [0, 0, 1, 1], [], []>} : vector<16x128xbf16>, vector<128x128xbf16>, vector<16x128xf32> -> vector<16x128xf32>
    %c0_31 = arith.constant 0 : index
    %c0_32 = arith.constant 0 : index
    %54 = vector.load %arg12[%c0_31, %c0_32] : memref<1x128xf32, #tpu.memory_space<vmem>>, vector<1x128xf32>
    %55 = vector.broadcast %54 : vector<1x128xf32> to vector<16x128xf32>
    %56 = arith.addf %53, %55 : vector<16x128xf32>
    %cst_33 = arith.constant 0.000000e+00 : f32
    %57 = vector.broadcast %cst_33 : f32 to vector<16x128xf32>
    %58 = arith.maximumf %56, %57 : vector<16x128xf32>
    %59 = arith.truncf %58 : vector<16x128xf32> to vector<16x128xbf16>
    %c0_34 = arith.constant 0 : index
    %c0_35 = arith.constant 0 : index
    %60 = vector.load %arg13[%c0_34, %c0_35] : memref<128x256xbf16, #tpu.memory_space<vmem>>, vector<128x256xbf16>
    %cst_36 = arith.constant dense<0.000000e+00> : vector<16x256xf32>
    %61 = tpu.matmul %59, %60, %cst_36 {dimension_numbers = #tpu.dot_dimension_numbers<[1], [0], [0], [1], [0, 0, 1, 1], [], []>} : vector<16x128xbf16>, vector<128x256xbf16>, vector<16x256xf32> -> vector<16x256xf32>
    %c0_37 = arith.constant 0 : index
    %c0_38 = arith.constant 0 : index
    %62 = vector.load %arg14[%c0_37, %c0_38] : memref<1x256xf32, #tpu.memory_space<vmem>>, vector<1x256xf32>
    %63 = vector.broadcast %62 : vector<1x256xf32> to vector<16x256xf32>
    %64 = arith.addf %61, %63 : vector<16x256xf32>
    %cst_39 = arith.constant 0.000000e+00 : f32
    %65 = vector.broadcast %cst_39 : f32 to vector<16x256xf32>
    %66 = arith.maximumf %64, %65 : vector<16x256xf32>
    %67 = arith.truncf %66 : vector<16x256xf32> to vector<16x256xbf16>
    %c0_40 = arith.constant 0 : index
    %c0_41 = arith.constant 0 : index
    %68 = vector.load %arg15[%c0_40, %c0_41] : memref<256x64xbf16, #tpu.memory_space<vmem>>, vector<256x64xbf16>
    %cst_42 = arith.constant dense<0.000000e+00> : vector<16x64xf32>
    %69 = tpu.matmul %67, %68, %cst_42 {dimension_numbers = #tpu.dot_dimension_numbers<[1], [0], [0], [1], [0, 0, 1, 1], [], []>} : vector<16x256xbf16>, vector<256x64xbf16>, vector<16x64xf32> -> vector<16x64xf32>
    %c0_43 = arith.constant 0 : index
    %c0_44 = arith.constant 0 : index
    %70 = vector.load %arg16[%c0_43, %c0_44] : memref<1x64xf32, #tpu.memory_space<vmem>>, vector<1x64xf32>
    %71 = vector.broadcast %70 : vector<1x64xf32> to vector<16x64xf32>
    %72 = arith.addf %69, %71 : vector<16x64xf32>
    %73 = vector.extract_strided_slice %72 {offsets = [0, 0], sizes = [16, 32], strides = [1, 1]} : vector<16x64xf32> to vector<16x32xf32>
    %74 = vector.extract_strided_slice %72 {offsets = [0, 32], sizes = [16, 32], strides = [1, 1]} : vector<16x64xf32> to vector<16x32xf32>
    %cst_45 = arith.constant 5.000000e-01 : f32
    %75 = vector.broadcast %cst_45 : f32 to vector<16x32xf32>
    %76 = arith.mulf %75, %74 : vector<16x32xf32>
    %77 = math.exp %76 : vector<16x32xf32>
    %78 = arith.mulf %77, %3 : vector<16x32xf32>
    %79 = arith.addf %73, %78 : vector<16x32xf32>
    %80 = arith.truncf %79 : vector<16x32xf32> to vector<16x32xbf16>
    %c0_46 = arith.constant 0 : index
    %c0_47 = arith.constant 0 : index
    %81 = vector.load %arg17[%c0_46, %c0_47] : memref<32x128xbf16, #tpu.memory_space<vmem>>, vector<32x128xbf16>
    %cst_48 = arith.constant dense<0.000000e+00> : vector<16x128xf32>
    %82 = tpu.matmul %80, %81, %cst_48 {dimension_numbers = #tpu.dot_dimension_numbers<[1], [0], [0], [1], [0, 0, 1, 1], [], []>} : vector<16x32xbf16>, vector<32x128xbf16>, vector<16x128xf32> -> vector<16x128xf32>
    %c0_49 = arith.constant 0 : index
    %c0_50 = arith.constant 0 : index
    %83 = vector.load %arg18[%c0_49, %c0_50] : memref<1x128xf32, #tpu.memory_space<vmem>>, vector<1x128xf32>
    %84 = vector.broadcast %83 : vector<1x128xf32> to vector<16x128xf32>
    %85 = arith.addf %82, %84 : vector<16x128xf32>
    %cst_51 = arith.constant 0.000000e+00 : f32
    %86 = vector.broadcast %cst_51 : f32 to vector<16x128xf32>
    %87 = arith.maximumf %85, %86 : vector<16x128xf32>
    %88 = arith.truncf %87 : vector<16x128xf32> to vector<16x128xbf16>
    %c0_52 = arith.constant 0 : index
    %c0_53 = arith.constant 0 : index
    %89 = vector.load %arg19[%c0_52, %c0_53] : memref<128x128xbf16, #tpu.memory_space<vmem>>, vector<128x128xbf16>
    %cst_54 = arith.constant dense<0.000000e+00> : vector<16x128xf32>
    %90 = tpu.matmul %88, %89, %cst_54 {dimension_numbers = #tpu.dot_dimension_numbers<[1], [0], [0], [1], [0, 0, 1, 1], [], []>} : vector<16x128xbf16>, vector<128x128xbf16>, vector<16x128xf32> -> vector<16x128xf32>
    %c0_55 = arith.constant 0 : index
    %c0_56 = arith.constant 0 : index
    %91 = vector.load %arg20[%c0_55, %c0_56] : memref<1x128xf32, #tpu.memory_space<vmem>>, vector<1x128xf32>
    %92 = vector.broadcast %91 : vector<1x128xf32> to vector<16x128xf32>
    %93 = arith.addf %90, %92 : vector<16x128xf32>
    %cst_57 = arith.constant 0.000000e+00 : f32
    %94 = vector.broadcast %cst_57 : f32 to vector<16x128xf32>
    %95 = arith.maximumf %93, %94 : vector<16x128xf32>
    %96 = arith.truncf %95 : vector<16x128xf32> to vector<16x128xbf16>
    %c0_58 = arith.constant 0 : index
    %c0_59 = arith.constant 0 : index
    %97 = vector.load %arg21[%c0_58, %c0_59] : memref<128x128xbf16, #tpu.memory_space<vmem>>, vector<128x128xbf16>
    %cst_60 = arith.constant dense<0.000000e+00> : vector<16x128xf32>
    %98 = tpu.matmul %96, %97, %cst_60 {dimension_numbers = #tpu.dot_dimension_numbers<[1], [0], [0], [1], [0, 0, 1, 1], [], []>} : vector<16x128xbf16>, vector<128x128xbf16>, vector<16x128xf32> -> vector<16x128xf32>
    %c0_61 = arith.constant 0 : index
    %c0_62 = arith.constant 0 : index
    %99 = vector.load %arg22[%c0_61, %c0_62] : memref<1x128xf32, #tpu.memory_space<vmem>>, vector<1x128xf32>
    %100 = vector.broadcast %99 : vector<1x128xf32> to vector<16x128xf32>
    %101 = arith.addf %98, %100 : vector<16x128xf32>
    %cst_63 = arith.constant 0.000000e+00 : f32
    %102 = vector.broadcast %cst_63 : f32 to vector<16x128xf32>
    %103 = arith.maximumf %101, %102 : vector<16x128xf32>
    %104 = arith.truncf %103 : vector<16x128xf32> to vector<16x128xbf16>
    %c0_64 = arith.constant 0 : index
    %c0_65 = arith.constant 0 : index
    %105 = vector.load %arg23[%c0_64, %c0_65] : memref<128x1024xbf16, #tpu.memory_space<vmem>>, vector<128x1024xbf16>
    %cst_66 = arith.constant dense<0.000000e+00> : vector<16x1024xf32>
    %106 = tpu.matmul %104, %105, %cst_66 {dimension_numbers = #tpu.dot_dimension_numbers<[1], [0], [0], [1], [0, 0, 1, 1], [], []>} : vector<16x128xbf16>, vector<128x1024xbf16>, vector<16x1024xf32> -> vector<16x1024xf32>
    %c0_67 = arith.constant 0 : index
    %c0_68 = arith.constant 0 : index
    %107 = vector.load %arg24[%c0_67, %c0_68] : memref<1x1024xf32, #tpu.memory_space<vmem>>, vector<1x1024xf32>
    %108 = vector.broadcast %107 : vector<1x1024xf32> to vector<16x1024xf32>
    %109 = arith.addf %106, %108 : vector<16x1024xf32>
    %110 = arith.truncf %109 : vector<16x1024xf32> to vector<16x1024xbf16>
    %c0_69 = arith.constant 0 : index
    %c0_70 = arith.constant 0 : index
    %111 = vector.load %arg25[%c0_69, %c0_70] : memref<16x1024xbf16, #tpu.memory_space<vmem>>, vector<16x1024xbf16>
    tpu.vector_store %arg25[%c0_69, %c0_70], %110 {strides = array<i32>} : memref<16x1024xbf16, #tpu.memory_space<vmem>>, vector<16x1024xbf16>,
    %cst_71 = arith.constant 0.000000e+00 : f32
    %112 = vector.broadcast %cst_71 : f32 to vector<16x32xf32>
    %113 = tpu.concatenate %79, %72, %112, %46, %26, %39 in 1 : vector<16x32xf32>, vector<16x64xf32>, vector<16x32xf32>, vector<16x64xf32>, vector<16x32xf32>, vector<16x32xf32> -> vector<16x256xf32>
    %c0_72 = arith.constant 0 : index
    %c0_73 = arith.constant 0 : index
    %114 = vector.load %arg26[%c0_72, %c0_73] : memref<16x256xf32, #tpu.memory_space<vmem>>, vector<16x256xf32>
    tpu.vector_store %arg26[%c0_72, %c0_73], %113 {strides = array<i32>} : memref<16x256xf32, #tpu.memory_space<vmem>>, vector<16x256xf32>,
    return
  }
  func.func @transform_0(%arg0: i32) -> (i32, i32) {
    %c0_i32 = arith.constant 0 : i32
    %c0_i32_0 = arith.constant 0 : i32
    return %arg0, %c0_i32 : i32, i32
  }
  func.func @transform_1(%arg0: i32) -> (i32, i32) {
    %c0_i32 = arith.constant 0 : i32
    %c0_i32_0 = arith.constant 0 : i32
    return %arg0, %c0_i32 : i32, i32
  }
  func.func @transform_2(%arg0: i32) -> (i32, i32) {
    %c0_i32 = arith.constant 0 : i32
    %c0_i32_0 = arith.constant 0 : i32
    %c0_i32_1 = arith.constant 0 : i32
    return %c0_i32, %c0_i32_0 : i32, i32
  }
  func.func @transform_3(%arg0: i32) -> (i32, i32) {
    %c0_i32 = arith.constant 0 : i32
    %c0_i32_0 = arith.constant 0 : i32
    %c0_i32_1 = arith.constant 0 : i32
    return %c0_i32, %c0_i32_0 : i32, i32
  }
  func.func @transform_4(%arg0: i32) -> (i32, i32) {
    %c0_i32 = arith.constant 0 : i32
    %c0_i32_0 = arith.constant 0 : i32
    %c0_i32_1 = arith.constant 0 : i32
    return %c0_i32, %c0_i32_0 : i32, i32
  }
  func.func @transform_5(%arg0: i32) -> (i32, i32) {
    %c0_i32 = arith.constant 0 : i32
    %c0_i32_0 = arith.constant 0 : i32
    %c0_i32_1 = arith.constant 0 : i32
    return %c0_i32, %c0_i32_0 : i32, i32
  }
  func.func @transform_6(%arg0: i32) -> (i32, i32) {
    %c0_i32 = arith.constant 0 : i32
    %c0_i32_0 = arith.constant 0 : i32
    %c0_i32_1 = arith.constant 0 : i32
    return %c0_i32, %c0_i32_0 : i32, i32
  }
  func.func @transform_7(%arg0: i32) -> (i32, i32) {
    %c0_i32 = arith.constant 0 : i32
    %c0_i32_0 = arith.constant 0 : i32
    %c0_i32_1 = arith.constant 0 : i32
    return %c0_i32, %c0_i32_0 : i32, i32
  }
  func.func @transform_8(%arg0: i32) -> (i32, i32) {
    %c0_i32 = arith.constant 0 : i32
    %c0_i32_0 = arith.constant 0 : i32
    %c0_i32_1 = arith.constant 0 : i32
    return %c0_i32, %c0_i32_0 : i32, i32
  }
  func.func @transform_9(%arg0: i32) -> (i32, i32) {
    %c0_i32 = arith.constant 0 : i32
    %c0_i32_0 = arith.constant 0 : i32
    %c0_i32_1 = arith.constant 0 : i32
    return %c0_i32, %c0_i32_0 : i32, i32
  }
  func.func @transform_10(%arg0: i32) -> (i32, i32) {
    %c0_i32 = arith.constant 0 : i32
    %c0_i32_0 = arith.constant 0 : i32
    %c0_i32_1 = arith.constant 0 : i32
    return %c0_i32, %c0_i32_0 : i32, i32
  }
  func.func @transform_11(%arg0: i32) -> (i32, i32) {
    %c0_i32 = arith.constant 0 : i32
    %c0_i32_0 = arith.constant 0 : i32
    %c0_i32_1 = arith.constant 0 : i32
    return %c0_i32, %c0_i32_0 : i32, i32
  }
  func.func @transform_12(%arg0: i32) -> (i32, i32) {
    %c0_i32 = arith.constant 0 : i32
    %c0_i32_0 = arith.constant 0 : i32
    %c0_i32_1 = arith.constant 0 : i32
    return %c0_i32, %c0_i32_0 : i32, i32
  }
  func.func @transform_13(%arg0: i32) -> (i32, i32) {
    %c0_i32 = arith.constant 0 : i32
    %c0_i32_0 = arith.constant 0 : i32
    %c0_i32_1 = arith.constant 0 : i32
    return %c0_i32, %c0_i32_0 : i32, i32
  }
  func.func @transform_14(%arg0: i32) -> (i32, i32) {
    %c0_i32 = arith.constant 0 : i32
    %c0_i32_0 = arith.constant 0 : i32
    %c0_i32_1 = arith.constant 0 : i32
    return %c0_i32, %c0_i32_0 : i32, i32
  }
  func.func @transform_15(%arg0: i32) -> (i32, i32) {
    %c0_i32 = arith.constant 0 : i32
    %c0_i32_0 = arith.constant 0 : i32
    %c0_i32_1 = arith.constant 0 : i32
    return %c0_i32, %c0_i32_0 : i32, i32
  }
  func.func @transform_16(%arg0: i32) -> (i32, i32) {
    %c0_i32 = arith.constant 0 : i32
    %c0_i32_0 = arith.constant 0 : i32
    %c0_i32_1 = arith.constant 0 : i32
    return %c0_i32, %c0_i32_0 : i32, i32
  }
  func.func @transform_17(%arg0: i32) -> (i32, i32) {
    %c0_i32 = arith.constant 0 : i32
    %c0_i32_0 = arith.constant 0 : i32
    %c0_i32_1 = arith.constant 0 : i32
    return %c0_i32, %c0_i32_0 : i32, i32
  }
  func.func @transform_18(%arg0: i32) -> (i32, i32) {
    %c0_i32 = arith.constant 0 : i32
    %c0_i32_0 = arith.constant 0 : i32
    %c0_i32_1 = arith.constant 0 : i32
    return %c0_i32, %c0_i32_0 : i32, i32
  }
  func.func @transform_19(%arg0: i32) -> (i32, i32) {
    %c0_i32 = arith.constant 0 : i32
    %c0_i32_0 = arith.constant 0 : i32
    %c0_i32_1 = arith.constant 0 : i32
    return %c0_i32, %c0_i32_0 : i32, i32
  }
  func.func @transform_20(%arg0: i32) -> (i32, i32) {
    %c0_i32 = arith.constant 0 : i32
    %c0_i32_0 = arith.constant 0 : i32
    %c0_i32_1 = arith.constant 0 : i32
    return %c0_i32, %c0_i32_0 : i32, i32
  }
  func.func @transform_21(%arg0: i32) -> (i32, i32) {
    %c0_i32 = arith.constant 0 : i32
    %c0_i32_0 = arith.constant 0 : i32
    %c0_i32_1 = arith.constant 0 : i32
    return %c0_i32, %c0_i32_0 : i32, i32
  }
  func.func @transform_22(%arg0: i32) -> (i32, i32) {
    %c0_i32 = arith.constant 0 : i32
    %c0_i32_0 = arith.constant 0 : i32
    %c0_i32_1 = arith.constant 0 : i32
    return %c0_i32, %c0_i32_0 : i32, i32
  }
  func.func @transform_23(%arg0: i32) -> (i32, i32) {
    %c0_i32 = arith.constant 0 : i32
    %c0_i32_0 = arith.constant 0 : i32
    %c0_i32_1 = arith.constant 0 : i32
    return %c0_i32, %c0_i32_0 : i32, i32
  }
  func.func @transform_24(%arg0: i32) -> (i32, i32) {
    %c0_i32 = arith.constant 0 : i32
    %c0_i32_0 = arith.constant 0 : i32
    return %arg0, %c0_i32 : i32, i32
  }
  func.func @transform_25(%arg0: i32) -> (i32, i32) {
    %c0_i32 = arith.constant 0 : i32
    %c0_i32_0 = arith.constant 0 : i32
    return %arg0, %c0_i32 : i32, i32
  }
}

</mosaic_0001>

<llo_original>
// kernel: tpu_custom_call.1
$region0: #{tpu_custom_call.1}
  #allocation0 [shape = 'u32[]', space=smem, size = 0x4, offset = 0x4, fixed_abs, tag = 'smem constant byte address 0x4 - core index']
  #allocation1 [shape = 'u32[144,128]{1,0:T(1,128)}', space=vmem, size = 0x12000, scoped, tag = 'internal scratch']
  %s0 = inlined_call_operand.vmem [shape: bf16[16,1024], index: 0, kind: input, shape index: {}]
  %s1 = inlined_call_operand.hbm [shape: f32[16,64], index: 1, kind: input, shape index: {}]
  %s2 = inlined_call_operand.hbm [shape: bf16[1024,256], index: 2, kind: input, shape index: {}]
  %s3 = inlined_call_operand.hbm [shape: f32[1,256], index: 3, kind: input, shape index: {}]
  %s4 = inlined_call_operand.vmem [shape: bf16[128,128], index: 4, kind: input, shape index: {}]
  %s5 = inlined_call_operand.hbm [shape: f32[1,128], index: 5, kind: input, shape index: {}]
  %s6 = inlined_call_operand.vmem [shape: bf16[128,32], index: 6, kind: input, shape index: {}]
  %s7 = inlined_call_operand.hbm [shape: f32[1,32], index: 7, kind: input, shape index: {}]
  %s8 = inlined_call_operand.hbm [shape: bf16[32,192], index: 8, kind: input, shape index: {}]
  %s9 = inlined_call_operand.hbm [shape: f32[1,192], index: 9, kind: input, shape index: {}]
  %s10 = inlined_call_operand.hbm [shape: bf16[128,128], index: 10, kind: input, shape index: {}]
  %s11 = inlined_call_operand.hbm [shape: f32[1,128], index: 11, kind: input, shape index: {}]
  %s12 = inlined_call_operand.vmem [shape: bf16[128,256], index: 12, kind: input, shape index: {}]
  %s13 = inlined_call_operand.hbm [shape: f32[1,256], index: 13, kind: input, shape index: {}]
  %s14 = inlined_call_operand.vmem [shape: bf16[256,64], index: 14, kind: input, shape index: {}]
  %s15 = inlined_call_operand.hbm [shape: f32[1,64], index: 15, kind: input, shape index: {}]
  %s16 = inlined_call_operand.hbm [shape: bf16[32,128], index: 16, kind: input, shape index: {}]
  %s17 = inlined_call_operand.vmem [shape: f32[1,128], index: 17, kind: input, shape index: {}]
  %s18 = inlined_call_operand.hbm [shape: bf16[128,128], index: 18, kind: input, shape index: {}]
  %s19 = inlined_call_operand.vmem [shape: f32[1,128], index: 19, kind: input, shape index: {}]
  %s20 = inlined_call_operand.hbm [shape: bf16[128,128], index: 20, kind: input, shape index: {}]
  %s21 = inlined_call_operand.vmem [shape: f32[1,128], index: 21, kind: input, shape index: {}]
  %s22 = inlined_call_operand.hbm [shape: bf16[128,1024], index: 22, kind: input, shape index: {}]
  %s23 = inlined_call_operand.vmem [shape: f32[1,1024], index: 23, kind: input, shape index: {}]
  %s24 = inlined_call_operand.hbm [shape: bf16[16,1024], index: 24, kind: output, shape index: {0}]
  %s25 = inlined_call_operand.hbm [shape: f32[16,256], index: 25, kind: output, shape index: {1}]
  %26 = xla_tuple %s24, %s25
  %s27 = sld [smem:[#allocation0]]
  $region174: #{tpu_custom_call.1} parent=0
    _
  %s29 = ssub.s32 1, %s27
  %s30 = scalar_select 0, %s29, %s27
  $region1: #{tpu_custom_call.1} parent=0
    #allocation2 [shape = 'u8[8192]{0}', space=vmem, size = 0x2000, scoped, tag = 'input window, operand 1, single buffered']
    #allocation3 [shape = 's32[1]{0}', space=sflag, size = 0x4, scoped, tag = 'scoped memory for tpu_custom_call.1']
    #allocation4 [shape = 's32[1]{0}', space=sflag, size = 0x4, scoped, tag = 'scoped memory for tpu_custom_call.1']
    #allocation5 [shape = 'u8[524288]{0}', space=vmem, size = 0x80000, scoped, tag = 'input window, operand 2, single buffered']
    #allocation6 [shape = 's32[1]{0}', space=sflag, size = 0x4, scoped, tag = 'scoped memory for tpu_custom_call.1']
    #allocation7 [shape = 'u8[1024]{0}', space=vmem, size = 0x400, scoped, tag = 'input window, operand 3, single buffered']
    #allocation8 [shape = 'u8[512]{0}', space=vmem, size = 0x400, scoped, tag = 'input window, operand 5, single buffered']
    #allocation9 [shape = 's32[1]{0}', space=sflag, size = 0x4, scoped, tag = 'scoped memory for tpu_custom_call.1']
    #allocation10 [shape = 'u8[512]{0}', space=vmem, size = 0x400, scoped, tag = 'input window, operand 7, single buffered']
    #allocation11 [shape = 'u8[16384]{0}', space=vmem, size = 0x4000, scoped, tag = 'input window, operand 8, single buffered']
    #allocation12 [shape = 's32[1]{0}', space=sflag, size = 0x4, scoped, tag = 'scoped memory for tpu_custom_call.1']
    #allocation13 [shape = 'u8[1024]{0}', space=vmem, size = 0x400, scoped, tag = 'input window, operand 9, single buffered']
    #allocation14 [shape = 'u8[32768]{0}', space=vmem, size = 0x8000, scoped, tag = 'input window, operand 10, single buffered']
    #allocation15 [shape = 's32[1]{0}', space=sflag, size = 0x4, scoped, tag = 'scoped memory for tpu_custom_call.1']
    #allocation16 [shape = 'u8[512]{0}', space=vmem, size = 0x400, scoped, tag = 'input window, operand 11, single buffered']
    #allocation17 [shape = 'u8[1024]{0}', space=vmem, size = 0x400, scoped, tag = 'input window, operand 13, single buffered']
    #allocation18 [shape = 's32[1]{0}', space=sflag, size = 0x4, scoped, tag = 'scoped memory for tpu_custom_call.1']
    #allocation19 [shape = 'u8[512]{0}', space=vmem, size = 0x400, scoped, tag = 'input window, operand 15, single buffered']
    #allocation20 [shape = 'u8[8192]{0}', space=vmem, size = 0x2000, scoped, tag = 'input window, operand 16, single buffered']
    #allocation21 [shape = 's32[1]{0}', space=sflag, size = 0x4, scoped, tag = 'scoped memory for tpu_custom_call.1']
    #allocation22 [shape = 'u8[32768]{0}', space=vmem, size = 0x8000, scoped, tag = 'input window, operand 18, single buffered']
    #allocation23 [shape = 'u8[32768]{0}', space=vmem, size = 0x8000, scoped, tag = 'input window, operand 20, single buffered']
    #allocation24 [shape = 's32[1]{0}', space=sflag, size = 0x4, scoped, tag = 'scoped memory for tpu_custom_call.1']
    #allocation25 [shape = 'u8[262144]{0}', space=vmem, size = 0x40000, scoped, tag = 'input window, operand 22, single buffered']
    #allocation26 [shape = 'u8[32768]{0}', space=vmem, size = 0x8000, scoped, tag = 'output window, operand 0, single buffered']
    #allocation27 [shape = 'u8[16384]{0}', space=vmem, size = 0x4000, scoped, tag = 'output window, operand 1, single buffered']
    #allocation28 [shape = 's32[1]{0}', space=sflag, size = 0x4, scoped, tag = 'scoped memory for tpu_custom_call.1']
    %31 = vsyncpa [#allocation3], 0
    %32 = vsyncpa [#allocation6], 0
    %33 = vsyncpa [#allocation9], 0
    %34 = vsyncpa [#allocation12], 0
    %35 = vsyncpa [#allocation15], 0
    %36 = vsyncpa [#allocation18], 0
    %37 = vsyncpa [#allocation21], 0
    %38 = vsyncpa [#allocation24], 0
    %39 = vsyncpa [#allocation4], 0
    %40 = vsyncpa [#allocation28], 0
    // Predicated region
    $region2: #{tpu_custom_call.1} parent=1 // pred_check
      _
    $region3: #{tpu_custom_call.1} parent=1 // pred_check_branch
      %42 = sbr.rel (0) target = $region5
    $region4: #{tpu_custom_call.1} parent=1 // pred_region
      _
    $region5: #{tpu_custom_call.1} parent=1 // pred_fallthru
      _
    // Predicated region
    $region6: #{tpu_custom_call.1} parent=1 // pred_check
      _
    $region7: #{tpu_custom_call.1} parent=1 // pred_check_branch
      %44 = sbr.rel (0) target = $region9
    $region8: #{tpu_custom_call.1} parent=1 // pred_region
      %s46 = ssub.s32 256, 256
      %47 = vsyncadd [#allocation3], %s46
      %s48 = sshll.u32 [#allocation2], 4
      %s49 = int_to_ptr.vmem [resolvable:$true] %s48
      %54 = dma.hbm_to_vmem [thread:$0]  %s1, 256, %s49, [#allocation3], 128, 128, 8
    $region9: #{tpu_custom_call.1} parent=1 // pred_fallthru
      _
    // Predicated region
    $region10: #{tpu_custom_call.1} parent=1 // pred_check
      _
    $region11: #{tpu_custom_call.1} parent=1 // pred_check_branch
      %56 = sbr.rel (0) target = $region13
    $region12: #{tpu_custom_call.1} parent=1 // pred_region
      %s58 = ssub.s32 16384, 16384
      %59 = vsyncadd [#allocation6], %s58
      %s60 = sshll.u32 [#allocation5], 4
      %s61 = int_to_ptr.vmem [resolvable:$true] %s60
      %66 = dma.hbm_to_vmem [thread:$0]  %s2, 16384, %s61, [#allocation6], 128, 128, 8
    $region13: #{tpu_custom_call.1} parent=1 // pred_fallthru
      _
    // Predicated region
    $region14: #{tpu_custom_call.1} parent=1 // pred_check
      _
    $region15: #{tpu_custom_call.1} parent=1 // pred_check_branch
      %68 = sbr.rel (0) target = $region17
    $region16: #{tpu_custom_call.1} parent=1 // pred_region
      %s70 = ssub.s32 32, 32
      %71 = vsyncadd [#allocation6], %s70
      %s73 = sshll.u32 [#allocation7], 4
      %s74 = int_to_ptr.vmem [resolvable:$true] %s73
      %76 = dma.hbm_to_vmem [thread:$0]  %s3, 32, %s74, [#allocation6]
    $region17: #{tpu_custom_call.1} parent=1 // pred_fallthru
      _
    // Predicated region
    $region18: #{tpu_custom_call.1} parent=1 // pred_check
      _
    $region19: #{tpu_custom_call.1} parent=1 // pred_check_branch
      %78 = sbr.rel (0) target = $region21
    $region20: #{tpu_custom_call.1} parent=1 // pred_region
      _
    $region21: #{tpu_custom_call.1} parent=1 // pred_fallthru
      _
    // Predicated region
    $region22: #{tpu_custom_call.1} parent=1 // pred_check
      _
    $region23: #{tpu_custom_call.1} parent=1 // pred_check_branch
      %80 = sbr.rel (0) target = $region25
    $region24: #{tpu_custom_call.1} parent=1 // pred_region
      %s82 = ssub.s32 16, 16
      %83 = vsyncadd [#allocation9], %s82
      %s85 = sshll.u32 [#allocation8], 4
      %s86 = int_to_ptr.vmem [resolvable:$true] %s85
      %88 = dma.hbm_to_vmem [thread:$0]  %s5, 16, %s86, [#allocation9]
    $region25: #{tpu_custom_call.1} parent=1 // pred_fallthru
      _
    // Predicated region
    $region26: #{tpu_custom_call.1} parent=1 // pred_check
      _
    $region27: #{tpu_custom_call.1} parent=1 // pred_check_branch
      %90 = sbr.rel (0) target = $region29
    $region28: #{tpu_custom_call.1} parent=1 // pred_region
      _
    $region29: #{tpu_custom_call.1} parent=1 // pred_fallthru
      _
    // Predicated region
    $region30: #{tpu_custom_call.1} parent=1 // pred_check
      _
    $region31: #{tpu_custom_call.1} parent=1 // pred_check_branch
      %92 = sbr.rel (0) target = $region33
    $region32: #{tpu_custom_call.1} parent=1 // pred_region
      %s94 = ssub.s32 16, 16
      %95 = vsyncadd [#allocation9], %s94
      %s97 = sshll.u32 [#allocation10], 4
      %s98 = int_to_ptr.vmem [resolvable:$true] %s97
      %100 = dma.hbm_to_vmem [thread:$0]  %s7, 16, %s98, [#allocation9]
    $region33: #{tpu_custom_call.1} parent=1 // pred_fallthru
      _
    // Predicated region
    $region34: #{tpu_custom_call.1} parent=1 // pred_check
      _
    $region35: #{tpu_custom_call.1} parent=1 // pred_check_branch
      %102 = sbr.rel (0) target = $region37
    $region36: #{tpu_custom_call.1} parent=1 // pred_region
      %s104 = ssub.s32 512, 512
      %105 = vsyncadd [#allocation12], %s104
      %s106 = sshll.u32 [#allocation11], 4
      %s107 = int_to_ptr.vmem [resolvable:$true] %s106
      %112 = dma.hbm_to_vmem [thread:$0]  %s8, 512, %s107, [#allocation12], 128, 128, 8
    $region37: #{tpu_custom_call.1} parent=1 // pred_fallthru
      _
    // Predicated region
    $region38: #{tpu_custom_call.1} parent=1 // pred_check
      _
    $region39: #{tpu_custom_call.1} parent=1 // pred_check_branch
      %114 = sbr.rel (0) target = $region41
    $region40: #{tpu_custom_call.1} parent=1 // pred_region
      %s116 = ssub.s32 32, 32
      %117 = vsyncadd [#allocation12], %s116
      %s119 = sshll.u32 [#allocation13], 4
      %s120 = int_to_ptr.vmem [resolvable:$true] %s119
      %122 = dma.hbm_to_vmem [thread:$0]  %s9, 32, %s120, [#allocation12]
    $region41: #{tpu_custom_call.1} parent=1 // pred_fallthru
      _
    // Predicated region
    $region42: #{tpu_custom_call.1} parent=1 // pred_check
      _
    $region43: #{tpu_custom_call.1} parent=1 // pred_check_branch
      %124 = sbr.rel (0) target = $region45
    $region44: #{tpu_custom_call.1} parent=1 // pred_region
      %s126 = ssub.s32 1024, 1024
      %127 = vsyncadd [#allocation15], %s126
      %s128 = sshll.u32 [#allocation14], 4
      %s129 = int_to_ptr.vmem [resolvable:$true] %s128
      %134 = dma.hbm_to_vmem [thread:$0]  %s10, 1024, %s129, [#allocation15], 64, 64, 4
    $region45: #{tpu_custom_call.1} parent=1 // pred_fallthru
      _
    // Predicated region
    $region46: #{tpu_custom_call.1} parent=1 // pred_check
      _
    $region47: #{tpu_custom_call.1} parent=1 // pred_check_branch
      %136 = sbr.rel (0) target = $region49
    $region48: #{tpu_custom_call.1} parent=1 // pred_region
      %s138 = ssub.s32 16, 16
      %139 = vsyncadd [#allocation15], %s138
      %s141 = sshll.u32 [#allocation16], 4
      %s142 = int_to_ptr.vmem [resolvable:$true] %s141
      %144 = dma.hbm_to_vmem [thread:$0]  %s11, 16, %s142, [#allocation15]
    $region49: #{tpu_custom_call.1} parent=1 // pred_fallthru
      _
    // Predicated region
    $region50: #{tpu_custom_call.1} parent=1 // pred_check
      _
    $region51: #{tpu_custom_call.1} parent=1 // pred_check_branch
      %146 = sbr.rel (0) target = $region53
    $region52: #{tpu_custom_call.1} parent=1 // pred_region
      _
    $region53: #{tpu_custom_call.1} parent=1 // pred_fallthru
      _
    // Predicated region
    $region54: #{tpu_custom_call.1} parent=1 // pred_check
      _
    $region55: #{tpu_custom_call.1} parent=1 // pred_check_branch
      %148 = sbr.rel (0) target = $region57
    $region56: #{tpu_custom_call.1} parent=1 // pred_region
      %s150 = ssub.s32 32, 32
      %151 = vsyncadd [#allocation18], %s150
      %s153 = sshll.u32 [#allocation17], 4
      %s154 = int_to_ptr.vmem [resolvable:$true] %s153
      %156 = dma.hbm_to_vmem [thread:$0]  %s13, 32, %s154, [#allocation18]
    $region57: #{tpu_custom_call.1} parent=1 // pred_fallthru
      _
    // Predicated region
    $region58: #{tpu_custom_call.1} parent=1 // pred_check
      _
    $region59: #{tpu_custom_call.1} parent=1 // pred_check_branch
      %158 = sbr.rel (0) target = $region61
    $region60: #{tpu_custom_call.1} parent=1 // pred_region
      _
    $region61: #{tpu_custom_call.1} parent=1 // pred_fallthru
      _
    // Predicated region
    $region62: #{tpu_custom_call.1} parent=1 // pred_check
      _
    $region63: #{tpu_custom_call.1} parent=1 // pred_check_branch
      %160 = sbr.rel (0) target = $region65
    $region64: #{tpu_custom_call.1} parent=1 // pred_region
      %s162 = ssub.s32 16, 16
      %163 = vsyncadd [#allocation18], %s162
      %s165 = sshll.u32 [#allocation19], 4
      %s166 = int_to_ptr.vmem [resolvable:$true] %s165
      %168 = dma.hbm_to_vmem [thread:$0]  %s15, 16, %s166, [#allocation18]
    $region65: #{tpu_custom_call.1} parent=1 // pred_fallthru
      _
    // Predicated region
    $region66: #{tpu_custom_call.1} parent=1 // pred_check
      _
    $region67: #{tpu_custom_call.1} parent=1 // pred_check_branch
      %170 = sbr.rel (0) target = $region69
    $region68: #{tpu_custom_call.1} parent=1 // pred_region
      %s172 = ssub.s32 256, 256
      %173 = vsyncadd [#allocation21], %s172
      %s174 = sshll.u32 [#allocation20], 4
      %s175 = int_to_ptr.vmem [resolvable:$true] %s174
      %180 = dma.hbm_to_vmem [thread:$0]  %s16, 256, %s175, [#allocation21], 64, 64, 4
    $region69: #{tpu_custom_call.1} parent=1 // pred_fallthru
      _
    // Predicated region
    $region70: #{tpu_custom_call.1} parent=1 // pred_check
      _
    $region71: #{tpu_custom_call.1} parent=1 // pred_check_branch
      %182 = sbr.rel (0) target = $region73
    $region72: #{tpu_custom_call.1} parent=1 // pred_region
      _
    $region73: #{tpu_custom_call.1} parent=1 // pred_fallthru
      _
    // Predicated region
    $region74: #{tpu_custom_call.1} parent=1 // pred_check
      _
    $region75: #{tpu_custom_call.1} parent=1 // pred_check_branch
      %184 = sbr.rel (0) target = $region77
    $region76: #{tpu_custom_call.1} parent=1 // pred_region
      %s186 = ssub.s32 1024, 1024
      %187 = vsyncadd [#allocation21], %s186
      %s188 = sshll.u32 [#allocation22], 4
      %s189 = int_to_ptr.vmem [resolvable:$true] %s188
      %194 = dma.hbm_to_vmem [thread:$0]  %s18, 1024, %s189, [#allocation21], 64, 64, 4
    $region77: #{tpu_custom_call.1} parent=1 // pred_fallthru
      _
    // Predicated region
    $region78: #{tpu_custom_call.1} parent=1 // pred_check
      _
    $region79: #{tpu_custom_call.1} parent=1 // pred_check_branch
      %196 = sbr.rel (0) target = $region81
    $region80: #{tpu_custom_call.1} parent=1 // pred_region
      _
    $region81: #{tpu_custom_call.1} parent=1 // pred_fallthru
      _
    // Predicated region
    $region82: #{tpu_custom_call.1} parent=1 // pred_check
      _
    $region83: #{tpu_custom_call.1} parent=1 // pred_check_branch
      %198 = sbr.rel (0) target = $region85
    $region84: #{tpu_custom_call.1} parent=1 // pred_region
      %s200 = ssub.s32 1024, 1024
      %201 = vsyncadd [#allocation24], %s200
      %s202 = sshll.u32 [#allocation23], 4
      %s203 = int_to_ptr.vmem [resolvable:$true] %s202
      %208 = dma.hbm_to_vmem [thread:$0]  %s20, 1024, %s203, [#allocation24], 64, 64, 4
    $region85: #{tpu_custom_call.1} parent=1 // pred_fallthru
      _
    // Predicated region
    $region86: #{tpu_custom_call.1} parent=1 // pred_check
      _
    $region87: #{tpu_custom_call.1} parent=1 // pred_check_branch
      %210 = sbr.rel (0) target = $region89
    $region88: #{tpu_custom_call.1} parent=1 // pred_region
      _
    $region89: #{tpu_custom_call.1} parent=1 // pred_fallthru
      _
    // Predicated region
    $region90: #{tpu_custom_call.1} parent=1 // pred_check
      _
    $region91: #{tpu_custom_call.1} parent=1 // pred_check_branch
      %212 = sbr.rel (0) target = $region93
    $region92: #{tpu_custom_call.1} parent=1 // pred_region
      %s214 = ssub.s32 8192, 8192
      %215 = vsyncadd [#allocation24], %s214
      %s216 = sshll.u32 [#allocation25], 4
      %s217 = int_to_ptr.vmem [resolvable:$true] %s216
      %222 = dma.hbm_to_vmem [thread:$0]  %s22, 8192, %s217, [#allocation24], 512, 512, 32
    $region93: #{tpu_custom_call.1} parent=1 // pred_fallthru
      _
    // Predicated region
    $region94: #{tpu_custom_call.1} parent=1 // pred_check
      _
    $region95: #{tpu_custom_call.1} parent=1 // pred_check_branch
      %224 = sbr.rel (0) target = $region97
    $region96: #{tpu_custom_call.1} parent=1 // pred_region
      _
    $region97: #{tpu_custom_call.1} parent=1 // pred_fallthru
      _
    // Predicated region
    $region98: #{tpu_custom_call.1} parent=1 // pred_check
      _
    $region99: #{tpu_custom_call.1} parent=1 // pred_check_branch
      %226 = sbr.rel (0) target = $region101
    $region100: #{tpu_custom_call.1} parent=1 // pred_region
      %227 = dma.done [#allocation3], 256
    $region101: #{tpu_custom_call.1} parent=1 // pred_fallthru
      _
    // Predicated region
    $region102: #{tpu_custom_call.1} parent=1 // pred_check
      _
    $region103: #{tpu_custom_call.1} parent=1 // pred_check_branch
      %229 = sbr.rel (0) target = $region105
    $region104: #{tpu_custom_call.1} parent=1 // pred_region
      %230 = dma.done [#allocation6], 16384
    $region105: #{tpu_custom_call.1} parent=1 // pred_fallthru
      _
    // Predicated region
    $region106: #{tpu_custom_call.1} parent=1 // pred_check
      _
    $region107: #{tpu_custom_call.1} parent=1 // pred_check_branch
      %232 = sbr.rel (0) target = $region109
    $region108: #{tpu_custom_call.1} parent=1 // pred_region
      %233 = dma.done [#allocation6], 32
    $region109: #{tpu_custom_call.1} parent=1 // pred_fallthru
      _
    // Predicated region
    $region110: #{tpu_custom_call.1} parent=1 // pred_check
      _
    $region111: #{tpu_custom_call.1} parent=1 // pred_check_branch
      %235 = sbr.rel (0) target = $region113
    $region112: #{tpu_custom_call.1} parent=1 // pred_region
      %236 = dma.done [#allocation9], 16
    $region113: #{tpu_custom_call.1} parent=1 // pred_fallthru
      _
    // Predicated region
    $region114: #{tpu_custom_call.1} parent=1 // pred_check
      _
    $region115: #{tpu_custom_call.1} parent=1 // pred_check_branch
      %238 = sbr.rel (0) target = $region117
    $region116: #{tpu_custom_call.1} parent=1 // pred_region
      %239 = dma.done [#allocation9], 16
    $region117: #{tpu_custom_call.1} parent=1 // pred_fallthru
      _
    // Predicated region
    $region118: #{tpu_custom_call.1} parent=1 // pred_check
      _
    $region119: #{tpu_custom_call.1} parent=1 // pred_check_branch
      %241 = sbr.rel (0) target = $region121
    $region120: #{tpu_custom_call.1} parent=1 // pred_region
      %242 = dma.done [#allocation12], 512
    $region121: #{tpu_custom_call.1} parent=1 // pred_fallthru
      _
    // Predicated region
    $region122: #{tpu_custom_call.1} parent=1 // pred_check
      _
    $region123: #{tpu_custom_call.1} parent=1 // pred_check_branch
      %244 = sbr.rel (0) target = $region125
    $region124: #{tpu_custom_call.1} parent=1 // pred_region
      %245 = dma.done [#allocation12], 32
    $region125: #{tpu_custom_call.1} parent=1 // pred_fallthru
      _
    // Predicated region
    $region126: #{tpu_custom_call.1} parent=1 // pred_check
      _
    $region127: #{tpu_custom_call.1} parent=1 // pred_check_branch
      %247 = sbr.rel (0) target = $region129
    $region128: #{tpu_custom_call.1} parent=1 // pred_region
      %248 = dma.done [#allocation15], 1024
    $region129: #{tpu_custom_call.1} parent=1 // pred_fallthru
      _
    // Predicated region
    $region130: #{tpu_custom_call.1} parent=1 // pred_check
      _
    $region131: #{tpu_custom_call.1} parent=1 // pred_check_branch
      %250 = sbr.rel (0) target = $region133
    $region132: #{tpu_custom_call.1} parent=1 // pred_region
      %251 = dma.done [#allocation15], 16
    $region133: #{tpu_custom_call.1} parent=1 // pred_fallthru
      _
    // Predicated region
    $region134: #{tpu_custom_call.1} parent=1 // pred_check
      _
    $region135: #{tpu_custom_call.1} parent=1 // pred_check_branch
      %253 = sbr.rel (0) target = $region137
    $region136: #{tpu_custom_call.1} parent=1 // pred_region
      %254 = dma.done [#allocation18], 32
    $region137: #{tpu_custom_call.1} parent=1 // pred_fallthru
      _
    // Predicated region
    $region138: #{tpu_custom_call.1} parent=1 // pred_check
      _
    $region139: #{tpu_custom_call.1} parent=1 // pred_check_branch
      %256 = sbr.rel (0) target = $region141
    $region140: #{tpu_custom_call.1} parent=1 // pred_region
      %257 = dma.done [#allocation18], 16
    $region141: #{tpu_custom_call.1} parent=1 // pred_fallthru
      _
    // Predicated region
    $region142: #{tpu_custom_call.1} parent=1 // pred_check
      _
    $region143: #{tpu_custom_call.1} parent=1 // pred_check_branch
      %259 = sbr.rel (0) target = $region145
    $region144: #{tpu_custom_call.1} parent=1 // pred_region
      %260 = dma.done [#allocation21], 256
    $region145: #{tpu_custom_call.1} parent=1 // pred_fallthru
      _
    // Predicated region
    $region146: #{tpu_custom_call.1} parent=1 // pred_check
      _
    $region147: #{tpu_custom_call.1} parent=1 // pred_check_branch
      %262 = sbr.rel (0) target = $region149
    $region148: #{tpu_custom_call.1} parent=1 // pred_region
      %263 = dma.done [#allocation21], 1024
    $region149: #{tpu_custom_call.1} parent=1 // pred_fallthru
      _
    // Predicated region
    $region150: #{tpu_custom_call.1} parent=1 // pred_check
      _
    $region151: #{tpu_custom_call.1} parent=1 // pred_check_branch
      %265 = sbr.rel (0) target = $region153
    $region152: #{tpu_custom_call.1} parent=1 // pred_region
      %266 = dma.done [#allocation24], 1024
    $region153: #{tpu_custom_call.1} parent=1 // pred_fallthru
      _
    // Predicated region
    $region154: #{tpu_custom_call.1} parent=1 // pred_check
      _
    $region155: #{tpu_custom_call.1} parent=1 // pred_check_branch
      %268 = sbr.rel (0) target = $region157
    $region156: #{tpu_custom_call.1} parent=1 // pred_region
      %269 = dma.done [#allocation24], 8192
    $region157: #{tpu_custom_call.1} parent=1 // pred_fallthru
      _
    %v271 = vld [vmem:[%s0] sm:$0xff]
    %v272 = vld [vmem:[%s0 + $0x8] sm:$0xff]
    %v273 = vld [vmem:[%s0 + $0x10] sm:$0xff]
    %v274 = vld [vmem:[%s0 + $0x18] sm:$0xff]
    %v275 = vld [vmem:[%s0 + $0x20] sm:$0xff]
    %v276 = vld [vmem:[%s0 + $0x28] sm:$0xff]
    %v277 = vld [vmem:[%s0 + $0x30] sm:$0xff]
    %v278 = vld [vmem:[%s0 + $0x38] sm:$0xff]
    %v279 = vld [vmem:[#allocation2] sm:$0xff]
    %v280 = vld [vmem:[#allocation2 + $0x8] sm:$0xff]
    %v281 = vld [vmem:[#allocation5] sm:$0xff]
    %v282 = vld [vmem:[#allocation5 + $0x8] sm:$0xff]
    %v283 = vld [vmem:[#allocation5 + $0x10] sm:$0xff]
    %v284 = vld [vmem:[#allocation5 + $0x18] sm:$0xff]
    %v285 = vld [vmem:[#allocation5 + $0x20] sm:$0xff]
    %v286 = vld [vmem:[#allocation5 + $0x28] sm:$0xff]
    %v287 = vld [vmem:[#allocation5 + $0x30] sm:$0xff]
    %v288 = vld [vmem:[#allocation5 + $0x38] sm:$0xff]
    %v289 = vld [vmem:[#allocation5 + $0x40] sm:$0xff]
    %v290 = vld [vmem:[#allocation5 + $0x48] sm:$0xff]
    %v291 = vld [vmem:[#allocation5 + $0x50] sm:$0xff]
    %v292 = vld [vmem:[#allocation5 + $0x58] sm:$0xff]
    %v293 = vld [vmem:[#allocation5 + $0x60] sm:$0xff]
    %v294 = vld [vmem:[#allocation5 + $0x68] sm:$0xff]
    %v295 = vld [vmem:[#allocation5 + $0x70] sm:$0xff]
    %v296 = vld [vmem:[#allocation5 + $0x78] sm:$0xff]
    %v297 = vld [vmem:[#allocation5 + $0x80] sm:$0xff]
    %v298 = vld [vmem:[#allocation5 + $0x88] sm:$0xff]
    %v299 = vld [vmem:[#allocation5 + $0x90] sm:$0xff]
    %v300 = vld [vmem:[#allocation5 + $0x98] sm:$0xff]
    %v301 = vld [vmem:[#allocation5 + $0xa0] sm:$0xff]
    %v302 = vld [vmem:[#allocation5 + $0xa8] sm:$0xff]
    %v303 = vld [vmem:[#allocation5 + $0xb0] sm:$0xff]
    %v304 = vld [vmem:[#allocation5 + $0xb8] sm:$0xff]
    %v305 = vld [vmem:[#allocation5 + $0xc0] sm:$0xff]
    %v306 = vld [vmem:[#allocation5 + $0xc8] sm:$0xff]
    %v307 = vld [vmem:[#allocation5 + $0xd0] sm:$0xff]
    %v308 = vld [vmem:[#allocation5 + $0xd8] sm:$0xff]
    %v309 = vld [vmem:[#allocation5 + $0xe0] sm:$0xff]
    %v310 = vld [vmem:[#allocation5 + $0xe8] sm:$0xff]
    %v311 = vld [vmem:[#allocation5 + $0xf0] sm:$0xff]
    %v312 = vld [vmem:[#allocation5 + $0xf8] sm:$0xff]
    %v313 = vld [vmem:[#allocation5 + $0x100] sm:$0xff]
    %v314 = vld [vmem:[#allocation5 + $0x108] sm:$0xff]
    %v315 = vld [vmem:[#allocation5 + $0x110] sm:$0xff]
    %v316 = vld [vmem:[#allocation5 + $0x118] sm:$0xff]
    %v317 = vld [vmem:[#allocation5 + $0x120] sm:$0xff]
    %v318 = vld [vmem:[#allocation5 + $0x128] sm:$0xff]
    %v319 = vld [vmem:[#allocation5 + $0x130] sm:$0xff]
    %v320 = vld [vmem:[#allocation5 + $0x138] sm:$0xff]
    %v321 = vld [vmem:[#allocation5 + $0x140] sm:$0xff]
    %v322 = vld [vmem:[#allocation5 + $0x148] sm:$0xff]
    %v323 = vld [vmem:[#allocation5 + $0x150] sm:$0xff]
    %v324 = vld [vmem:[#allocation5 + $0x158] sm:$0xff]
    %v325 = vld [vmem:[#allocation5 + $0x160] sm:$0xff]
    %v326 = vld [vmem:[#allocation5 + $0x168] sm:$0xff]
    %v327 = vld [vmem:[#allocation5 + $0x170] sm:$0xff]
    %v328 = vld [vmem:[#allocation5 + $0x178] sm:$0xff]
    %v329 = vld [vmem:[#allocation5 + $0x180] sm:$0xff]
    %v330 = vld [vmem:[#allocation5 + $0x188] sm:$0xff]
    %v331 = vld [vmem:[#allocation5 + $0x190] sm:$0xff]
    %v332 = vld [vmem:[#allocation5 + $0x198] sm:$0xff]
    %v333 = vld [vmem:[#allocation5 + $0x1a0] sm:$0xff]
    %v334 = vld [vmem:[#allocation5 + $0x1a8] sm:$0xff]
    %v335 = vld [vmem:[#allocation5 + $0x1b0] sm:$0xff]
    %v336 = vld [vmem:[#allocation5 + $0x1b8] sm:$0xff]
    %v337 = vld [vmem:[#allocation5 + $0x1c0] sm:$0xff]
    %v338 = vld [vmem:[#allocation5 + $0x1c8] sm:$0xff]
    %v339 = vld [vmem:[#allocation5 + $0x1d0] sm:$0xff]
    %v340 = vld [vmem:[#allocation5 + $0x1d8] sm:$0xff]
    %v341 = vld [vmem:[#allocation5 + $0x1e0] sm:$0xff]
    %v342 = vld [vmem:[#allocation5 + $0x1e8] sm:$0xff]
    %v343 = vld [vmem:[#allocation5 + $0x1f0] sm:$0xff]
    %v344 = vld [vmem:[#allocation5 + $0x1f8] sm:$0xff]
    %v345 = vld [vmem:[#allocation5 + $0x200] sm:$0xff]
    %v346 = vld [vmem:[#allocation5 + $0x208] sm:$0xff]
    %v347 = vld [vmem:[#allocation5 + $0x210] sm:$0xff]
    %v348 = vld [vmem:[#allocation5 + $0x218] sm:$0xff]
    %v349 = vld [vmem:[#allocation5 + $0x220] sm:$0xff]
    %v350 = vld [vmem:[#allocation5 + $0x228] sm:$0xff]
    %v351 = vld [vmem:[#allocation5 + $0x230] sm:$0xff]
    %v352 = vld [vmem:[#allocation5 + $0x238] sm:$0xff]
    %v353 = vld [vmem:[#allocation5 + $0x240] sm:$0xff]
    %v354 = vld [vmem:[#allocation5 + $0x248] sm:$0xff]
    %v355 = vld [vmem:[#allocation5 + $0x250] sm:$0xff]
    %v356 = vld [vmem:[#allocation5 + $0x258] sm:$0xff]
    %v357 = vld [vmem:[#allocation5 + $0x260] sm:$0xff]
    %v358 = vld [vmem:[#allocation5 + $0x268] sm:$0xff]
    %v359 = vld [vmem:[#allocation5 + $0x270] sm:$0xff]
    %v360 = vld [vmem:[#allocation5 + $0x278] sm:$0xff]
    %v361 = vld [vmem:[#allocation5 + $0x280] sm:$0xff]
    %v362 = vld [vmem:[#allocation5 + $0x288] sm:$0xff]
    %v363 = vld [vmem:[#allocation5 + $0x290] sm:$0xff]
    %v364 = vld [vmem:[#allocation5 + $0x298] sm:$0xff]
    %v365 = vld [vmem:[#allocation5 + $0x2a0] sm:$0xff]
    %v366 = vld [vmem:[#allocation5 + $0x2a8] sm:$0xff]
    %v367 = vld [vmem:[#allocation5 + $0x2b0] sm:$0xff]
    %v368 = vld [vmem:[#allocation5 + $0x2b8] sm:$0xff]
    %v369 = vld [vmem:[#allocation5 + $0x2c0] sm:$0xff]
    %v370 = vld [vmem:[#allocation5 + $0x2c8] sm:$0xff]
    %v371 = vld [vmem:[#allocation5 + $0x2d0] sm:$0xff]
    %v372 = vld [vmem:[#allocation5 + $0x2d8] sm:$0xff]
    %v373 = vld [vmem:[#allocation5 + $0x2e0] sm:$0xff]
    %v374 = vld [vmem:[#allocation5 + $0x2e8] sm:$0xff]
    %v375 = vld [vmem:[#allocation5 + $0x2f0] sm:$0xff]
    %v376 = vld [vmem:[#allocation5 + $0x2f8] sm:$0xff]
    %v377 = vld [vmem:[#allocation5 + $0x300] sm:$0xff]
    %v378 = vld [vmem:[#allocation5 + $0x308] sm:$0xff]
    %v379 = vld [vmem:[#allocation5 + $0x310] sm:$0xff]
    %v380 = vld [vmem:[#allocation5 + $0x318] sm:$0xff]
    %v381 = vld [vmem:[#allocation5 + $0x320] sm:$0xff]
    %v382 = vld [vmem:[#allocation5 + $0x328] sm:$0xff]
    %v383 = vld [vmem:[#allocation5 + $0x330] sm:$0xff]
    %v384 = vld [vmem:[#allocation5 + $0x338] sm:$0xff]
    %v385 = vld [vmem:[#allocation5 + $0x340] sm:$0xff]
    %v386 = vld [vmem:[#allocation5 + $0x348] sm:$0xff]
    %v387 = vld [vmem:[#allocation5 + $0x350] sm:$0xff]
    %v388 = vld [vmem:[#allocation5 + $0x358] sm:$0xff]
    %v389 = vld [vmem:[#allocation5 + $0x360] sm:$0xff]
    %v390 = vld [vmem:[#allocation5 + $0x368] sm:$0xff]
    %v391 = vld [vmem:[#allocation5 + $0x370] sm:$0xff]
    %v392 = vld [vmem:[#allocation5 + $0x378] sm:$0xff]
    %v393 = vld [vmem:[#allocation5 + $0x380] sm:$0xff]
    %v394 = vld [vmem:[#allocation5 + $0x388] sm:$0xff]
    %v395 = vld [vmem:[#allocation5 + $0x390] sm:$0xff]
    %v396 = vld [vmem:[#allocation5 + $0x398] sm:$0xff]
    %v397 = vld [vmem:[#allocation5 + $0x3a0] sm:$0xff]
    %v398 = vld [vmem:[#allocation5 + $0x3a8] sm:$0xff]
    %v399 = vld [vmem:[#allocation5 + $0x3b0] sm:$0xff]
    %v400 = vld [vmem:[#allocation5 + $0x3b8] sm:$0xff]
    %v401 = vld [vmem:[#allocation5 + $0x3c0] sm:$0xff]
    %v402 = vld [vmem:[#allocation5 + $0x3c8] sm:$0xff]
    %v403 = vld [vmem:[#allocation5 + $0x3d0] sm:$0xff]
    %v404 = vld [vmem:[#allocation5 + $0x3d8] sm:$0xff]
    %v405 = vld [vmem:[#allocation5 + $0x3e0] sm:$0xff]
    %v406 = vld [vmem:[#allocation5 + $0x3e8] sm:$0xff]
    %v407 = vld [vmem:[#allocation5 + $0x3f0] sm:$0xff]
    %v408 = vld [vmem:[#allocation5 + $0x3f8] sm:$0xff]
    %v409 = vld [vmem:[#allocation7] sm:$0x3]
    %v411 = vlaneseq
    %v412 = vshrl.u32 %v411, 7
    %v413 = vsub.s32 0, %v412
    %v414 = vrot.slane %v409, %v413
    %v415 = vlaneseq
    %v416 = vshrl.u32 %v415, 7
    %v417 = vsub.s32 1, %v416
    %v418 = vrot.slane %v409, %v417
    %v429 = vunpack.c.l.b16 %v271
    %v430 = vunpack.c.h.b16 %v271
    %v431 = vunpack.c.l.b16 %v272
    %v432 = vunpack.c.h.b16 %v272
    %v433 = vunpack.c.l.b16 %v273
    %v434 = vunpack.c.h.b16 %v273
    %v435 = vunpack.c.l.b16 %v274
    %v436 = vunpack.c.h.b16 %v274
    %v437 = vunpack.c.l.b16 %v275
    %v438 = vunpack.c.h.b16 %v275
    %v439 = vunpack.c.l.b16 %v276
    %v440 = vunpack.c.h.b16 %v276
    %v441 = vunpack.c.l.b16 %v277
    %v442 = vunpack.c.h.b16 %v277
    %v443 = vunpack.c.l.b16 %v278
    %v444 = vunpack.c.h.b16 %v278
    %v445 = vpack.c.b16 %v437, %v429
    %v446 = vpack.c.b16 %v438, %v430
    %v447 = vpack.c.b16 %v439, %v431
    %v448 = vpack.c.b16 %v440, %v432
    %v449 = vpack.c.b16 %v441, %v433
    %v450 = vpack.c.b16 %v442, %v434
    %v451 = vpack.c.b16 %v443, %v435
    %v452 = vpack.c.b16 %v444, %v436
    %v589 = vunpack.c.l.b16 %v281
    %v590 = vunpack.c.h.b16 %v281
    %v591 = vunpack.c.l.b16 %v282
    %v592 = vunpack.c.h.b16 %v282
    %v593 = vunpack.c.l.b16 %v283
    %v594 = vunpack.c.h.b16 %v283
    %v595 = vunpack.c.l.b16 %v284
    %v596 = vunpack.c.h.b16 %v284
    %v597 = vunpack.c.l.b16 %v285
    %v598 = vunpack.c.h.b16 %v285
    %v599 = vunpack.c.l.b16 %v286
    %v600 = vunpack.c.h.b16 %v286
    %v601 = vunpack.c.l.b16 %v287
    %v602 = vunpack.c.h.b16 %v287
    %v603 = vunpack.c.l.b16 %v288
    %v604 = vunpack.c.h.b16 %v288
    %v605 = vunpack.c.l.b16 %v289
    %v606 = vunpack.c.h.b16 %v289
    %v607 = vunpack.c.l.b16 %v290
    %v608 = vunpack.c.h.b16 %v290
    %v609 = vunpack.c.l.b16 %v291
    %v610 = vunpack.c.h.b16 %v291
    %v611 = vunpack.c.l.b16 %v292
    %v612 = vunpack.c.h.b16 %v292
    %v613 = vunpack.c.l.b16 %v293
    %v614 = vunpack.c.h.b16 %v293
    %v615 = vunpack.c.l.b16 %v294
    %v616 = vunpack.c.h.b16 %v294
    %v617 = vunpack.c.l.b16 %v295
    %v618 = vunpack.c.h.b16 %v295
    %v619 = vunpack.c.l.b16 %v296
    %v620 = vunpack.c.h.b16 %v296
    %v621 = vunpack.c.l.b16 %v297
    %v622 = vunpack.c.h.b16 %v297
    %v623 = vunpack.c.l.b16 %v298
    %v624 = vunpack.c.h.b16 %v298
    %v625 = vunpack.c.l.b16 %v299
    %v626 = vunpack.c.h.b16 %v299
    %v627 = vunpack.c.l.b16 %v300
    %v628 = vunpack.c.h.b16 %v300
    %v629 = vunpack.c.l.b16 %v301
    %v630 = vunpack.c.h.b16 %v301
    %v631 = vunpack.c.l.b16 %v302
    %v632 = vunpack.c.h.b16 %v302
    %v633 = vunpack.c.l.b16 %v303
    %v634 = vunpack.c.h.b16 %v303
    %v635 = vunpack.c.l.b16 %v304
    %v636 = vunpack.c.h.b16 %v304
    %v637 = vunpack.c.l.b16 %v305
    %v638 = vunpack.c.h.b16 %v305
    %v639 = vunpack.c.l.b16 %v306
    %v640 = vunpack.c.h.b16 %v306
    %v641 = vunpack.c.l.b16 %v307
    %v642 = vunpack.c.h.b16 %v307
    %v643 = vunpack.c.l.b16 %v308
    %v644 = vunpack.c.h.b16 %v308
    %v645 = vunpack.c.l.b16 %v309
    %v646 = vunpack.c.h.b16 %v309
    %v647 = vunpack.c.l.b16 %v310
    %v648 = vunpack.c.h.b16 %v310
    %v649 = vunpack.c.l.b16 %v311
    %v650 = vunpack.c.h.b16 %v311
    %v651 = vunpack.c.l.b16 %v312
    %v652 = vunpack.c.h.b16 %v312
    %v653 = vunpack.c.l.b16 %v313
    %v654 = vunpack.c.h.b16 %v313
    %v655 = vunpack.c.l.b16 %v314
    %v656 = vunpack.c.h.b16 %v314
    %v657 = vunpack.c.l.b16 %v315
    %v658 = vunpack.c.h.b16 %v315
    %v659 = vunpack.c.l.b16 %v316
    %v660 = vunpack.c.h.b16 %v316
    %v661 = vunpack.c.l.b16 %v317
    %v662 = vunpack.c.h.b16 %v317
    %v663 = vunpack.c.l.b16 %v318
    %v664 = vunpack.c.h.b16 %v318
    %v665 = vunpack.c.l.b16 %v319
    %v666 = vunpack.c.h.b16 %v319
    %v667 = vunpack.c.l.b16 %v320
    %v668 = vunpack.c.h.b16 %v320
    %v669 = vunpack.c.l.b16 %v321
    %v670 = vunpack.c.h.b16 %v321
    %v671 = vunpack.c.l.b16 %v322
    %v672 = vunpack.c.h.b16 %v322
    %v673 = vunpack.c.l.b16 %v323
    %v674 = vunpack.c.h.b16 %v323
    %v675 = vunpack.c.l.b16 %v324
    %v676 = vunpack.c.h.b16 %v324
    %v677 = vunpack.c.l.b16 %v325
    %v678 = vunpack.c.h.b16 %v325
    %v679 = vunpack.c.l.b16 %v326
    %v680 = vunpack.c.h.b16 %v326
    %v681 = vunpack.c.l.b16 %v327
    %v682 = vunpack.c.h.b16 %v327
    %v683 = vunpack.c.l.b16 %v328
    %v684 = vunpack.c.h.b16 %v328
    %v685 = vunpack.c.l.b16 %v329
    %v686 = vunpack.c.h.b16 %v329
    %v687 = vunpack.c.l.b16 %v330
    %v688 = vunpack.c.h.b16 %v330
    %v689 = vunpack.c.l.b16 %v331
    %v690 = vunpack.c.h.b16 %v331
    %v691 = vunpack.c.l.b16 %v332
    %v692 = vunpack.c.h.b16 %v332
    %v693 = vunpack.c.l.b16 %v333
    %v694 = vunpack.c.h.b16 %v333
    %v695 = vunpack.c.l.b16 %v334
    %v696 = vunpack.c.h.b16 %v334
    %v697 = vunpack.c.l.b16 %v335
    %v698 = vunpack.c.h.b16 %v335
    %v699 = vunpack.c.l.b16 %v336
    %v700 = vunpack.c.h.b16 %v336
    %v701 = vunpack.c.l.b16 %v337
    %v702 = vunpack.c.h.b16 %v337
    %v703 = vunpack.c.l.b16 %v338
    %v704 = vunpack.c.h.b16 %v338
    %v705 = vunpack.c.l.b16 %v339
    %v706 = vunpack.c.h.b16 %v339
    %v707 = vunpack.c.l.b16 %v340
    %v708 = vunpack.c.h.b16 %v340
    %v709 = vunpack.c.l.b16 %v341
    %v710 = vunpack.c.h.b16 %v341
    %v711 = vunpack.c.l.b16 %v342
    %v712 = vunpack.c.h.b16 %v342
    %v713 = vunpack.c.l.b16 %v343
    %v714 = vunpack.c.h.b16 %v343
    %v715 = vunpack.c.l.b16 %v344
    %v716 = vunpack.c.h.b16 %v344
    %v717 = vunpack.c.l.b16 %v345
    %v718 = vunpack.c.h.b16 %v345
    %v719 = vunpack.c.l.b16 %v346
    %v720 = vunpack.c.h.b16 %v346
    %v721 = vunpack.c.l.b16 %v347
    %v722 = vunpack.c.h.b16 %v347
    %v723 = vunpack.c.l.b16 %v348
    %v724 = vunpack.c.h.b16 %v348
    %v725 = vunpack.c.l.b16 %v349
    %v726 = vunpack.c.h.b16 %v349
    %v727 = vunpack.c.l.b16 %v350
    %v728 = vunpack.c.h.b16 %v350
    %v729 = vunpack.c.l.b16 %v351
    %v730 = vunpack.c.h.b16 %v351
    %v731 = vunpack.c.l.b16 %v352
    %v732 = vunpack.c.h.b16 %v352
    %v733 = vunpack.c.l.b16 %v353
    %v734 = vunpack.c.h.b16 %v353
    %v735 = vunpack.c.l.b16 %v354
    %v736 = vunpack.c.h.b16 %v354
    %v737 = vunpack.c.l.b16 %v355
    %v738 = vunpack.c.h.b16 %v355
    %v739 = vunpack.c.l.b16 %v356
    %v740 = vunpack.c.h.b16 %v356
    %v741 = vunpack.c.l.b16 %v357
    %v742 = vunpack.c.h.b16 %v357
    %v743 = vunpack.c.l.b16 %v358
    %v744 = vunpack.c.h.b16 %v358
    %v745 = vunpack.c.l.b16 %v359
    %v746 = vunpack.c.h.b16 %v359
    %v747 = vunpack.c.l.b16 %v360
    %v748 = vunpack.c.h.b16 %v360
    %v749 = vunpack.c.l.b16 %v361
    %v750 = vunpack.c.h.b16 %v361
    %v751 = vunpack.c.l.b16 %v362
    %v752 = vunpack.c.h.b16 %v362
    %v753 = vunpack.c.l.b16 %v363
    %v754 = vunpack.c.h.b16 %v363
    %v755 = vunpack.c.l.b16 %v364
    %v756 = vunpack.c.h.b16 %v364
    %v757 = vunpack.c.l.b16 %v365
    %v758 = vunpack.c.h.b16 %v365
    %v759 = vunpack.c.l.b16 %v366
    %v760 = vunpack.c.h.b16 %v366
    %v761 = vunpack.c.l.b16 %v367
    %v762 = vunpack.c.h.b16 %v367
    %v763 = vunpack.c.l.b16 %v368
    %v764 = vunpack.c.h.b16 %v368
    %v765 = vunpack.c.l.b16 %v369
    %v766 = vunpack.c.h.b16 %v369
    %v767 = vunpack.c.l.b16 %v370
    %v768 = vunpack.c.h.b16 %v370
    %v769 = vunpack.c.l.b16 %v371
    %v770 = vunpack.c.h.b16 %v371
    %v771 = vunpack.c.l.b16 %v372
    %v772 = vunpack.c.h.b16 %v372
    %v773 = vunpack.c.l.b16 %v373
    %v774 = vunpack.c.h.b16 %v373
    %v775 = vunpack.c.l.b16 %v374
    %v776 = vunpack.c.h.b16 %v374
    %v777 = vunpack.c.l.b16 %v375
    %v778 = vunpack.c.h.b16 %v375
    %v779 = vunpack.c.l.b16 %v376
    %v780 = vunpack.c.h.b16 %v376
    %v781 = vunpack.c.l.b16 %v377
    %v782 = vunpack.c.h.b16 %v377
    %v783 = vunpack.c.l.b16 %v378
    %v784 = vunpack.c.h.b16 %v378
    %v785 = vunpack.c.l.b16 %v379
    %v786 = vunpack.c.h.b16 %v379
    %v787 = vunpack.c.l.b16 %v380
    %v788 = vunpack.c.h.b16 %v380
    %v789 = vunpack.c.l.b16 %v381
    %v790 = vunpack.c.h.b16 %v381
    %v791 = vunpack.c.l.b16 %v382
    %v792 = vunpack.c.h.b16 %v382
    %v793 = vunpack.c.l.b16 %v383
    %v794 = vunpack.c.h.b16 %v383
    %v795 = vunpack.c.l.b16 %v384
    %v796 = vunpack.c.h.b16 %v384
    %v797 = vunpack.c.l.b16 %v385
    %v798 = vunpack.c.h.b16 %v385
    %v799 = vunpack.c.l.b16 %v386
    %v800 = vunpack.c.h.b16 %v386
    %v801 = vunpack.c.l.b16 %v387
    %v802 = vunpack.c.h.b16 %v387
    %v803 = vunpack.c.l.b16 %v388
    %v804 = vunpack.c.h.b16 %v388
    %v805 = vunpack.c.l.b16 %v389
    %v806 = vunpack.c.h.b16 %v389
    %v807 = vunpack.c.l.b16 %v390
    %v808 = vunpack.c.h.b16 %v390
    %v809 = vunpack.c.l.b16 %v391
    %v810 = vunpack.c.h.b16 %v391
    %v811 = vunpack.c.l.b16 %v392
    %v812 = vunpack.c.h.b16 %v392
    %v813 = vunpack.c.l.b16 %v393
    %v814 = vunpack.c.h.b16 %v393
    %v815 = vunpack.c.l.b16 %v394
    %v816 = vunpack.c.h.b16 %v394
    %v817 = vunpack.c.l.b16 %v395
    %v818 = vunpack.c.h.b16 %v395
    %v819 = vunpack.c.l.b16 %v396
    %v820 = vunpack.c.h.b16 %v396
    %v821 = vunpack.c.l.b16 %v397
    %v822 = vunpack.c.h.b16 %v397
    %v823 = vunpack.c.l.b16 %v398
    %v824 = vunpack.c.h.b16 %v398
    %v825 = vunpack.c.l.b16 %v399
    %v826 = vunpack.c.h.b16 %v399
    %v827 = vunpack.c.l.b16 %v400
    %v828 = vunpack.c.h.b16 %v400
    %v829 = vunpack.c.l.b16 %v401
    %v830 = vunpack.c.h.b16 %v401
    %v831 = vunpack.c.l.b16 %v402
    %v832 = vunpack.c.h.b16 %v402
    %v833 = vunpack.c.l.b16 %v403
    %v834 = vunpack.c.h.b16 %v403
    %v835 = vunpack.c.l.b16 %v404
    %v836 = vunpack.c.h.b16 %v404
    %v837 = vunpack.c.l.b16 %v405
    %v838 = vunpack.c.h.b16 %v405
    %v839 = vunpack.c.l.b16 %v406
    %v840 = vunpack.c.h.b16 %v406
    %v841 = vunpack.c.l.b16 %v407
    %v842 = vunpack.c.h.b16 %v407
    %v843 = vunpack.c.l.b16 %v408
    %v844 = vunpack.c.h.b16 %v408
    %v845 = vpack.c.b16 %v591, %v589
    %v846 = vpack.c.b16 %v592, %v590
    %v847 = vpack.c.b16 %v595, %v593
    %v848 = vpack.c.b16 %v596, %v594
    %v849 = vpack.c.b16 %v599, %v597
    %v850 = vpack.c.b16 %v600, %v598
    %v851 = vpack.c.b16 %v603, %v601
    %v852 = vpack.c.b16 %v604, %v602
    %v853 = vpack.c.b16 %v607, %v605
    %v854 = vpack.c.b16 %v608, %v606
    %v855 = vpack.c.b16 %v611, %v609
    %v856 = vpack.c.b16 %v612, %v610
    %v857 = vpack.c.b16 %v615, %v613
    %v858 = vpack.c.b16 %v616, %v614
    %v859 = vpack.c.b16 %v619, %v617
    %v860 = vpack.c.b16 %v620, %v618
    %v861 = vpack.c.b16 %v623, %v621
    %v862 = vpack.c.b16 %v624, %v622
    %v863 = vpack.c.b16 %v627, %v625
    %v864 = vpack.c.b16 %v628, %v626
    %v865 = vpack.c.b16 %v631, %v629
    %v866 = vpack.c.b16 %v632, %v630
    %v867 = vpack.c.b16 %v635, %v633
    %v868 = vpack.c.b16 %v636, %v634
    %v869 = vpack.c.b16 %v639, %v637
    %v870 = vpack.c.b16 %v640, %v638
    %v871 = vpack.c.b16 %v643, %v641
    %v872 = vpack.c.b16 %v644, %v642
    %v873 = vpack.c.b16 %v647, %v645
    %v874 = vpack.c.b16 %v648, %v646
    %v875 = vpack.c.b16 %v651, %v649
    %v876 = vpack.c.b16 %v652, %v650
    %v877 = vpack.c.b16 %v655, %v653
    %v878 = vpack.c.b16 %v656, %v654
    %v879 = vpack.c.b16 %v659, %v657
    %v880 = vpack.c.b16 %v660, %v658
    %v881 = vpack.c.b16 %v663, %v661
    %v882 = vpack.c.b16 %v664, %v662
    %v883 = vpack.c.b16 %v667, %v665
    %v884 = vpack.c.b16 %v668, %v666
    %v885 = vpack.c.b16 %v671, %v669
    %v886 = vpack.c.b16 %v672, %v670
    %v887 = vpack.c.b16 %v675, %v673
    %v888 = vpack.c.b16 %v676, %v674
    %v889 = vpack.c.b16 %v679, %v677
    %v890 = vpack.c.b16 %v680, %v678
    %v891 = vpack.c.b16 %v683, %v681
    %v892 = vpack.c.b16 %v684, %v682
    %v893 = vpack.c.b16 %v687, %v685
    %v894 = vpack.c.b16 %v688, %v686
    %v895 = vpack.c.b16 %v691, %v689
    %v896 = vpack.c.b16 %v692, %v690
    %v897 = vpack.c.b16 %v695, %v693
    %v898 = vpack.c.b16 %v696, %v694
    %v899 = vpack.c.b16 %v699, %v697
    %v900 = vpack.c.b16 %v700, %v698
    %v901 = vpack.c.b16 %v703, %v701
    %v902 = vpack.c.b16 %v704, %v702
    %v903 = vpack.c.b16 %v707, %v705
    %v904 = vpack.c.b16 %v708, %v706
    %v905 = vpack.c.b16 %v711, %v709
    %v906 = vpack.c.b16 %v712, %v710
    %v907 = vpack.c.b16 %v715, %v713
    %v908 = vpack.c.b16 %v716, %v714
    %v909 = vpack.c.b16 %v719, %v717
    %v910 = vpack.c.b16 %v720, %v718
    %v911 = vpack.c.b16 %v723, %v721
    %v912 = vpack.c.b16 %v724, %v722
    %v913 = vpack.c.b16 %v727, %v725
    %v914 = vpack.c.b16 %v728, %v726
    %v915 = vpack.c.b16 %v731, %v729
    %v916 = vpack.c.b16 %v732, %v730
    %v917 = vpack.c.b16 %v735, %v733
    %v918 = vpack.c.b16 %v736, %v734
    %v919 = vpack.c.b16 %v739, %v737
    %v920 = vpack.c.b16 %v740, %v738
    %v921 = vpack.c.b16 %v743, %v741
    %v922 = vpack.c.b16 %v744, %v742
    %v923 = vpack.c.b16 %v747, %v745
    %v924 = vpack.c.b16 %v748, %v746
    %v925 = vpack.c.b16 %v751, %v749
    %v926 = vpack.c.b16 %v752, %v750
    %v927 = vpack.c.b16 %v755, %v753
    %v928 = vpack.c.b16 %v756, %v754
    %v929 = vpack.c.b16 %v759, %v757
    %v930 = vpack.c.b16 %v760, %v758
    %v931 = vpack.c.b16 %v763, %v761
    %v932 = vpack.c.b16 %v764, %v762
    %v933 = vpack.c.b16 %v767, %v765
    %v934 = vpack.c.b16 %v768, %v766
    %v935 = vpack.c.b16 %v771, %v769
    %v936 = vpack.c.b16 %v772, %v770
    %v937 = vpack.c.b16 %v775, %v773
    %v938 = vpack.c.b16 %v776, %v774
    %v939 = vpack.c.b16 %v779, %v777
    %v940 = vpack.c.b16 %v780, %v778
    %v941 = vpack.c.b16 %v783, %v781
    %v942 = vpack.c.b16 %v784, %v782
    %v943 = vpack.c.b16 %v787, %v785
    %v944 = vpack.c.b16 %v788, %v786
    %v945 = vpack.c.b16 %v791, %v789
    %v946 = vpack.c.b16 %v792, %v790
    %v947 = vpack.c.b16 %v795, %v793
    %v948 = vpack.c.b16 %v796, %v794
    %v949 = vpack.c.b16 %v799, %v797
    %v950 = vpack.c.b16 %v800, %v798
    %v951 = vpack.c.b16 %v803, %v801
    %v952 = vpack.c.b16 %v804, %v802
    %v953 = vpack.c.b16 %v807, %v805
    %v954 = vpack.c.b16 %v808, %v806
    %v955 = vpack.c.b16 %v811, %v809
    %v956 = vpack.c.b16 %v812, %v810
    %v957 = vpack.c.b16 %v815, %v813
    %v958 = vpack.c.b16 %v816, %v814
    %v959 = vpack.c.b16 %v819, %v817
    %v960 = vpack.c.b16 %v820, %v818
    %v961 = vpack.c.b16 %v823, %v821
    %v962 = vpack.c.b16 %v824, %v822
    %v963 = vpack.c.b16 %v827, %v825
    %v964 = vpack.c.b16 %v828, %v826
    %v965 = vpack.c.b16 %v831, %v829
    %v966 = vpack.c.b16 %v832, %v830
    %v967 = vpack.c.b16 %v835, %v833
    %v968 = vpack.c.b16 %v836, %v834
    %v969 = vpack.c.b16 %v839, %v837
    %v970 = vpack.c.b16 %v840, %v838
    %v971 = vpack.c.b16 %v843, %v841
    %v972 = vpack.c.b16 %v844, %v842
    %1101 = vmatprep.subr.bf16.mxu0 %v846
    %1102 = vmatpush1.bf16.msra.mxu0 %v845
    %1103 = vmatprep.subr.bf16.mxu0 %v848
    %1104 = vmatpush1.bf16.msra.mxu0 %v847
    %1105 = vmatprep.subr.bf16.mxu0 %v850
    %1106 = vmatpush1.bf16.msra.mxu0 %v849
    %1107 = vmatprep.subr.bf16.mxu0 %v852
    %1108 = vmatpush1.bf16.msra.mxu0 %v851
    %1109 = vmatprep.subr.bf16.mxu0 %v854
    %1110 = vmatpush1.bf16.msra.mxu0 %v853
    %1111 = vmatprep.subr.bf16.mxu0 %v856
    %1112 = vmatpush1.bf16.msra.mxu0 %v855
    %1113 = vmatprep.subr.bf16.mxu0 %v858
    %1114 = vmatpush1.bf16.msra.mxu0 %v857
    %1115 = vmatprep.subr.bf16.mxu0 %v860
    %1116 = vmatpush1.bf16.msra.mxu0 %v859
    %1117 = vmatprep.subr.bf16.mxu0 %v862
    %1118 = vmatpush1.bf16.msra.mxu0 %v861
    %1119 = vmatprep.subr.bf16.mxu0 %v864
    %1120 = vmatpush1.bf16.msra.mxu0 %v863
    %1121 = vmatprep.subr.bf16.mxu0 %v866
    %1122 = vmatpush1.bf16.msra.mxu0 %v865
    %1123 = vmatprep.subr.bf16.mxu0 %v868
    %1124 = vmatpush1.bf16.msra.mxu0 %v867
    %1125 = vmatprep.subr.bf16.mxu0 %v870
    %1126 = vmatpush1.bf16.msra.mxu0 %v869
    %1127 = vmatprep.subr.bf16.mxu0 %v872
    %1128 = vmatpush1.bf16.msra.mxu0 %v871
    %1129 = vmatprep.subr.bf16.mxu0 %v874
    %1130 = vmatpush1.bf16.msra.mxu0 %v873
    %1131 = vmatprep.subr.bf16.mxu0 %v876
    %1132 = vmatpush1.bf16.msra.mxu0 %v875
    %1133 = vmatprep.mubr.bf16.mxu0 %v446
    %1134 = vmatmul.mubr.bf16.gmra.mrb[0].mxu0 %v445
    %v1135 = vpop.f32.mrb[0].mxu0
    %v1136 = vadd.f32 %v414, %v1135
    %v1137 = vpop.f32.mrb[0].mxu0
    %v1138 = vadd.f32 %v418, %v1137
    %v1139 = vpop.f32.mrb[0].mxu0
    %v1140 = vadd.f32 %v414, %v1139
    %v1141 = vpop.f32.mrb[0].mxu0
    %v1142 = vadd.f32 %v418, %v1141
    %1143 = vdwg.mxu0
    %1144 = vmatprep.subr.bf16.mxu0 %v878
    %1145 = vmatpush1.bf16.msra.mxu0 %v877
    %1146 = vmatprep.subr.bf16.mxu0 %v880
    %1147 = vmatpush1.bf16.msra.mxu0 %v879
    %1148 = vmatprep.subr.bf16.mxu0 %v882
    %1149 = vmatpush1.bf16.msra.mxu0 %v881
    %1150 = vmatprep.subr.bf16.mxu0 %v884
    %1151 = vmatpush1.bf16.msra.mxu0 %v883
    %1152 = vmatprep.subr.bf16.mxu0 %v886
    %1153 = vmatpush1.bf16.msra.mxu0 %v885
    %1154 = vmatprep.subr.bf16.mxu0 %v888
    %1155 = vmatpush1.bf16.msra.mxu0 %v887
    %1156 = vmatprep.subr.bf16.mxu0 %v890
    %1157 = vmatpush1.bf16.msra.mxu0 %v889
    %1158 = vmatprep.subr.bf16.mxu0 %v892
    %1159 = vmatpush1.bf16.msra.mxu0 %v891
    %1160 = vmatprep.subr.bf16.mxu0 %v894
    %1161 = vmatpush1.bf16.msra.mxu0 %v893
    %1162 = vmatprep.subr.bf16.mxu0 %v896
    %1163 = vmatpush1.bf16.msra.mxu0 %v895
    %1164 = vmatprep.subr.bf16.mxu0 %v898
    %1165 = vmatpush1.bf16.msra.mxu0 %v897
    %1166 = vmatprep.subr.bf16.mxu0 %v900
    %1167 = vmatpush1.bf16.msra.mxu0 %v899
    %1168 = vmatprep.subr.bf16.mxu0 %v902
    %1169 = vmatpush1.bf16.msra.mxu0 %v901
    %1170 = vmatprep.subr.bf16.mxu0 %v904
    %1171 = vmatpush1.bf16.msra.mxu0 %v903
    %1172 = vmatprep.subr.bf16.mxu0 %v906
    %1173 = vmatpush1.bf16.msra.mxu0 %v905
    %1174 = vmatprep.subr.bf16.mxu0 %v908
    %1175 = vmatpush1.bf16.msra.mxu0 %v907
    %1176 = vmatprep.mubr.bf16.mxu0 %v448
    %1177 = vmatmul.mubr.bf16.gmra.mrb[0].mxu0 %v447
    %v1178 = vpop.f32.mrb[0].mxu0
    %v1179 = vadd.f32 %v1136, %v1178
    %v1180 = vpop.f32.mrb[0].mxu0
    %v1181 = vadd.f32 %v1138, %v1180
    %v1182 = vpop.f32.mrb[0].mxu0
    %v1183 = vadd.f32 %v1140, %v1182
    %v1184 = vpop.f32.mrb[0].mxu0
    %v1185 = vadd.f32 %v1142, %v1184
    %1186 = vdwg.mxu0
    %1187 = vmatprep.subr.bf16.mxu0 %v910
    %1188 = vmatpush1.bf16.msra.mxu0 %v909
    %1189 = vmatprep.subr.bf16.mxu0 %v912
    %1190 = vmatpush1.bf16.msra.mxu0 %v911
    %1191 = vmatprep.subr.bf16.mxu0 %v914
    %1192 = vmatpush1.bf16.msra.mxu0 %v913
    %1193 = vmatprep.subr.bf16.mxu0 %v916
    %1194 = vmatpush1.bf16.msra.mxu0 %v915
    %1195 = vmatprep.subr.bf16.mxu0 %v918
    %1196 = vmatpush1.bf16.msra.mxu0 %v917
    %1197 = vmatprep.subr.bf16.mxu0 %v920
    %1198 = vmatpush1.bf16.msra.mxu0 %v919
    %1199 = vmatprep.subr.bf16.mxu0 %v922
    %1200 = vmatpush1.bf16.msra.mxu0 %v921
    %1201 = vmatprep.subr.bf16.mxu0 %v924
    %1202 = vmatpush1.bf16.msra.mxu0 %v923
    %1203 = vmatprep.subr.bf16.mxu0 %v926
    %1204 = vmatpush1.bf16.msra.mxu0 %v925
    %1205 = vmatprep.subr.bf16.mxu0 %v928
    %1206 = vmatpush1.bf16.msra.mxu0 %v927
    %1207 = vmatprep.subr.bf16.mxu0 %v930
    %1208 = vmatpush1.bf16.msra.mxu0 %v929
    %1209 = vmatprep.subr.bf16.mxu0 %v932
    %1210 = vmatpush1.bf16.msra.mxu0 %v931
    %1211 = vmatprep.subr.bf16.mxu0 %v934
    %1212 = vmatpush1.bf16.msra.mxu0 %v933
    %1213 = vmatprep.subr.bf16.mxu0 %v936
    %1214 = vmatpush1.bf16.msra.mxu0 %v935
    %1215 = vmatprep.subr.bf16.mxu0 %v938
    %1216 = vmatpush1.bf16.msra.mxu0 %v937
    %1217 = vmatprep.subr.bf16.mxu0 %v940
    %1218 = vmatpush1.bf16.msra.mxu0 %v939
    %1219 = vmatprep.mubr.bf16.mxu0 %v450
    %1220 = vmatmul.mubr.bf16.gmra.mrb[0].mxu0 %v449
    %v1221 = vpop.f32.mrb[0].mxu0
    %v1222 = vadd.f32 %v1179, %v1221
    %v1223 = vpop.f32.mrb[0].mxu0
    %v1224 = vadd.f32 %v1181, %v1223
    %v1225 = vpop.f32.mrb[0].mxu0
    %v1226 = vadd.f32 %v1183, %v1225
    %v1227 = vpop.f32.mrb[0].mxu0
    %v1228 = vadd.f32 %v1185, %v1227
    %1229 = vdwg.mxu0
    %1230 = vmatprep.subr.bf16.mxu0 %v942
    %1231 = vmatpush1.bf16.msra.mxu0 %v941
    %1232 = vmatprep.subr.bf16.mxu0 %v944
    %1233 = vmatpush1.bf16.msra.mxu0 %v943
    %1234 = vmatprep.subr.bf16.mxu0 %v946
    %1235 = vmatpush1.bf16.msra.mxu0 %v945
    %1236 = vmatprep.subr.bf16.mxu0 %v948
    %1237 = vmatpush1.bf16.msra.mxu0 %v947
    %1238 = vmatprep.subr.bf16.mxu0 %v950
    %1239 = vmatpush1.bf16.msra.mxu0 %v949
    %1240 = vmatprep.subr.bf16.mxu0 %v952
    %1241 = vmatpush1.bf16.msra.mxu0 %v951
    %1242 = vmatprep.subr.bf16.mxu0 %v954
    %1243 = vmatpush1.bf16.msra.mxu0 %v953
    %1244 = vmatprep.subr.bf16.mxu0 %v956
    %1245 = vmatpush1.bf16.msra.mxu0 %v955
    %1246 = vmatprep.subr.bf16.mxu0 %v958
    %1247 = vmatpush1.bf16.msra.mxu0 %v957
    %1248 = vmatprep.subr.bf16.mxu0 %v960
    %1249 = vmatpush1.bf16.msra.mxu0 %v959
    %1250 = vmatprep.subr.bf16.mxu0 %v962
    %1251 = vmatpush1.bf16.msra.mxu0 %v961
    %1252 = vmatprep.subr.bf16.mxu0 %v964
    %1253 = vmatpush1.bf16.msra.mxu0 %v963
    %1254 = vmatprep.subr.bf16.mxu0 %v966
    %1255 = vmatpush1.bf16.msra.mxu0 %v965
    %1256 = vmatprep.subr.bf16.mxu0 %v968
    %1257 = vmatpush1.bf16.msra.mxu0 %v967
    %1258 = vmatprep.subr.bf16.mxu0 %v970
    %1259 = vmatpush1.bf16.msra.mxu0 %v969
    %1260 = vmatprep.subr.bf16.mxu0 %v972
    %1261 = vmatpush1.bf16.msra.mxu0 %v971
    %1262 = vmatprep.mubr.bf16.mxu0 %v452
    %1263 = vmatmul.mubr.bf16.gmra.mrb[0].mxu0 %v451
    %v1264 = vpop.f32.mrb[0].mxu0
    %v1265 = vadd.f32 %v1222, %v1264
    %v1266 = vpop.f32.mrb[0].mxu0
    %v1267 = vadd.f32 %v1224, %v1266
    %v1268 = vpop.f32.mrb[0].mxu0
    %v1269 = vadd.f32 %v1226, %v1268
    %v1270 = vpop.f32.mrb[0].mxu0
    %v1271 = vadd.f32 %v1228, %v1270
    %1272 = vdwg.mxu0
    %v1273 = vmax.f32 %v1265, 0.0
    %v1274 = vmax.f32 %v1269, 0.0
    %v1275 = vpack.c.bf16 %v1274, %v1273
    %v1276 = vld [vmem:[%s4] sm:$0xf]
    %v1277 = vld [vmem:[%s4 + $0x4] sm:$0xf]
    %v1278 = vld [vmem:[%s4 + $0x8] sm:$0xf]
    %v1279 = vld [vmem:[%s4 + $0xc] sm:$0xf]
    %v1280 = vld [vmem:[%s4 + $0x10] sm:$0xf]
    %v1281 = vld [vmem:[%s4 + $0x14] sm:$0xf]
    %v1282 = vld [vmem:[%s4 + $0x18] sm:$0xf]
    %v1283 = vld [vmem:[%s4 + $0x1c] sm:$0xf]
    %v1284 = vld [vmem:[%s4 + $0x20] sm:$0xf]
    %v1285 = vld [vmem:[%s4 + $0x24] sm:$0xf]
    %v1286 = vld [vmem:[%s4 + $0x28] sm:$0xf]
    %v1287 = vld [vmem:[%s4 + $0x2c] sm:$0xf]
    %v1288 = vld [vmem:[%s4 + $0x30] sm:$0xf]
    %v1289 = vld [vmem:[%s4 + $0x34] sm:$0xf]
    %v1290 = vld [vmem:[%s4 + $0x38] sm:$0xf]
    %v1291 = vld [vmem:[%s4 + $0x3c] sm:$0xf]
    %v1292 = vld [vmem:[#allocation8] sm:$0x1]
    %v1294 = vlaneseq
    %v1295 = vshrl.u32 %v1294, 7
    %v1296 = vsub.s32 0, %v1295
    %v1297 = vrot.slane %v1292, %v1296
    %v1315 = vunpack.c.l.b16 %v1276
    %v1316 = vunpack.c.l.b16 %v1277
    %v1317 = vunpack.c.l.b16 %v1278
    %v1318 = vunpack.c.l.b16 %v1279
    %v1319 = vunpack.c.l.b16 %v1280
    %v1320 = vunpack.c.l.b16 %v1281
    %v1321 = vunpack.c.l.b16 %v1282
    %v1322 = vunpack.c.l.b16 %v1283
    %v1323 = vunpack.c.l.b16 %v1284
    %v1324 = vunpack.c.l.b16 %v1285
    %v1325 = vunpack.c.l.b16 %v1286
    %v1326 = vunpack.c.l.b16 %v1287
    %v1327 = vunpack.c.l.b16 %v1288
    %v1328 = vunpack.c.l.b16 %v1289
    %v1329 = vunpack.c.l.b16 %v1290
    %v1330 = vunpack.c.l.b16 %v1291
    %v1331 = vpack.c.b16 %v1316, %v1315
    %v1332 = vpack.c.b16 %v1318, %v1317
    %v1333 = vpack.c.b16 %v1320, %v1319
    %v1334 = vpack.c.b16 %v1322, %v1321
    %v1335 = vpack.c.b16 %v1324, %v1323
    %v1336 = vpack.c.b16 %v1326, %v1325
    %v1337 = vpack.c.b16 %v1328, %v1327
    %v1338 = vpack.c.b16 %v1330, %v1329
    %1347 = vmatprep.subr.bf16.mxu0 0
    %1348 = vmatpush1.bf16.msra.mxu0 %v1331
    %1349 = vmatprep.subr.bf16.mxu0 0
    %1350 = vmatpush1.bf16.msra.mxu0 %v1332
    %1351 = vmatprep.subr.bf16.mxu0 0
    %1352 = vmatpush1.bf16.msra.mxu0 %v1333
    %1353 = vmatprep.subr.bf16.mxu0 0
    %1354 = vmatpush1.bf16.msra.mxu0 %v1334
    %1355 = vmatprep.subr.bf16.mxu0 0
    %1356 = vmatpush1.bf16.msra.mxu0 %v1335
    %1357 = vmatprep.subr.bf16.mxu0 0
    %1358 = vmatpush1.bf16.msra.mxu0 %v1336
    %1359 = vmatprep.subr.bf16.mxu0 0
    %1360 = vmatpush1.bf16.msra.mxu0 %v1337
    %1361 = vmatprep.subr.bf16.mxu0 0
    %1362 = vmatpush1.bf16.msra.mxu0 %v1338
    %1363 = vmatprep.subr.bf16.mxu0 0
    %1364 = vmatpush1.bf16.msra.mxu0 0
    %1365 = vmatprep.subr.bf16.mxu0 0
    %1366 = vmatpush1.bf16.msra.mxu0 0
    %1367 = vmatprep.subr.bf16.mxu0 0
    %1368 = vmatpush1.bf16.msra.mxu0 0
    %1369 = vmatprep.subr.bf16.mxu0 0
    %1370 = vmatpush1.bf16.msra.mxu0 0
    %1371 = vmatprep.subr.bf16.mxu0 0
    %1372 = vmatpush1.bf16.msra.mxu0 0
    %1373 = vmatprep.subr.bf16.mxu0 0
    %1374 = vmatpush1.bf16.msra.mxu0 0
    %1375 = vmatprep.subr.bf16.mxu0 0
    %1376 = vmatpush1.bf16.msra.mxu0 0
    %1377 = vmatprep.subr.bf16.mxu0 0
    %1378 = vmatpush1.bf16.msra.mxu0 0
    %1379 = vmatprep.mubr.bf16.mxu0 0
    %1380 = vmatmul.mubr.bf16.gmra.mrb[0].mxu0 %v1275
    %v1381 = vpop.f32.mrb[0].mxu0
    %v1382 = vadd.f32 %v1297, %v1381
    %v1383 = vpop.f32.mrb[0].mxu0
    %v1384 = vpop.f32.mrb[0].mxu0
    %v1385 = vadd.f32 %v1297, %v1384
    %v1386 = vpop.f32.mrb[0].mxu0
    %1387 = vdwg.mxu0
    %v1388 = vmax.f32 %v1382, 0.0
    %v1389 = vmax.f32 %v1385, 0.0
    %v1390 = vpack.c.bf16 %v1389, %v1388
    %v1391 = vld [vmem:[%s6] sm:$0xf]
    %v1392 = vld [vmem:[%s6 + $0x4] sm:$0xf]
    %v1393 = vld [vmem:[%s6 + $0x8] sm:$0xf]
    %v1394 = vld [vmem:[%s6 + $0xc] sm:$0xf]
    %v1395 = vld [vmem:[%s6 + $0x10] sm:$0xf]
    %v1396 = vld [vmem:[%s6 + $0x14] sm:$0xf]
    %v1397 = vld [vmem:[%s6 + $0x18] sm:$0xf]
    %v1398 = vld [vmem:[%s6 + $0x1c] sm:$0xf]
    %v1399 = vld [vmem:[%s6 + $0x20] sm:$0xf]
    %v1400 = vld [vmem:[%s6 + $0x24] sm:$0xf]
    %v1401 = vld [vmem:[%s6 + $0x28] sm:$0xf]
    %v1402 = vld [vmem:[%s6 + $0x2c] sm:$0xf]
    %v1403 = vld [vmem:[%s6 + $0x30] sm:$0xf]
    %v1404 = vld [vmem:[%s6 + $0x34] sm:$0xf]
    %v1405 = vld [vmem:[%s6 + $0x38] sm:$0xf]
    %v1406 = vld [vmem:[%s6 + $0x3c] sm:$0xf]
    %v1407 = vld [vmem:[#allocation10] sm:$0x1]
    %v1409 = vlaneseq
    %v1410 = vshrl.u32 %v1409, 7
    %v1411 = vsub.s32 0, %v1410
    %v1412 = vrot.slane %v1407, %v1411
    %v1430 = vunpack.c.l.b16 %v1391
    %v1431 = vunpack.c.l.b16 %v1392
    %v1432 = vunpack.c.l.b16 %v1393
    %v1433 = vunpack.c.l.b16 %v1394
    %v1434 = vunpack.c.l.b16 %v1395
    %v1435 = vunpack.c.l.b16 %v1396
    %v1436 = vunpack.c.l.b16 %v1397
    %v1437 = vunpack.c.l.b16 %v1398
    %v1438 = vunpack.c.l.b16 %v1399
    %v1439 = vunpack.c.l.b16 %v1400
    %v1440 = vunpack.c.l.b16 %v1401
    %v1441 = vunpack.c.l.b16 %v1402
    %v1442 = vunpack.c.l.b16 %v1403
    %v1443 = vunpack.c.l.b16 %v1404
    %v1444 = vunpack.c.l.b16 %v1405
    %v1445 = vunpack.c.l.b16 %v1406
    %v1446 = vpack.c.b16 %v1431, %v1430
    %v1447 = vpack.c.b16 %v1433, %v1432
    %v1448 = vpack.c.b16 %v1435, %v1434
    %v1449 = vpack.c.b16 %v1437, %v1436
    %v1450 = vpack.c.b16 %v1439, %v1438
    %v1451 = vpack.c.b16 %v1441, %v1440
    %v1452 = vpack.c.b16 %v1443, %v1442
    %v1453 = vpack.c.b16 %v1445, %v1444
    %1462 = vmatprep.subr.bf16.mxu0 0
    %1463 = vmatpush1.bf16.msra.mxu0 %v1446
    %1464 = vmatprep.subr.bf16.mxu0 0
    %1465 = vmatpush1.bf16.msra.mxu0 %v1447
    %1466 = vmatprep.subr.bf16.mxu0 0
    %1467 = vmatpush1.bf16.msra.mxu0 %v1448
    %1468 = vmatprep.subr.bf16.mxu0 0
    %1469 = vmatpush1.bf16.msra.mxu0 %v1449
    %1470 = vmatprep.subr.bf16.mxu0 0
    %1471 = vmatpush1.bf16.msra.mxu0 %v1450
    %1472 = vmatprep.subr.bf16.mxu0 0
    %1473 = vmatpush1.bf16.msra.mxu0 %v1451
    %1474 = vmatprep.subr.bf16.mxu0 0
    %1475 = vmatpush1.bf16.msra.mxu0 %v1452
    %1476 = vmatprep.subr.bf16.mxu0 0
    %1477 = vmatpush1.bf16.msra.mxu0 %v1453
    %1478 = vmatprep.subr.bf16.mxu0 0
    %1479 = vmatpush1.bf16.msra.mxu0 0
    %1480 = vmatprep.subr.bf16.mxu0 0
    %1481 = vmatpush1.bf16.msra.mxu0 0
    %1482 = vmatprep.subr.bf16.mxu0 0
    %1483 = vmatpush1.bf16.msra.mxu0 0
    %1484 = vmatprep.subr.bf16.mxu0 0
    %1485 = vmatpush1.bf16.msra.mxu0 0
    %1486 = vmatprep.subr.bf16.mxu0 0
    %1487 = vmatpush1.bf16.msra.mxu0 0
    %1488 = vmatprep.subr.bf16.mxu0 0
    %1489 = vmatpush1.bf16.msra.mxu0 0
    %1490 = vmatprep.subr.bf16.mxu0 0
    %1491 = vmatpush1.bf16.msra.mxu0 0
    %1492 = vmatprep.subr.bf16.mxu0 0
    %1493 = vmatpush1.bf16.msra.mxu0 0
    %1494 = vmatprep.mubr.bf16.mxu0 0
    %1495 = vmatmul.mubr.bf16.gmra.mrb[0].mxu0 %v1390
    %v1496 = vpop.f32.mrb[0].mxu0
    %v1497 = vadd.f32 %v1412, %v1496
    %v1498 = vpop.f32.mrb[0].mxu0
    %v1499 = vpop.f32.mrb[0].mxu0
    %v1500 = vadd.f32 %v1412, %v1499
    %v1501 = vpop.f32.mrb[0].mxu0
    %1502 = vdwg.mxu0
    %v1503 = vadd.f32 %v1497, %v279
    %v1504 = vadd.f32 %v1500, %v280
    %v1505 = vmul.f32 %v1503, 1.010101
    %v1506 = vmul.f32 %v1504, 1.010101
    %vm1507 = vcmask 261120
    %v1508 = vsel %vm1507, %v1505, -inf
    %1509 = vmax.xlane.f32.xlu0 %v1508
    %v1510 = vpop.xlane.xlu0 %1509
    %v1511 = vsel %vm1507, %v1506, -inf
    %1512 = vmax.xlane.f32.xlu0 %v1511
    %v1513 = vpop.xlane.xlu0 %1512
    %v1514 = vsub.f32 %v1505, %v1510
    %v1515 = vsub.f32 %v1506, %v1513
    %v1516 = vmul.f32 %v1514, 1.442695
    %v1517 = vpow.pop %v1516
    %v1518 = vmul.f32 %v1515, 1.442695
    %v1519 = vpow.pop %v1518
    %v1520 = vsel %vm1507, %v1517, 0.0
    %1521 = vadd.xlane.f32.xlu0 %v1520
    %v1522 = vpop.xlane.xlu0 %1521
    %v1523 = vsel %vm1507, %v1519, 0.0
    %1524 = vadd.xlane.f32.xlu0 %v1523
    %v1525 = vpop.xlane.xlu0 %1524
    %v1526 = vrcp.pop %v1522
    %v1527 = vrcp.pop %v1525
    %v1528 = vmul.f32 %v1517, %v1526
    %v1529 = vmul.f32 %v1519, %v1527
    %v1530 = vpack.c.bf16 %v1529, %v1528
    %v1531 = vld [vmem:[#allocation11] sm:$0xff]
    %v1532 = vld [vmem:[#allocation11 + $0x8] sm:$0xff]
    %v1533 = vld [vmem:[#allocation11 + $0x10] sm:$0xff]
    %v1534 = vld [vmem:[#allocation11 + $0x18] sm:$0xff]
    %v1535 = vld [vmem:[#allocation13] sm:$0x3]
    %v1537 = vlaneseq
    %v1538 = vshrl.u32 %v1537, 7
    %v1539 = vsub.s32 0, %v1538
    %v1540 = vrot.slane %v1535, %v1539
    %v1541 = vlaneseq
    %v1542 = vshrl.u32 %v1541, 7
    %v1543 = vsub.s32 1, %v1542
    %v1544 = vrot.slane %v1535, %v1543
    %v1551 = vunpack.c.l.b16 %v1531
    %v1552 = vunpack.c.h.b16 %v1531
    %v1553 = vunpack.c.l.b16 %v1532
    %v1554 = vunpack.c.h.b16 %v1532
    %v1555 = vunpack.c.l.b16 %v1533
    %v1556 = vunpack.c.h.b16 %v1533
    %v1557 = vunpack.c.l.b16 %v1534
    %v1558 = vunpack.c.h.b16 %v1534
    %v1559 = vpack.c.b16 %v1553, %v1551
    %v1560 = vpack.c.b16 %v1554, %v1552
    %v1561 = vpack.c.b16 %v1557, %v1555
    %v1562 = vpack.c.b16 %v1558, %v1556
    %v1568 = vsel %vm1507, %v1530, 0
    %1570 = vmatprep.subr.bf16.mxu0 %v1560
    %1571 = vmatpush1.bf16.msra.mxu0 %v1559
    %1572 = vmatprep.subr.bf16.mxu0 %v1562
    %1573 = vmatpush1.bf16.msra.mxu0 %v1561
    %1574 = vmatprep.subr.bf16.mxu0 0
    %1575 = vmatpush1.bf16.msra.mxu0 0
    %1576 = vmatprep.subr.bf16.mxu0 0
    %1577 = vmatpush1.bf16.msra.mxu0 0
    %1578 = vmatprep.subr.bf16.mxu0 0
    %1579 = vmatpush1.bf16.msra.mxu0 0
    %1580 = vmatprep.subr.bf16.mxu0 0
    %1581 = vmatpush1.bf16.msra.mxu0 0
    %1582 = vmatprep.subr.bf16.mxu0 0
    %1583 = vmatpush1.bf16.msra.mxu0 0
    %1584 = vmatprep.subr.bf16.mxu0 0
    %1585 = vmatpush1.bf16.msra.mxu0 0
    %1586 = vmatprep.subr.bf16.mxu0 0
    %1587 = vmatpush1.bf16.msra.mxu0 0
    %1588 = vmatprep.subr.bf16.mxu0 0
    %1589 = vmatpush1.bf16.msra.mxu0 0
    %1590 = vmatprep.subr.bf16.mxu0 0
    %1591 = vmatpush1.bf16.msra.mxu0 0
    %1592 = vmatprep.subr.bf16.mxu0 0
    %1593 = vmatpush1.bf16.msra.mxu0 0
    %1594 = vmatprep.subr.bf16.mxu0 0
    %1595 = vmatpush1.bf16.msra.mxu0 0
    %1596 = vmatprep.subr.bf16.mxu0 0
    %1597 = vmatpush1.bf16.msra.mxu0 0
    %1598 = vmatprep.subr.bf16.mxu0 0
    %1599 = vmatpush1.bf16.msra.mxu0 0
    %1600 = vmatprep.subr.bf16.mxu0 0
    %1601 = vmatpush1.bf16.msra.mxu0 0
    %1602 = vmatprep.mubr.bf16.mxu0 0
    %1603 = vmatmul.mubr.bf16.gmra.mrb[0].mxu0 %v1568
    %v1604 = vpop.f32.mrb[0].mxu0
    %v1605 = vadd.f32 %v1540, %v1604
    %v1606 = vpop.f32.mrb[0].mxu0
    %v1607 = vadd.f32 %v1544, %v1606
    %v1608 = vpop.f32.mrb[0].mxu0
    %v1609 = vadd.f32 %v1540, %v1608
    %v1610 = vpop.f32.mrb[0].mxu0
    %v1611 = vadd.f32 %v1544, %v1610
    %1612 = vdwg.mxu0
    %v1613 = vadd.f32 %v1267, %v1605
    %v1614 = vadd.f32 %v1271, %v1609
    %v1615 = vmax.f32 %v1613, 0.0
    %v1616 = vmax.f32 %v1614, 0.0
    %v1617 = vpack.c.bf16 %v1616, %v1615
    %v1618 = vld [vmem:[#allocation14] sm:$0xf]
    %v1619 = vld [vmem:[#allocation14 + $0x4] sm:$0xf]
    %v1620 = vld [vmem:[#allocation14 + $0x8] sm:$0xf]
    %v1621 = vld [vmem:[#allocation14 + $0xc] sm:$0xf]
    %v1622 = vld [vmem:[#allocation14 + $0x10] sm:$0xf]
    %v1623 = vld [vmem:[#allocation14 + $0x14] sm:$0xf]
    %v1624 = vld [vmem:[#allocation14 + $0x18] sm:$0xf]
    %v1625 = vld [vmem:[#allocation14 + $0x1c] sm:$0xf]
    %v1626 = vld [vmem:[#allocation14 + $0x20] sm:$0xf]
    %v1627 = vld [vmem:[#allocation14 + $0x24] sm:$0xf]
    %v1628 = vld [vmem:[#allocation14 + $0x28] sm:$0xf]
    %v1629 = vld [vmem:[#allocation14 + $0x2c] sm:$0xf]
    %v1630 = vld [vmem:[#allocation14 + $0x30] sm:$0xf]
    %v1631 = vld [vmem:[#allocation14 + $0x34] sm:$0xf]
    %v1632 = vld [vmem:[#allocation14 + $0x38] sm:$0xf]
    %v1633 = vld [vmem:[#allocation14 + $0x3c] sm:$0xf]
    %v1634 = vld [vmem:[#allocation16] sm:$0x1]
    %v1636 = vlaneseq
    %v1637 = vshrl.u32 %v1636, 7
    %v1638 = vsub.s32 0, %v1637
    %v1639 = vrot.slane %v1634, %v1638
    %v1657 = vunpack.c.l.b16 %v1618
    %v1658 = vunpack.c.l.b16 %v1619
    %v1659 = vunpack.c.l.b16 %v1620
    %v1660 = vunpack.c.l.b16 %v1621
    %v1661 = vunpack.c.l.b16 %v1622
    %v1662 = vunpack.c.l.b16 %v1623
    %v1663 = vunpack.c.l.b16 %v1624
    %v1664 = vunpack.c.l.b16 %v1625
    %v1665 = vunpack.c.l.b16 %v1626
    %v1666 = vunpack.c.l.b16 %v1627
    %v1667 = vunpack.c.l.b16 %v1628
    %v1668 = vunpack.c.l.b16 %v1629
    %v1669 = vunpack.c.l.b16 %v1630
    %v1670 = vunpack.c.l.b16 %v1631
    %v1671 = vunpack.c.l.b16 %v1632
    %v1672 = vunpack.c.l.b16 %v1633
    %v1673 = vpack.c.b16 %v1658, %v1657
    %v1674 = vpack.c.b16 %v1660, %v1659
    %v1675 = vpack.c.b16 %v1662, %v1661
    %v1676 = vpack.c.b16 %v1664, %v1663
    %v1677 = vpack.c.b16 %v1666, %v1665
    %v1678 = vpack.c.b16 %v1668, %v1667
    %v1679 = vpack.c.b16 %v1670, %v1669
    %v1680 = vpack.c.b16 %v1672, %v1671
    %1689 = vmatprep.subr.bf16.mxu0 0
    %1690 = vmatpush1.bf16.msra.mxu0 %v1673
    %1691 = vmatprep.subr.bf16.mxu0 0
    %1692 = vmatpush1.bf16.msra.mxu0 %v1674
    %1693 = vmatprep.subr.bf16.mxu0 0
    %1694 = vmatpush1.bf16.msra.mxu0 %v1675
    %1695 = vmatprep.subr.bf16.mxu0 0
    %1696 = vmatpush1.bf16.msra.mxu0 %v1676
    %1697 = vmatprep.subr.bf16.mxu0 0
    %1698 = vmatpush1.bf16.msra.mxu0 %v1677
    %1699 = vmatprep.subr.bf16.mxu0 0
    %1700 = vmatpush1.bf16.msra.mxu0 %v1678
    %1701 = vmatprep.subr.bf16.mxu0 0
    %1702 = vmatpush1.bf16.msra.mxu0 %v1679
    %1703 = vmatprep.subr.bf16.mxu0 0
    %1704 = vmatpush1.bf16.msra.mxu0 %v1680
    %1705 = vmatprep.subr.bf16.mxu0 0
    %1706 = vmatpush1.bf16.msra.mxu0 0
    %1707 = vmatprep.subr.bf16.mxu0 0
    %1708 = vmatpush1.bf16.msra.mxu0 0
    %1709 = vmatprep.subr.bf16.mxu0 0
    %1710 = vmatpush1.bf16.msra.mxu0 0
    %1711 = vmatprep.subr.bf16.mxu0 0
    %1712 = vmatpush1.bf16.msra.mxu0 0
    %1713 = vmatprep.subr.bf16.mxu0 0
    %1714 = vmatpush1.bf16.msra.mxu0 0
    %1715 = vmatprep.subr.bf16.mxu0 0
    %1716 = vmatpush1.bf16.msra.mxu0 0
    %1717 = vmatprep.subr.bf16.mxu0 0
    %1718 = vmatpush1.bf16.msra.mxu0 0
    %1719 = vmatprep.subr.bf16.mxu0 0
    %1720 = vmatpush1.bf16.msra.mxu0 0
    %1721 = vmatprep.mubr.bf16.mxu0 0
    %1722 = vmatmul.mubr.bf16.gmra.mrb[0].mxu0 %v1617
    %v1723 = vpop.f32.mrb[0].mxu0
    %v1724 = vadd.f32 %v1639, %v1723
    %v1725 = vpop.f32.mrb[0].mxu0
    %v1726 = vpop.f32.mrb[0].mxu0
    %v1727 = vadd.f32 %v1639, %v1726
    %v1728 = vpop.f32.mrb[0].mxu0
    %1729 = vdwg.mxu0
    %v1730 = vmax.f32 %v1724, 0.0
    %v1731 = vmax.f32 %v1727, 0.0
    %v1732 = vpack.c.bf16 %v1731, %v1730
    %v1733 = vld [vmem:[%s12] sm:$0xff]
    %v1734 = vld [vmem:[%s12 + $0x8] sm:$0xff]
    %v1735 = vld [vmem:[%s12 + $0x10] sm:$0xff]
    %v1736 = vld [vmem:[%s12 + $0x18] sm:$0xff]
    %v1737 = vld [vmem:[%s12 + $0x20] sm:$0xff]
    %v1738 = vld [vmem:[%s12 + $0x28] sm:$0xff]
    %v1739 = vld [vmem:[%s12 + $0x30] sm:$0xff]
    %v1740 = vld [vmem:[%s12 + $0x38] sm:$0xff]
    %v1741 = vld [vmem:[%s12 + $0x40] sm:$0xff]
    %v1742 = vld [vmem:[%s12 + $0x48] sm:$0xff]
    %v1743 = vld [vmem:[%s12 + $0x50] sm:$0xff]
    %v1744 = vld [vmem:[%s12 + $0x58] sm:$0xff]
    %v1745 = vld [vmem:[%s12 + $0x60] sm:$0xff]
    %v1746 = vld [vmem:[%s12 + $0x68] sm:$0xff]
    %v1747 = vld [vmem:[%s12 + $0x70] sm:$0xff]
    %v1748 = vld [vmem:[%s12 + $0x78] sm:$0xff]
    %v1749 = vld [vmem:[#allocation17] sm:$0x3]
    %v1751 = vlaneseq
    %v1752 = vshrl.u32 %v1751, 7
    %v1753 = vsub.s32 0, %v1752
    %v1754 = vrot.slane %v1749, %v1753
    %v1755 = vlaneseq
    %v1756 = vshrl.u32 %v1755, 7
    %v1757 = vsub.s32 1, %v1756
    %v1758 = vrot.slane %v1749, %v1757
    %v1777 = vunpack.c.l.b16 %v1733
    %v1778 = vunpack.c.h.b16 %v1733
    %v1779 = vunpack.c.l.b16 %v1734
    %v1780 = vunpack.c.h.b16 %v1734
    %v1781 = vunpack.c.l.b16 %v1735
    %v1782 = vunpack.c.h.b16 %v1735
    %v1783 = vunpack.c.l.b16 %v1736
    %v1784 = vunpack.c.h.b16 %v1736
    %v1785 = vunpack.c.l.b16 %v1737
    %v1786 = vunpack.c.h.b16 %v1737
    %v1787 = vunpack.c.l.b16 %v1738
    %v1788 = vunpack.c.h.b16 %v1738
    %v1789 = vunpack.c.l.b16 %v1739
    %v1790 = vunpack.c.h.b16 %v1739
    %v1791 = vunpack.c.l.b16 %v1740
    %v1792 = vunpack.c.h.b16 %v1740
    %v1793 = vunpack.c.l.b16 %v1741
    %v1794 = vunpack.c.h.b16 %v1741
    %v1795 = vunpack.c.l.b16 %v1742
    %v1796 = vunpack.c.h.b16 %v1742
    %v1797 = vunpack.c.l.b16 %v1743
    %v1798 = vunpack.c.h.b16 %v1743
    %v1799 = vunpack.c.l.b16 %v1744
    %v1800 = vunpack.c.h.b16 %v1744
    %v1801 = vunpack.c.l.b16 %v1745
    %v1802 = vunpack.c.h.b16 %v1745
    %v1803 = vunpack.c.l.b16 %v1746
    %v1804 = vunpack.c.h.b16 %v1746
    %v1805 = vunpack.c.l.b16 %v1747
    %v1806 = vunpack.c.h.b16 %v1747
    %v1807 = vunpack.c.l.b16 %v1748
    %v1808 = vunpack.c.h.b16 %v1748
    %v1809 = vpack.c.b16 %v1779, %v1777
    %v1810 = vpack.c.b16 %v1780, %v1778
    %v1811 = vpack.c.b16 %v1783, %v1781
    %v1812 = vpack.c.b16 %v1784, %v1782
    %v1813 = vpack.c.b16 %v1787, %v1785
    %v1814 = vpack.c.b16 %v1788, %v1786
    %v1815 = vpack.c.b16 %v1791, %v1789
    %v1816 = vpack.c.b16 %v1792, %v1790
    %v1817 = vpack.c.b16 %v1795, %v1793
    %v1818 = vpack.c.b16 %v1796, %v1794
    %v1819 = vpack.c.b16 %v1799, %v1797
    %v1820 = vpack.c.b16 %v1800, %v1798
    %v1821 = vpack.c.b16 %v1803, %v1801
    %v1822 = vpack.c.b16 %v1804, %v1802
    %v1823 = vpack.c.b16 %v1807, %v1805
    %v1824 = vpack.c.b16 %v1808, %v1806
    %1841 = vmatprep.subr.bf16.mxu0 %v1810
    %1842 = vmatpush1.bf16.msra.mxu0 %v1809
    %1843 = vmatprep.subr.bf16.mxu0 %v1812
    %1844 = vmatpush1.bf16.msra.mxu0 %v1811
    %1845 = vmatprep.subr.bf16.mxu0 %v1814
    %1846 = vmatpush1.bf16.msra.mxu0 %v1813
    %1847 = vmatprep.subr.bf16.mxu0 %v1816
    %1848 = vmatpush1.bf16.msra.mxu0 %v1815
    %1849 = vmatprep.subr.bf16.mxu0 %v1818
    %1850 = vmatpush1.bf16.msra.mxu0 %v1817
    %1851 = vmatprep.subr.bf16.mxu0 %v1820
    %1852 = vmatpush1.bf16.msra.mxu0 %v1819
    %1853 = vmatprep.subr.bf16.mxu0 %v1822
    %1854 = vmatpush1.bf16.msra.mxu0 %v1821
    %1855 = vmatprep.subr.bf16.mxu0 %v1824
    %1856 = vmatpush1.bf16.msra.mxu0 %v1823
    %1857 = vmatprep.subr.bf16.mxu0 0
    %1858 = vmatpush1.bf16.msra.mxu0 0
    %1859 = vmatprep.subr.bf16.mxu0 0
    %1860 = vmatpush1.bf16.msra.mxu0 0
    %1861 = vmatprep.subr.bf16.mxu0 0
    %1862 = vmatpush1.bf16.msra.mxu0 0
    %1863 = vmatprep.subr.bf16.mxu0 0
    %1864 = vmatpush1.bf16.msra.mxu0 0
    %1865 = vmatprep.subr.bf16.mxu0 0
    %1866 = vmatpush1.bf16.msra.mxu0 0
    %1867 = vmatprep.subr.bf16.mxu0 0
    %1868 = vmatpush1.bf16.msra.mxu0 0
    %1869 = vmatprep.subr.bf16.mxu0 0
    %1870 = vmatpush1.bf16.msra.mxu0 0
    %1871 = vmatprep.subr.bf16.mxu0 0
    %1872 = vmatpush1.bf16.msra.mxu0 0
    %1873 = vmatprep.mubr.bf16.mxu0 0
    %1874 = vmatmul.mubr.bf16.gmra.mrb[0].mxu0 %v1732
    %v1875 = vpop.f32.mrb[0].mxu0
    %v1876 = vadd.f32 %v1754, %v1875
    %v1877 = vpop.f32.mrb[0].mxu0
    %v1878 = vadd.f32 %v1758, %v1877
    %v1879 = vpop.f32.mrb[0].mxu0
    %v1880 = vadd.f32 %v1754, %v1879
    %v1881 = vpop.f32.mrb[0].mxu0
    %v1882 = vadd.f32 %v1758, %v1881
    %1883 = vdwg.mxu0
    %v1884 = vmax.f32 %v1876, 0.0
    %v1885 = vmax.f32 %v1878, 0.0
    %v1886 = vmax.f32 %v1880, 0.0
    %v1887 = vmax.f32 %v1882, 0.0
    %v1888 = vpack.c.bf16 %v1886, %v1884
    %v1889 = vpack.c.bf16 %v1887, %v1885
    %v1890 = vld [vmem:[%s14] sm:$0xf]
    %v1891 = vld [vmem:[%s14 + $0x4] sm:$0xf]
    %v1892 = vld [vmem:[%s14 + $0x8] sm:$0xf]
    %v1893 = vld [vmem:[%s14 + $0xc] sm:$0xf]
    %v1894 = vld [vmem:[%s14 + $0x10] sm:$0xf]
    %v1895 = vld [vmem:[%s14 + $0x14] sm:$0xf]
    %v1896 = vld [vmem:[%s14 + $0x18] sm:$0xf]
    %v1897 = vld [vmem:[%s14 + $0x1c] sm:$0xf]
    %v1898 = vld [vmem:[%s14 + $0x20] sm:$0xf]
    %v1899 = vld [vmem:[%s14 + $0x24] sm:$0xf]
    %v1900 = vld [vmem:[%s14 + $0x28] sm:$0xf]
    %v1901 = vld [vmem:[%s14 + $0x2c] sm:$0xf]
    %v1902 = vld [vmem:[%s14 + $0x30] sm:$0xf]
    %v1903 = vld [vmem:[%s14 + $0x34] sm:$0xf]
    %v1904 = vld [vmem:[%s14 + $0x38] sm:$0xf]
    %v1905 = vld [vmem:[%s14 + $0x3c] sm:$0xf]
    %v1906 = vld [vmem:[%s14 + $0x40] sm:$0xf]
    %v1907 = vld [vmem:[%s14 + $0x44] sm:$0xf]
    %v1908 = vld [vmem:[%s14 + $0x48] sm:$0xf]
    %v1909 = vld [vmem:[%s14 + $0x4c] sm:$0xf]
    %v1910 = vld [vmem:[%s14 + $0x50] sm:$0xf]
    %v1911 = vld [vmem:[%s14 + $0x54] sm:$0xf]
    %v1912 = vld [vmem:[%s14 + $0x58] sm:$0xf]
    %v1913 = vld [vmem:[%s14 + $0x5c] sm:$0xf]
    %v1914 = vld [vmem:[%s14 + $0x60] sm:$0xf]
    %v1915 = vld [vmem:[%s14 + $0x64] sm:$0xf]
    %v1916 = vld [vmem:[%s14 + $0x68] sm:$0xf]
    %v1917 = vld [vmem:[%s14 + $0x6c] sm:$0xf]
    %v1918 = vld [vmem:[%s14 + $0x70] sm:$0xf]
    %v1919 = vld [vmem:[%s14 + $0x74] sm:$0xf]
    %v1920 = vld [vmem:[%s14 + $0x78] sm:$0xf]
    %v1921 = vld [vmem:[%s14 + $0x7c] sm:$0xf]
    %v1922 = vld [vmem:[#allocation19] sm:$0x1]
    %v1924 = vlaneseq
    %v1925 = vshrl.u32 %v1924, 7
    %v1926 = vsub.s32 0, %v1925
    %v1927 = vrot.slane %v1922, %v1926
    %v1961 = vunpack.c.l.b16 %v1890
    %v1962 = vunpack.c.l.b16 %v1891
    %v1963 = vunpack.c.l.b16 %v1892
    %v1964 = vunpack.c.l.b16 %v1893
    %v1965 = vunpack.c.l.b16 %v1894
    %v1966 = vunpack.c.l.b16 %v1895
    %v1967 = vunpack.c.l.b16 %v1896
    %v1968 = vunpack.c.l.b16 %v1897
    %v1969 = vunpack.c.l.b16 %v1898
    %v1970 = vunpack.c.l.b16 %v1899
    %v1971 = vunpack.c.l.b16 %v1900
    %v1972 = vunpack.c.l.b16 %v1901
    %v1973 = vunpack.c.l.b16 %v1902
    %v1974 = vunpack.c.l.b16 %v1903
    %v1975 = vunpack.c.l.b16 %v1904
    %v1976 = vunpack.c.l.b16 %v1905
    %v1977 = vunpack.c.l.b16 %v1906
    %v1978 = vunpack.c.l.b16 %v1907
    %v1979 = vunpack.c.l.b16 %v1908
    %v1980 = vunpack.c.l.b16 %v1909
    %v1981 = vunpack.c.l.b16 %v1910
    %v1982 = vunpack.c.l.b16 %v1911
    %v1983 = vunpack.c.l.b16 %v1912
    %v1984 = vunpack.c.l.b16 %v1913
    %v1985 = vunpack.c.l.b16 %v1914
    %v1986 = vunpack.c.l.b16 %v1915
    %v1987 = vunpack.c.l.b16 %v1916
    %v1988 = vunpack.c.l.b16 %v1917
    %v1989 = vunpack.c.l.b16 %v1918
    %v1990 = vunpack.c.l.b16 %v1919
    %v1991 = vunpack.c.l.b16 %v1920
    %v1992 = vunpack.c.l.b16 %v1921
    %v1993 = vpack.c.b16 %v1962, %v1961
    %v1994 = vpack.c.b16 %v1964, %v1963
    %v1995 = vpack.c.b16 %v1966, %v1965
    %v1996 = vpack.c.b16 %v1968, %v1967
    %v1997 = vpack.c.b16 %v1970, %v1969
    %v1998 = vpack.c.b16 %v1972, %v1971
    %v1999 = vpack.c.b16 %v1974, %v1973
    %v2000 = vpack.c.b16 %v1976, %v1975
    %v2001 = vpack.c.b16 %v1978, %v1977
    %v2002 = vpack.c.b16 %v1980, %v1979
    %v2003 = vpack.c.b16 %v1982, %v1981
    %v2004 = vpack.c.b16 %v1984, %v1983
    %v2005 = vpack.c.b16 %v1986, %v1985
    %v2006 = vpack.c.b16 %v1988, %v1987
    %v2007 = vpack.c.b16 %v1990, %v1989
    %v2008 = vpack.c.b16 %v1992, %v1991
    %2025 = vmatprep.subr.bf16.mxu0 0
    %2026 = vmatpush1.bf16.msra.mxu0 %v1993
    %2027 = vmatprep.subr.bf16.mxu0 0
    %2028 = vmatpush1.bf16.msra.mxu0 %v1994
    %2029 = vmatprep.subr.bf16.mxu0 0
    %2030 = vmatpush1.bf16.msra.mxu0 %v1995
    %2031 = vmatprep.subr.bf16.mxu0 0
    %2032 = vmatpush1.bf16.msra.mxu0 %v1996
    %2033 = vmatprep.subr.bf16.mxu0 0
    %2034 = vmatpush1.bf16.msra.mxu0 %v1997
    %2035 = vmatprep.subr.bf16.mxu0 0
    %2036 = vmatpush1.bf16.msra.mxu0 %v1998
    %2037 = vmatprep.subr.bf16.mxu0 0
    %2038 = vmatpush1.bf16.msra.mxu0 %v1999
    %2039 = vmatprep.subr.bf16.mxu0 0
    %2040 = vmatpush1.bf16.msra.mxu0 %v2000
    %2041 = vmatprep.subr.bf16.mxu0 0
    %2042 = vmatpush1.bf16.msra.mxu0 %v2001
    %2043 = vmatprep.subr.bf16.mxu0 0
    %2044 = vmatpush1.bf16.msra.mxu0 %v2002
    %2045 = vmatprep.subr.bf16.mxu0 0
    %2046 = vmatpush1.bf16.msra.mxu0 %v2003
    %2047 = vmatprep.subr.bf16.mxu0 0
    %2048 = vmatpush1.bf16.msra.mxu0 %v2004
    %2049 = vmatprep.subr.bf16.mxu0 0
    %2050 = vmatpush1.bf16.msra.mxu0 %v2005
    %2051 = vmatprep.subr.bf16.mxu0 0
    %2052 = vmatpush1.bf16.msra.mxu0 %v2006
    %2053 = vmatprep.subr.bf16.mxu0 0
    %2054 = vmatpush1.bf16.msra.mxu0 %v2007
    %2055 = vmatprep.subr.bf16.mxu0 0
    %2056 = vmatpush1.bf16.msra.mxu0 %v2008
    %2057 = vmatprep.mubr.bf16.mxu0 %v1889
    %2058 = vmatmul.mubr.bf16.gmra.mrb[0].mxu0 %v1888
    %v2059 = vpop.f32.mrb[0].mxu0
    %v2060 = vadd.f32 %v1927, %v2059
    %v2061 = vpop.f32.mrb[0].mxu0
    %v2062 = vpop.f32.mrb[0].mxu0
    %v2063 = vadd.f32 %v1927, %v2062
    %v2064 = vpop.f32.mrb[0].mxu0
    %2065 = vdwg.mxu0
    %v2066 = vmul.f32 %v2060, 0.5
    %v2067 = vmul.f32 %v2063, 0.5
    %v2068 = vmul.f32 %v2066, 1.442695
    %v2069 = vpow.pop %v2068
    %v2070 = vmul.f32 %v2067, 1.442695
    %v2071 = vpow.pop %v2070
    %v2072 = vmul.f32 %v2069, %v279
    %v2073 = vmul.f32 %v2071, %v280
    %2076 = vrot.lane.b32.xlu0 %v2072, 96
    %v2077 = vpop.permute.xlu0 %2076
    %2078 = vrot.lane.b32.xlu0 %v2073, 96
    %v2079 = vpop.permute.xlu0 %2078
    %v2082 = vadd.f32 %v2060, %v2077
    %v2083 = vadd.f32 %v2063, %v2079
    %v2084 = vpack.c.bf16 %v2083, %v2082
    %v2085 = vld [vmem:[#allocation20] sm:$0xf]
    %v2086 = vld [vmem:[#allocation20 + $0x4] sm:$0xf]
    %v2087 = vld [vmem:[#allocation20 + $0x8] sm:$0xf]
    %v2088 = vld [vmem:[#allocation20 + $0xc] sm:$0xf]
    %v2089 = vld [vmem:[%s17] sm:$0x1]
    %v2091 = vlaneseq
    %v2092 = vshrl.u32 %v2091, 7
    %v2093 = vsub.s32 0, %v2092
    %v2094 = vrot.slane %v2089, %v2093
    %v2100 = vunpack.c.l.b16 %v2085
    %v2101 = vunpack.c.l.b16 %v2086
    %v2102 = vunpack.c.l.b16 %v2087
    %v2103 = vunpack.c.l.b16 %v2088
    %v2104 = vpack.c.b16 %v2101, %v2100
    %v2105 = vpack.c.b16 %v2103, %v2102
    %v2109 = vsel %vm1507, %v2084, 0
    %2111 = vmatprep.subr.bf16.mxu0 0
    %2112 = vmatpush1.bf16.msra.mxu0 %v2104
    %2113 = vmatprep.subr.bf16.mxu0 0
    %2114 = vmatpush1.bf16.msra.mxu0 %v2105
    %2115 = vmatprep.subr.bf16.mxu0 0
    %2116 = vmatpush1.bf16.msra.mxu0 0
    %2117 = vmatprep.subr.bf16.mxu0 0
    %2118 = vmatpush1.bf16.msra.mxu0 0
    %2119 = vmatprep.subr.bf16.mxu0 0
    %2120 = vmatpush1.bf16.msra.mxu0 0
    %2121 = vmatprep.subr.bf16.mxu0 0
    %2122 = vmatpush1.bf16.msra.mxu0 0
    %2123 = vmatprep.subr.bf16.mxu0 0
    %2124 = vmatpush1.bf16.msra.mxu0 0
    %2125 = vmatprep.subr.bf16.mxu0 0
    %2126 = vmatpush1.bf16.msra.mxu0 0
    %2127 = vmatprep.subr.bf16.mxu0 0
    %2128 = vmatpush1.bf16.msra.mxu0 0
    %2129 = vmatprep.subr.bf16.mxu0 0
    %2130 = vmatpush1.bf16.msra.mxu0 0
    %2131 = vmatprep.subr.bf16.mxu0 0
    %2132 = vmatpush1.bf16.msra.mxu0 0
    %2133 = vmatprep.subr.bf16.mxu0 0
    %2134 = vmatpush1.bf16.msra.mxu0 0
    %2135 = vmatprep.subr.bf16.mxu0 0
    %2136 = vmatpush1.bf16.msra.mxu0 0
    %2137 = vmatprep.subr.bf16.mxu0 0
    %2138 = vmatpush1.bf16.msra.mxu0 0
    %2139 = vmatprep.subr.bf16.mxu0 0
    %2140 = vmatpush1.bf16.msra.mxu0 0
    %2141 = vmatprep.subr.bf16.mxu0 0
    %2142 = vmatpush1.bf16.msra.mxu0 0
    %2143 = vmatprep.mubr.bf16.mxu0 0
    %2144 = vmatmul.mubr.bf16.gmra.mrb[0].mxu0 %v2109
    %v2145 = vpop.f32.mrb[0].mxu0
    %v2146 = vadd.f32 %v2094, %v2145
    %v2147 = vpop.f32.mrb[0].mxu0
    %v2148 = vpop.f32.mrb[0].mxu0
    %v2149 = vadd.f32 %v2094, %v2148
    %v2150 = vpop.f32.mrb[0].mxu0
    %2151 = vdwg.mxu0
    %v2152 = vmax.f32 %v2146, 0.0
    %v2153 = vmax.f32 %v2149, 0.0
    %v2154 = vpack.c.bf16 %v2153, %v2152
    %v2155 = vld [vmem:[#allocation22] sm:$0xf]
    %v2156 = vld [vmem:[#allocation22 + $0x4] sm:$0xf]
    %v2157 = vld [vmem:[#allocation22 + $0x8] sm:$0xf]
    %v2158 = vld [vmem:[#allocation22 + $0xc] sm:$0xf]
    %v2159 = vld [vmem:[#allocation22 + $0x10] sm:$0xf]
    %v2160 = vld [vmem:[#allocation22 + $0x14] sm:$0xf]
    %v2161 = vld [vmem:[#allocation22 + $0x18] sm:$0xf]
    %v2162 = vld [vmem:[#allocation22 + $0x1c] sm:$0xf]
    %v2163 = vld [vmem:[#allocation22 + $0x20] sm:$0xf]
    %v2164 = vld [vmem:[#allocation22 + $0x24] sm:$0xf]
    %v2165 = vld [vmem:[#allocation22 + $0x28] sm:$0xf]
    %v2166 = vld [vmem:[#allocation22 + $0x2c] sm:$0xf]
    %v2167 = vld [vmem:[#allocation22 + $0x30] sm:$0xf]
    %v2168 = vld [vmem:[#allocation22 + $0x34] sm:$0xf]
    %v2169 = vld [vmem:[#allocation22 + $0x38] sm:$0xf]
    %v2170 = vld [vmem:[#allocation22 + $0x3c] sm:$0xf]
    %v2171 = vld [vmem:[%s19] sm:$0x1]
    %v2173 = vlaneseq
    %v2174 = vshrl.u32 %v2173, 7
    %v2175 = vsub.s32 0, %v2174
    %v2176 = vrot.slane %v2171, %v2175
    %v2194 = vunpack.c.l.b16 %v2155
    %v2195 = vunpack.c.l.b16 %v2156
    %v2196 = vunpack.c.l.b16 %v2157
    %v2197 = vunpack.c.l.b16 %v2158
    %v2198 = vunpack.c.l.b16 %v2159
    %v2199 = vunpack.c.l.b16 %v2160
    %v2200 = vunpack.c.l.b16 %v2161
    %v2201 = vunpack.c.l.b16 %v2162
    %v2202 = vunpack.c.l.b16 %v2163
    %v2203 = vunpack.c.l.b16 %v2164
    %v2204 = vunpack.c.l.b16 %v2165
    %v2205 = vunpack.c.l.b16 %v2166
    %v2206 = vunpack.c.l.b16 %v2167
    %v2207 = vunpack.c.l.b16 %v2168
    %v2208 = vunpack.c.l.b16 %v2169
    %v2209 = vunpack.c.l.b16 %v2170
    %v2210 = vpack.c.b16 %v2195, %v2194
    %v2211 = vpack.c.b16 %v2197, %v2196
    %v2212 = vpack.c.b16 %v2199, %v2198
    %v2213 = vpack.c.b16 %v2201, %v2200
    %v2214 = vpack.c.b16 %v2203, %v2202
    %v2215 = vpack.c.b16 %v2205, %v2204
    %v2216 = vpack.c.b16 %v2207, %v2206
    %v2217 = vpack.c.b16 %v2209, %v2208
    %2226 = vmatprep.subr.bf16.mxu0 0
    %2227 = vmatpush1.bf16.msra.mxu0 %v2210
    %2228 = vmatprep.subr.bf16.mxu0 0
    %2229 = vmatpush1.bf16.msra.mxu0 %v2211
    %2230 = vmatprep.subr.bf16.mxu0 0
    %2231 = vmatpush1.bf16.msra.mxu0 %v2212
    %2232 = vmatprep.subr.bf16.mxu0 0
    %2233 = vmatpush1.bf16.msra.mxu0 %v2213
    %2234 = vmatprep.subr.bf16.mxu0 0
    %2235 = vmatpush1.bf16.msra.mxu0 %v2214
    %2236 = vmatprep.subr.bf16.mxu0 0
    %2237 = vmatpush1.bf16.msra.mxu0 %v2215
    %2238 = vmatprep.subr.bf16.mxu0 0
    %2239 = vmatpush1.bf16.msra.mxu0 %v2216
    %2240 = vmatprep.subr.bf16.mxu0 0
    %2241 = vmatpush1.bf16.msra.mxu0 %v2217
    %2242 = vmatprep.subr.bf16.mxu0 0
    %2243 = vmatpush1.bf16.msra.mxu0 0
    %2244 = vmatprep.subr.bf16.mxu0 0
    %2245 = vmatpush1.bf16.msra.mxu0 0
    %2246 = vmatprep.subr.bf16.mxu0 0
    %2247 = vmatpush1.bf16.msra.mxu0 0
    %2248 = vmatprep.subr.bf16.mxu0 0
    %2249 = vmatpush1.bf16.msra.mxu0 0
    %2250 = vmatprep.subr.bf16.mxu0 0
    %2251 = vmatpush1.bf16.msra.mxu0 0
    %2252 = vmatprep.subr.bf16.mxu0 0
    %2253 = vmatpush1.bf16.msra.mxu0 0
    %2254 = vmatprep.subr.bf16.mxu0 0
    %2255 = vmatpush1.bf16.msra.mxu0 0
    %2256 = vmatprep.subr.bf16.mxu0 0
    %2257 = vmatpush1.bf16.msra.mxu0 0
    %2258 = vmatprep.mubr.bf16.mxu0 0
    %2259 = vmatmul.mubr.bf16.gmra.mrb[0].mxu0 %v2154
    %v2260 = vpop.f32.mrb[0].mxu0
    %v2261 = vadd.f32 %v2176, %v2260
    %v2262 = vpop.f32.mrb[0].mxu0
    %v2263 = vpop.f32.mrb[0].mxu0
    %v2264 = vadd.f32 %v2176, %v2263
    %v2265 = vpop.f32.mrb[0].mxu0
    %2266 = vdwg.mxu0
    %v2267 = vmax.f32 %v2261, 0.0
    %v2268 = vmax.f32 %v2264, 0.0
    %v2269 = vpack.c.bf16 %v2268, %v2267
    %v2270 = vld [vmem:[#allocation23] sm:$0xf]
    %v2271 = vld [vmem:[#allocation23 + $0x4] sm:$0xf]
    %v2272 = vld [vmem:[#allocation23 + $0x8] sm:$0xf]
    %v2273 = vld [vmem:[#allocation23 + $0xc] sm:$0xf]
    %v2274 = vld [vmem:[#allocation23 + $0x10] sm:$0xf]
    %v2275 = vld [vmem:[#allocation23 + $0x14] sm:$0xf]
    %v2276 = vld [vmem:[#allocation23 + $0x18] sm:$0xf]
    %v2277 = vld [vmem:[#allocation23 + $0x1c] sm:$0xf]
    %v2278 = vld [vmem:[#allocation23 + $0x20] sm:$0xf]
    %v2279 = vld [vmem:[#allocation23 + $0x24] sm:$0xf]
    %v2280 = vld [vmem:[#allocation23 + $0x28] sm:$0xf]
    %v2281 = vld [vmem:[#allocation23 + $0x2c] sm:$0xf]
    %v2282 = vld [vmem:[#allocation23 + $0x30] sm:$0xf]
    %v2283 = vld [vmem:[#allocation23 + $0x34] sm:$0xf]
    %v2284 = vld [vmem:[#allocation23 + $0x38] sm:$0xf]
    %v2285 = vld [vmem:[#allocation23 + $0x3c] sm:$0xf]
    %v2286 = vld [vmem:[%s21] sm:$0x1]
    %v2288 = vlaneseq
    %v2289 = vshrl.u32 %v2288, 7
    %v2290 = vsub.s32 0, %v2289
    %v2291 = vrot.slane %v2286, %v2290
    %v2309 = vunpack.c.l.b16 %v2270
    %v2310 = vunpack.c.l.b16 %v2271
    %v2311 = vunpack.c.l.b16 %v2272
    %v2312 = vunpack.c.l.b16 %v2273
    %v2313 = vunpack.c.l.b16 %v2274
    %v2314 = vunpack.c.l.b16 %v2275
    %v2315 = vunpack.c.l.b16 %v2276
    %v2316 = vunpack.c.l.b16 %v2277
    %v2317 = vunpack.c.l.b16 %v2278
    %v2318 = vunpack.c.l.b16 %v2279
    %v2319 = vunpack.c.l.b16 %v2280
    %v2320 = vunpack.c.l.b16 %v2281
    %v2321 = vunpack.c.l.b16 %v2282
    %v2322 = vunpack.c.l.b16 %v2283
    %v2323 = vunpack.c.l.b16 %v2284
    %v2324 = vunpack.c.l.b16 %v2285
    %v2325 = vpack.c.b16 %v2310, %v2309
    %v2326 = vpack.c.b16 %v2312, %v2311
    %v2327 = vpack.c.b16 %v2314, %v2313
    %v2328 = vpack.c.b16 %v2316, %v2315
    %v2329 = vpack.c.b16 %v2318, %v2317
    %v2330 = vpack.c.b16 %v2320, %v2319
    %v2331 = vpack.c.b16 %v2322, %v2321
    %v2332 = vpack.c.b16 %v2324, %v2323
    %2341 = vmatprep.subr.bf16.mxu0 0
    %2342 = vmatpush1.bf16.msra.mxu0 %v2325
    %2343 = vmatprep.subr.bf16.mxu0 0
    %2344 = vmatpush1.bf16.msra.mxu0 %v2326
    %2345 = vmatprep.subr.bf16.mxu0 0
    %2346 = vmatpush1.bf16.msra.mxu0 %v2327
    %2347 = vmatprep.subr.bf16.mxu0 0
    %2348 = vmatpush1.bf16.msra.mxu0 %v2328
    %2349 = vmatprep.subr.bf16.mxu0 0
    %2350 = vmatpush1.bf16.msra.mxu0 %v2329
    %2351 = vmatprep.subr.bf16.mxu0 0
    %2352 = vmatpush1.bf16.msra.mxu0 %v2330
    %2353 = vmatprep.subr.bf16.mxu0 0
    %2354 = vmatpush1.bf16.msra.mxu0 %v2331
    %2355 = vmatprep.subr.bf16.mxu0 0
    %2356 = vmatpush1.bf16.msra.mxu0 %v2332
    %2357 = vmatprep.subr.bf16.mxu0 0
    %2358 = vmatpush1.bf16.msra.mxu0 0
    %2359 = vmatprep.subr.bf16.mxu0 0
    %2360 = vmatpush1.bf16.msra.mxu0 0
    %2361 = vmatprep.subr.bf16.mxu0 0
    %2362 = vmatpush1.bf16.msra.mxu0 0
    %2363 = vmatprep.subr.bf16.mxu0 0
    %2364 = vmatpush1.bf16.msra.mxu0 0
    %2365 = vmatprep.subr.bf16.mxu0 0
    %2366 = vmatpush1.bf16.msra.mxu0 0
    %2367 = vmatprep.subr.bf16.mxu0 0
    %2368 = vmatpush1.bf16.msra.mxu0 0
    %2369 = vmatprep.subr.bf16.mxu0 0
    %2370 = vmatpush1.bf16.msra.mxu0 0
    %2371 = vmatprep.subr.bf16.mxu0 0
    %2372 = vmatpush1.bf16.msra.mxu0 0
    %2373 = vmatprep.mubr.bf16.mxu0 0
    %2374 = vmatmul.mubr.bf16.gmra.mrb[0].mxu0 %v2269
    %v2375 = vpop.f32.mrb[0].mxu0
    %v2376 = vadd.f32 %v2291, %v2375
    %v2377 = vpop.f32.mrb[0].mxu0
    %v2378 = vpop.f32.mrb[0].mxu0
    %v2379 = vadd.f32 %v2291, %v2378
    %v2380 = vpop.f32.mrb[0].mxu0
    %2381 = vdwg.mxu0
    %v2382 = vmax.f32 %v2376, 0.0
    %v2383 = vmax.f32 %v2379, 0.0
    %v2384 = vpack.c.bf16 %v2383, %v2382
    %v2385 = vld [vmem:[#allocation25] sm:$0xff]
    %v2386 = vld [vmem:[#allocation25 + $0x8] sm:$0xff]
    %v2387 = vld [vmem:[#allocation25 + $0x10] sm:$0xff]
    %v2388 = vld [vmem:[#allocation25 + $0x18] sm:$0xff]
    %v2389 = vld [vmem:[#allocation25 + $0x20] sm:$0xff]
    %v2390 = vld [vmem:[#allocation25 + $0x28] sm:$0xff]
    %v2391 = vld [vmem:[#allocation25 + $0x30] sm:$0xff]
    %v2392 = vld [vmem:[#allocation25 + $0x38] sm:$0xff]
    %v2393 = vld [vmem:[#allocation25 + $0x40] sm:$0xff]
    %v2394 = vld [vmem:[#allocation25 + $0x48] sm:$0xff]
    %v2395 = vld [vmem:[#allocation25 + $0x50] sm:$0xff]
    %v2396 = vld [vmem:[#allocation25 + $0x58] sm:$0xff]
    %v2397 = vld [vmem:[#allocation25 + $0x60] sm:$0xff]
    %v2398 = vld [vmem:[#allocation25 + $0x68] sm:$0xff]
    %v2399 = vld [vmem:[#allocation25 + $0x70] sm:$0xff]
    %v2400 = vld [vmem:[#allocation25 + $0x78] sm:$0xff]
    %v2401 = vld [vmem:[#allocation25 + $0x80] sm:$0xff]
    %v2402 = vld [vmem:[#allocation25 + $0x88] sm:$0xff]
    %v2403 = vld [vmem:[#allocation25 + $0x90] sm:$0xff]
    %v2404 = vld [vmem:[#allocation25 + $0x98] sm:$0xff]
    %v2405 = vld [vmem:[#allocation25 + $0xa0] sm:$0xff]
    %v2406 = vld [vmem:[#allocation25 + $0xa8] sm:$0xff]
    %v2407 = vld [vmem:[#allocation25 + $0xb0] sm:$0xff]
    %v2408 = vld [vmem:[#allocation25 + $0xb8] sm:$0xff]
    %v2409 = vld [vmem:[#allocation25 + $0xc0] sm:$0xff]
    %v2410 = vld [vmem:[#allocation25 + $0xc8] sm:$0xff]
    %v2411 = vld [vmem:[#allocation25 + $0xd0] sm:$0xff]
    %v2412 = vld [vmem:[#allocation25 + $0xd8] sm:$0xff]
    %v2413 = vld [vmem:[#allocation25 + $0xe0] sm:$0xff]
    %v2414 = vld [vmem:[#allocation25 + $0xe8] sm:$0xff]
    %v2415 = vld [vmem:[#allocation25 + $0xf0] sm:$0xff]
    %v2416 = vld [vmem:[#allocation25 + $0xf8] sm:$0xff]
    %v2417 = vld [vmem:[#allocation25 + $0x100] sm:$0xff]
    %v2418 = vld [vmem:[#allocation25 + $0x108] sm:$0xff]
    %v2419 = vld [vmem:[#allocation25 + $0x110] sm:$0xff]
    %v2420 = vld [vmem:[#allocation25 + $0x118] sm:$0xff]
    %v2421 = vld [vmem:[#allocation25 + $0x120] sm:$0xff]
    %v2422 = vld [vmem:[#allocation25 + $0x128] sm:$0xff]
    %v2423 = vld [vmem:[#allocation25 + $0x130] sm:$0xff]
    %v2424 = vld [vmem:[#allocation25 + $0x138] sm:$0xff]
    %v2425 = vld [vmem:[#allocation25 + $0x140] sm:$0xff]
    %v2426 = vld [vmem:[#allocation25 + $0x148] sm:$0xff]
    %v2427 = vld [vmem:[#allocation25 + $0x150] sm:$0xff]
    %v2428 = vld [vmem:[#allocation25 + $0x158] sm:$0xff]
    %v2429 = vld [vmem:[#allocation25 + $0x160] sm:$0xff]
    %v2430 = vld [vmem:[#allocation25 + $0x168] sm:$0xff]
    %v2431 = vld [vmem:[#allocation25 + $0x170] sm:$0xff]
    %v2432 = vld [vmem:[#allocation25 + $0x178] sm:$0xff]
    %v2433 = vld [vmem:[#allocation25 + $0x180] sm:$0xff]
    %v2434 = vld [vmem:[#allocation25 + $0x188] sm:$0xff]
    %v2435 = vld [vmem:[#allocation25 + $0x190] sm:$0xff]
    %v2436 = vld [vmem:[#allocation25 + $0x198] sm:$0xff]
    %v2437 = vld [vmem:[#allocation25 + $0x1a0] sm:$0xff]
    %v2438 = vld [vmem:[#allocation25 + $0x1a8] sm:$0xff]
    %v2439 = vld [vmem:[#allocation25 + $0x1b0] sm:$0xff]
    %v2440 = vld [vmem:[#allocation25 + $0x1b8] sm:$0xff]
    %v2441 = vld [vmem:[#allocation25 + $0x1c0] sm:$0xff]
    %v2442 = vld [vmem:[#allocation25 + $0x1c8] sm:$0xff]
    %v2443 = vld [vmem:[#allocation25 + $0x1d0] sm:$0xff]
    %v2444 = vld [vmem:[#allocation25 + $0x1d8] sm:$0xff]
    %v2445 = vld [vmem:[#allocation25 + $0x1e0] sm:$0xff]
    %v2446 = vld [vmem:[#allocation25 + $0x1e8] sm:$0xff]
    %v2447 = vld [vmem:[#allocation25 + $0x1f0] sm:$0xff]
    %v2448 = vld [vmem:[#allocation25 + $0x1f8] sm:$0xff]
    %v2449 = vld [vmem:[%s23] sm:$0xff]
    %v2451 = vlaneseq
    %v2452 = vshrl.u32 %v2451, 7
    %v2453 = vsub.s32 0, %v2452
    %v2454 = vrot.slane %v2449, %v2453
    %v2455 = vlaneseq
    %v2456 = vshrl.u32 %v2455, 7
    %v2457 = vsub.s32 1, %v2456
    %v2458 = vrot.slane %v2449, %v2457
    %v2459 = vlaneseq
    %v2460 = vshrl.u32 %v2459, 7
    %v2461 = vsub.s32 2, %v2460
    %v2462 = vrot.slane %v2449, %v2461
    %v2463 = vlaneseq
    %v2464 = vshrl.u32 %v2463, 7
    %v2465 = vsub.s32 3, %v2464
    %v2466 = vrot.slane %v2449, %v2465
    %v2467 = vlaneseq
    %v2468 = vshrl.u32 %v2467, 7
    %v2469 = vsub.s32 4, %v2468
    %v2470 = vrot.slane %v2449, %v2469
    %v2471 = vlaneseq
    %v2472 = vshrl.u32 %v2471, 7
    %v2473 = vsub.s32 5, %v2472
    %v2474 = vrot.slane %v2449, %v2473
    %v2475 = vlaneseq
    %v2476 = vshrl.u32 %v2475, 7
    %v2477 = vsub.s32 6, %v2476
    %v2478 = vrot.slane %v2449, %v2477
    %v2479 = vlaneseq
    %v2480 = vshrl.u32 %v2479, 7
    %v2481 = vsub.s32 7, %v2480
    %v2482 = vrot.slane %v2449, %v2481
    %v2555 = vunpack.c.l.b16 %v2385
    %v2556 = vunpack.c.h.b16 %v2385
    %v2557 = vunpack.c.l.b16 %v2386
    %v2558 = vunpack.c.h.b16 %v2386
    %v2559 = vunpack.c.l.b16 %v2387
    %v2560 = vunpack.c.h.b16 %v2387
    %v2561 = vunpack.c.l.b16 %v2388
    %v2562 = vunpack.c.h.b16 %v2388
    %v2563 = vunpack.c.l.b16 %v2389
    %v2564 = vunpack.c.h.b16 %v2389
    %v2565 = vunpack.c.l.b16 %v2390
    %v2566 = vunpack.c.h.b16 %v2390
    %v2567 = vunpack.c.l.b16 %v2391
    %v2568 = vunpack.c.h.b16 %v2391
    %v2569 = vunpack.c.l.b16 %v2392
    %v2570 = vunpack.c.h.b16 %v2392
    %v2571 = vunpack.c.l.b16 %v2393
    %v2572 = vunpack.c.h.b16 %v2393
    %v2573 = vunpack.c.l.b16 %v2394
    %v2574 = vunpack.c.h.b16 %v2394
    %v2575 = vunpack.c.l.b16 %v2395
    %v2576 = vunpack.c.h.b16 %v2395
    %v2577 = vunpack.c.l.b16 %v2396
    %v2578 = vunpack.c.h.b16 %v2396
    %v2579 = vunpack.c.l.b16 %v2397
    %v2580 = vunpack.c.h.b16 %v2397
    %v2581 = vunpack.c.l.b16 %v2398
    %v2582 = vunpack.c.h.b16 %v2398
    %v2583 = vunpack.c.l.b16 %v2399
    %v2584 = vunpack.c.h.b16 %v2399
    %v2585 = vunpack.c.l.b16 %v2400
    %v2586 = vunpack.c.h.b16 %v2400
    %v2587 = vunpack.c.l.b16 %v2401
    %v2588 = vunpack.c.h.b16 %v2401
    %v2589 = vunpack.c.l.b16 %v2402
    %v2590 = vunpack.c.h.b16 %v2402
    %v2591 = vunpack.c.l.b16 %v2403
    %v2592 = vunpack.c.h.b16 %v2403
    %v2593 = vunpack.c.l.b16 %v2404
    %v2594 = vunpack.c.h.b16 %v2404
    %v2595 = vunpack.c.l.b16 %v2405
    %v2596 = vunpack.c.h.b16 %v2405
    %v2597 = vunpack.c.l.b16 %v2406
    %v2598 = vunpack.c.h.b16 %v2406
    %v2599 = vunpack.c.l.b16 %v2407
    %v2600 = vunpack.c.h.b16 %v2407
    %v2601 = vunpack.c.l.b16 %v2408
    %v2602 = vunpack.c.h.b16 %v2408
    %v2603 = vunpack.c.l.b16 %v2409
    %v2604 = vunpack.c.h.b16 %v2409
    %v2605 = vunpack.c.l.b16 %v2410
    %v2606 = vunpack.c.h.b16 %v2410
    %v2607 = vunpack.c.l.b16 %v2411
    %v2608 = vunpack.c.h.b16 %v2411
    %v2609 = vunpack.c.l.b16 %v2412
    %v2610 = vunpack.c.h.b16 %v2412
    %v2611 = vunpack.c.l.b16 %v2413
    %v2612 = vunpack.c.h.b16 %v2413
    %v2613 = vunpack.c.l.b16 %v2414
    %v2614 = vunpack.c.h.b16 %v2414
    %v2615 = vunpack.c.l.b16 %v2415
    %v2616 = vunpack.c.h.b16 %v2415
    %v2617 = vunpack.c.l.b16 %v2416
    %v2618 = vunpack.c.h.b16 %v2416
    %v2619 = vunpack.c.l.b16 %v2417
    %v2620 = vunpack.c.h.b16 %v2417
    %v2621 = vunpack.c.l.b16 %v2418
    %v2622 = vunpack.c.h.b16 %v2418
    %v2623 = vunpack.c.l.b16 %v2419
    %v2624 = vunpack.c.h.b16 %v2419
    %v2625 = vunpack.c.l.b16 %v2420
    %v2626 = vunpack.c.h.b16 %v2420
    %v2627 = vunpack.c.l.b16 %v2421
    %v2628 = vunpack.c.h.b16 %v2421
    %v2629 = vunpack.c.l.b16 %v2422
    %v2630 = vunpack.c.h.b16 %v2422
    %v2631 = vunpack.c.l.b16 %v2423
    %v2632 = vunpack.c.h.b16 %v2423
    %v2633 = vunpack.c.l.b16 %v2424
    %v2634 = vunpack.c.h.b16 %v2424
    %v2635 = vunpack.c.l.b16 %v2425
    %v2636 = vunpack.c.h.b16 %v2425
    %v2637 = vunpack.c.l.b16 %v2426
    %v2638 = vunpack.c.h.b16 %v2426
    %v2639 = vunpack.c.l.b16 %v2427
    %v2640 = vunpack.c.h.b16 %v2427
    %v2641 = vunpack.c.l.b16 %v2428
    %v2642 = vunpack.c.h.b16 %v2428
    %v2643 = vunpack.c.l.b16 %v2429
    %v2644 = vunpack.c.h.b16 %v2429
    %v2645 = vunpack.c.l.b16 %v2430
    %v2646 = vunpack.c.h.b16 %v2430
    %v2647 = vunpack.c.l.b16 %v2431
    %v2648 = vunpack.c.h.b16 %v2431
    %v2649 = vunpack.c.l.b16 %v2432
    %v2650 = vunpack.c.h.b16 %v2432
    %v2651 = vunpack.c.l.b16 %v2433
    %v2652 = vunpack.c.h.b16 %v2433
    %v2653 = vunpack.c.l.b16 %v2434
    %v2654 = vunpack.c.h.b16 %v2434
    %v2655 = vunpack.c.l.b16 %v2435
    %v2656 = vunpack.c.h.b16 %v2435
    %v2657 = vunpack.c.l.b16 %v2436
    %v2658 = vunpack.c.h.b16 %v2436
    %v2659 = vunpack.c.l.b16 %v2437
    %v2660 = vunpack.c.h.b16 %v2437
    %v2661 = vunpack.c.l.b16 %v2438
    %v2662 = vunpack.c.h.b16 %v2438
    %v2663 = vunpack.c.l.b16 %v2439
    %v2664 = vunpack.c.h.b16 %v2439
    %v2665 = vunpack.c.l.b16 %v2440
    %v2666 = vunpack.c.h.b16 %v2440
    %v2667 = vunpack.c.l.b16 %v2441
    %v2668 = vunpack.c.h.b16 %v2441
    %v2669 = vunpack.c.l.b16 %v2442
    %v2670 = vunpack.c.h.b16 %v2442
    %v2671 = vunpack.c.l.b16 %v2443
    %v2672 = vunpack.c.h.b16 %v2443
    %v2673 = vunpack.c.l.b16 %v2444
    %v2674 = vunpack.c.h.b16 %v2444
    %v2675 = vunpack.c.l.b16 %v2445
    %v2676 = vunpack.c.h.b16 %v2445
    %v2677 = vunpack.c.l.b16 %v2446
    %v2678 = vunpack.c.h.b16 %v2446
    %v2679 = vunpack.c.l.b16 %v2447
    %v2680 = vunpack.c.h.b16 %v2447
    %v2681 = vunpack.c.l.b16 %v2448
    %v2682 = vunpack.c.h.b16 %v2448
    %v2683 = vpack.c.b16 %v2563, %v2555
    %v2684 = vpack.c.b16 %v2564, %v2556
    %v2685 = vpack.c.b16 %v2565, %v2557
    %v2686 = vpack.c.b16 %v2566, %v2558
    %v2687 = vpack.c.b16 %v2567, %v2559
    %v2688 = vpack.c.b16 %v2568, %v2560
    %v2689 = vpack.c.b16 %v2569, %v2561
    %v2690 = vpack.c.b16 %v2570, %v2562
    %v2691 = vpack.c.b16 %v2579, %v2571
    %v2692 = vpack.c.b16 %v2580, %v2572
    %v2693 = vpack.c.b16 %v2581, %v2573
    %v2694 = vpack.c.b16 %v2582, %v2574
    %v2695 = vpack.c.b16 %v2583, %v2575
    %v2696 = vpack.c.b16 %v2584, %v2576
    %v2697 = vpack.c.b16 %v2585, %v2577
    %v2698 = vpack.c.b16 %v2586, %v2578
    %v2699 = vpack.c.b16 %v2595, %v2587
    %v2700 = vpack.c.b16 %v2596, %v2588
    %v2701 = vpack.c.b16 %v2597, %v2589
    %v2702 = vpack.c.b16 %v2598, %v2590
    %v2703 = vpack.c.b16 %v2599, %v2591
    %v2704 = vpack.c.b16 %v2600, %v2592
    %v2705 = vpack.c.b16 %v2601, %v2593
    %v2706 = vpack.c.b16 %v2602, %v2594
    %v2707 = vpack.c.b16 %v2611, %v2603
    %v2708 = vpack.c.b16 %v2612, %v2604
    %v2709 = vpack.c.b16 %v2613, %v2605
    %v2710 = vpack.c.b16 %v2614, %v2606
    %v2711 = vpack.c.b16 %v2615, %v2607
    %v2712 = vpack.c.b16 %v2616, %v2608
    %v2713 = vpack.c.b16 %v2617, %v2609
    %v2714 = vpack.c.b16 %v2618, %v2610
    %v2715 = vpack.c.b16 %v2627, %v2619
    %v2716 = vpack.c.b16 %v2628, %v2620
    %v2717 = vpack.c.b16 %v2629, %v2621
    %v2718 = vpack.c.b16 %v2630, %v2622
    %v2719 = vpack.c.b16 %v2631, %v2623
    %v2720 = vpack.c.b16 %v2632, %v2624
    %v2721 = vpack.c.b16 %v2633, %v2625
    %v2722 = vpack.c.b16 %v2634, %v2626
    %v2723 = vpack.c.b16 %v2643, %v2635
    %v2724 = vpack.c.b16 %v2644, %v2636
    %v2725 = vpack.c.b16 %v2645, %v2637
    %v2726 = vpack.c.b16 %v2646, %v2638
    %v2727 = vpack.c.b16 %v2647, %v2639
    %v2728 = vpack.c.b16 %v2648, %v2640
    %v2729 = vpack.c.b16 %v2649, %v2641
    %v2730 = vpack.c.b16 %v2650, %v2642
    %v2731 = vpack.c.b16 %v2659, %v2651
    %v2732 = vpack.c.b16 %v2660, %v2652
    %v2733 = vpack.c.b16 %v2661, %v2653
    %v2734 = vpack.c.b16 %v2662, %v2654
    %v2735 = vpack.c.b16 %v2663, %v2655
    %v2736 = vpack.c.b16 %v2664, %v2656
    %v2737 = vpack.c.b16 %v2665, %v2657
    %v2738 = vpack.c.b16 %v2666, %v2658
    %v2739 = vpack.c.b16 %v2675, %v2667
    %v2740 = vpack.c.b16 %v2676, %v2668
    %v2741 = vpack.c.b16 %v2677, %v2669
    %v2742 = vpack.c.b16 %v2678, %v2670
    %v2743 = vpack.c.b16 %v2679, %v2671
    %v2744 = vpack.c.b16 %v2680, %v2672
    %v2745 = vpack.c.b16 %v2681, %v2673
    %v2746 = vpack.c.b16 %v2682, %v2674
    %2811 = vmatprep.subr.bf16.mxu0 %v2684
    %2812 = vmatpush1.bf16.msra.mxu0 %v2683
    %2813 = vmatprep.subr.bf16.mxu0 %v2692
    %2814 = vmatpush1.bf16.msra.mxu0 %v2691
    %2815 = vmatprep.subr.bf16.mxu0 %v2700
    %2816 = vmatpush1.bf16.msra.mxu0 %v2699
    %2817 = vmatprep.subr.bf16.mxu0 %v2708
    %2818 = vmatpush1.bf16.msra.mxu0 %v2707
    %2819 = vmatprep.subr.bf16.mxu0 %v2716
    %2820 = vmatpush1.bf16.msra.mxu0 %v2715
    %2821 = vmatprep.subr.bf16.mxu0 %v2724
    %2822 = vmatpush1.bf16.msra.mxu0 %v2723
    %2823 = vmatprep.subr.bf16.mxu0 %v2732
    %2824 = vmatpush1.bf16.msra.mxu0 %v2731
    %2825 = vmatprep.subr.bf16.mxu0 %v2740
    %2826 = vmatpush1.bf16.msra.mxu0 %v2739
    %2827 = vmatprep.subr.bf16.mxu0 0
    %2828 = vmatpush1.bf16.msra.mxu0 0
    %2829 = vmatprep.subr.bf16.mxu0 0
    %2830 = vmatpush1.bf16.msra.mxu0 0
    %2831 = vmatprep.subr.bf16.mxu0 0
    %2832 = vmatpush1.bf16.msra.mxu0 0
    %2833 = vmatprep.subr.bf16.mxu0 0
    %2834 = vmatpush1.bf16.msra.mxu0 0
    %2835 = vmatprep.subr.bf16.mxu0 0
    %2836 = vmatpush1.bf16.msra.mxu0 0
    %2837 = vmatprep.subr.bf16.mxu0 0
    %2838 = vmatpush1.bf16.msra.mxu0 0
    %2839 = vmatprep.subr.bf16.mxu0 0
    %2840 = vmatpush1.bf16.msra.mxu0 0
    %2841 = vmatprep.subr.bf16.mxu0 0
    %2842 = vmatpush1.bf16.msra.mxu0 0
    %2843 = vmatprep.mubr.bf16.mxu0 0
    %2844 = vmatmul.mubr.bf16.gmra.mrb[0].mxu0 %v2384
    %v2845 = vpop.f32.mrb[0].mxu0
    %v2846 = vadd.f32 %v2454, %v2845
    %v2847 = vpop.f32.mrb[0].mxu0
    %v2848 = vadd.f32 %v2458, %v2847
    %v2849 = vpop.f32.mrb[0].mxu0
    %v2850 = vadd.f32 %v2454, %v2849
    %v2851 = vpop.f32.mrb[0].mxu0
    %v2852 = vadd.f32 %v2458, %v2851
    %2853 = vdwg.mxu0
    %2854 = vmatprep.subr.bf16.mxu0 %v2686
    %2855 = vmatpush1.bf16.msra.mxu0 %v2685
    %2856 = vmatprep.subr.bf16.mxu0 %v2694
    %2857 = vmatpush1.bf16.msra.mxu0 %v2693
    %2858 = vmatprep.subr.bf16.mxu0 %v2702
    %2859 = vmatpush1.bf16.msra.mxu0 %v2701
    %2860 = vmatprep.subr.bf16.mxu0 %v2710
    %2861 = vmatpush1.bf16.msra.mxu0 %v2709
    %2862 = vmatprep.subr.bf16.mxu0 %v2718
    %2863 = vmatpush1.bf16.msra.mxu0 %v2717
    %2864 = vmatprep.subr.bf16.mxu0 %v2726
    %2865 = vmatpush1.bf16.msra.mxu0 %v2725
    %2866 = vmatprep.subr.bf16.mxu0 %v2734
    %2867 = vmatpush1.bf16.msra.mxu0 %v2733
    %2868 = vmatprep.subr.bf16.mxu0 %v2742
    %2869 = vmatpush1.bf16.msra.mxu0 %v2741
    %2870 = vmatprep.subr.bf16.mxu0 0
    %2871 = vmatpush1.bf16.msra.mxu0 0
    %2872 = vmatprep.subr.bf16.mxu0 0
    %2873 = vmatpush1.bf16.msra.mxu0 0
    %2874 = vmatprep.subr.bf16.mxu0 0
    %2875 = vmatpush1.bf16.msra.mxu0 0
    %2876 = vmatprep.subr.bf16.mxu0 0
    %2877 = vmatpush1.bf16.msra.mxu0 0
    %2878 = vmatprep.subr.bf16.mxu0 0
    %2879 = vmatpush1.bf16.msra.mxu0 0
    %2880 = vmatprep.subr.bf16.mxu0 0
    %2881 = vmatpush1.bf16.msra.mxu0 0
    %2882 = vmatprep.subr.bf16.mxu0 0
    %2883 = vmatpush1.bf16.msra.mxu0 0
    %2884 = vmatprep.subr.bf16.mxu0 0
    %2885 = vmatpush1.bf16.msra.mxu0 0
    %2886 = vmatprep.mubr.bf16.mxu0 0
    %2887 = vmatmul.mubr.bf16.gmra.mrb[0].mxu0 %v2384
    %v2888 = vpop.f32.mrb[0].mxu0
    %v2889 = vadd.f32 %v2462, %v2888
    %v2890 = vpop.f32.mrb[0].mxu0
    %v2891 = vadd.f32 %v2466, %v2890
    %v2892 = vpop.f32.mrb[0].mxu0
    %v2893 = vadd.f32 %v2462, %v2892
    %v2894 = vpop.f32.mrb[0].mxu0
    %v2895 = vadd.f32 %v2466, %v2894
    %2896 = vdwg.mxu0
    %2897 = vmatprep.subr.bf16.mxu0 %v2688
    %2898 = vmatpush1.bf16.msra.mxu0 %v2687
    %2899 = vmatprep.subr.bf16.mxu0 %v2696
    %2900 = vmatpush1.bf16.msra.mxu0 %v2695
    %2901 = vmatprep.subr.bf16.mxu0 %v2704
    %2902 = vmatpush1.bf16.msra.mxu0 %v2703
    %2903 = vmatprep.subr.bf16.mxu0 %v2712
    %2904 = vmatpush1.bf16.msra.mxu0 %v2711
    %2905 = vmatprep.subr.bf16.mxu0 %v2720
    %2906 = vmatpush1.bf16.msra.mxu0 %v2719
    %2907 = vmatprep.subr.bf16.mxu0 %v2728
    %2908 = vmatpush1.bf16.msra.mxu0 %v2727
    %2909 = vmatprep.subr.bf16.mxu0 %v2736
    %2910 = vmatpush1.bf16.msra.mxu0 %v2735
    %2911 = vmatprep.subr.bf16.mxu0 %v2744
    %2912 = vmatpush1.bf16.msra.mxu0 %v2743
    %2913 = vmatprep.subr.bf16.mxu0 0
    %2914 = vmatpush1.bf16.msra.mxu0 0
    %2915 = vmatprep.subr.bf16.mxu0 0
    %2916 = vmatpush1.bf16.msra.mxu0 0
    %2917 = vmatprep.subr.bf16.mxu0 0
    %2918 = vmatpush1.bf16.msra.mxu0 0
    %2919 = vmatprep.subr.bf16.mxu0 0
    %2920 = vmatpush1.bf16.msra.mxu0 0
    %2921 = vmatprep.subr.bf16.mxu0 0
    %2922 = vmatpush1.bf16.msra.mxu0 0
    %2923 = vmatprep.subr.bf16.mxu0 0
    %2924 = vmatpush1.bf16.msra.mxu0 0
    %2925 = vmatprep.subr.bf16.mxu0 0
    %2926 = vmatpush1.bf16.msra.mxu0 0
    %2927 = vmatprep.subr.bf16.mxu0 0
    %2928 = vmatpush1.bf16.msra.mxu0 0
    %2929 = vmatprep.mubr.bf16.mxu0 0
    %2930 = vmatmul.mubr.bf16.gmra.mrb[0].mxu0 %v2384
    %v2931 = vpop.f32.mrb[0].mxu0
    %v2932 = vadd.f32 %v2470, %v2931
    %v2933 = vpop.f32.mrb[0].mxu0
    %v2934 = vadd.f32 %v2474, %v2933
    %v2935 = vpop.f32.mrb[0].mxu0
    %v2936 = vadd.f32 %v2470, %v2935
    %v2937 = vpop.f32.mrb[0].mxu0
    %v2938 = vadd.f32 %v2474, %v2937
    %2939 = vdwg.mxu0
    %2940 = vmatprep.subr.bf16.mxu0 %v2690
    %2941 = vmatpush1.bf16.msra.mxu0 %v2689
    %2942 = vmatprep.subr.bf16.mxu0 %v2698
    %2943 = vmatpush1.bf16.msra.mxu0 %v2697
    %2944 = vmatprep.subr.bf16.mxu0 %v2706
    %2945 = vmatpush1.bf16.msra.mxu0 %v2705
    %2946 = vmatprep.subr.bf16.mxu0 %v2714
    %2947 = vmatpush1.bf16.msra.mxu0 %v2713
    %2948 = vmatprep.subr.bf16.mxu0 %v2722
    %2949 = vmatpush1.bf16.msra.mxu0 %v2721
    %2950 = vmatprep.subr.bf16.mxu0 %v2730
    %2951 = vmatpush1.bf16.msra.mxu0 %v2729
    %2952 = vmatprep.subr.bf16.mxu0 %v2738
    %2953 = vmatpush1.bf16.msra.mxu0 %v2737
    %2954 = vmatprep.subr.bf16.mxu0 %v2746
    %2955 = vmatpush1.bf16.msra.mxu0 %v2745
    %2956 = vmatprep.subr.bf16.mxu0 0
    %2957 = vmatpush1.bf16.msra.mxu0 0
    %2958 = vmatprep.subr.bf16.mxu0 0
    %2959 = vmatpush1.bf16.msra.mxu0 0
    %2960 = vmatprep.subr.bf16.mxu0 0
    %2961 = vmatpush1.bf16.msra.mxu0 0
    %2962 = vmatprep.subr.bf16.mxu0 0
    %2963 = vmatpush1.bf16.msra.mxu0 0
    %2964 = vmatprep.subr.bf16.mxu0 0
    %2965 = vmatpush1.bf16.msra.mxu0 0
    %2966 = vmatprep.subr.bf16.mxu0 0
    %2967 = vmatpush1.bf16.msra.mxu0 0
    %2968 = vmatprep.subr.bf16.mxu0 0
    %2969 = vmatpush1.bf16.msra.mxu0 0
    %2970 = vmatprep.subr.bf16.mxu0 0
    %2971 = vmatpush1.bf16.msra.mxu0 0
    %2972 = vmatprep.mubr.bf16.mxu0 0
    %2973 = vmatmul.mubr.bf16.gmra.mrb[0].mxu0 %v2384
    %v2974 = vpop.f32.mrb[0].mxu0
    %v2975 = vadd.f32 %v2478, %v2974
    %v2976 = vpop.f32.mrb[0].mxu0
    %v2977 = vadd.f32 %v2482, %v2976
    %v2978 = vpop.f32.mrb[0].mxu0
    %v2979 = vadd.f32 %v2478, %v2978
    %v2980 = vpop.f32.mrb[0].mxu0
    %v2981 = vadd.f32 %v2482, %v2980
    %2982 = vdwg.mxu0
    %v2983 = vpack.c.bf16 %v2850, %v2846
    %v2984 = vpack.c.bf16 %v2852, %v2848
    %v2985 = vpack.c.bf16 %v2893, %v2889
    %v2986 = vpack.c.bf16 %v2895, %v2891
    %v2987 = vpack.c.bf16 %v2936, %v2932
    %v2988 = vpack.c.bf16 %v2938, %v2934
    %v2989 = vpack.c.bf16 %v2979, %v2975
    %v2990 = vpack.c.bf16 %v2981, %v2977
    %v2999 = vunpack.c.l.b16 %v2983
    %v3000 = vunpack.c.l.b16 %v2984
    %v3001 = vunpack.c.l.b16 %v2985
    %v3002 = vunpack.c.l.b16 %v2986
    %v3003 = vunpack.c.l.b16 %v2987
    %v3004 = vunpack.c.l.b16 %v2988
    %v3005 = vunpack.c.l.b16 %v2989
    %v3006 = vunpack.c.l.b16 %v2990
    %v3007 = vunpack.c.h.b16 %v2983
    %v3008 = vunpack.c.h.b16 %v2984
    %v3009 = vunpack.c.h.b16 %v2985
    %v3010 = vunpack.c.h.b16 %v2986
    %v3011 = vunpack.c.h.b16 %v2987
    %v3012 = vunpack.c.h.b16 %v2988
    %v3013 = vunpack.c.h.b16 %v2989
    %v3014 = vunpack.c.h.b16 %v2990
    %v3015 = vpack.c.b16 %v3000, %v2999
    %v3016 = vpack.c.b16 %v3002, %v3001
    %v3017 = vpack.c.b16 %v3004, %v3003
    %v3018 = vpack.c.b16 %v3006, %v3005
    %v3019 = vpack.c.b16 %v3008, %v3007
    %v3020 = vpack.c.b16 %v3010, %v3009
    %v3021 = vpack.c.b16 %v3012, %v3011
    %v3022 = vpack.c.b16 %v3014, %v3013
    %3031 = vst [vmem:[#allocation26] sm:$0xff] %v3015
    %3032 = vst [vmem:[#allocation26 + $0x8] sm:$0xff] %v3016
    %3033 = vst [vmem:[#allocation26 + $0x10] sm:$0xff] %v3017
    %3034 = vst [vmem:[#allocation26 + $0x18] sm:$0xff] %v3018
    %3035 = vst [vmem:[#allocation26 + $0x20] sm:$0xff] %v3019
    %3036 = vst [vmem:[#allocation26 + $0x28] sm:$0xff] %v3020
    %3037 = vst [vmem:[#allocation26 + $0x30] sm:$0xff] %v3021
    %3038 = vst [vmem:[#allocation26 + $0x38] sm:$0xff] %v3022
    %3041 = vrot.lane.b32.xlu0 %v2060, 32
    %v3042 = vpop.permute.xlu0 %3041
    %3043 = vrot.lane.b32.xlu0 %v2063, 32
    %v3044 = vpop.permute.xlu0 %3043
    %3049 = vrot.lane.b32.xlu0 %v1497, 64
    %v3050 = vpop.permute.xlu0 %3049
    %3051 = vrot.lane.b32.xlu0 %v1500, 64
    %v3052 = vpop.permute.xlu0 %3051
    %3057 = vrot.lane.b32.xlu0 %v1528, 96
    %v3058 = vpop.permute.xlu0 %3057
    %3059 = vrot.lane.b32.xlu0 %v1529, 96
    %v3060 = vpop.permute.xlu0 %3059
    %v3063 = vsel %vm1507, %v2082, %v3042
    %v3064 = vsel %vm1507, %v2083, %v3044
    %vm3065 = vcmask 785408
    %v3066 = vsel %vm3065, %v3063, 0.0
    %v3067 = vsel %vm3065, %v3064, 0.0
    %vm3068 = vcmask 523264
    %v3069 = vsel %vm3068, %v1607, %v3050
    %v3070 = vsel %vm3068, %v1611, %v3052
    %v3071 = vsel %vm3065, %v3069, %v3058
    %v3072 = vsel %vm3065, %v3070, %v3060
    %3073 = vst [vmem:[#allocation27] sm:$0xff] %v3066
    %3074 = vst [vmem:[#allocation27 + $0x8] sm:$0xff] %v3071
    %3075 = vst [vmem:[#allocation27 + $0x10] sm:$0xff] %v3067
    %3076 = vst [vmem:[#allocation27 + $0x18] sm:$0xff] %v3072
    // Predicated region
    $region158: #{tpu_custom_call.1} parent=1 // pred_check
      _
    $region159: #{tpu_custom_call.1} parent=1 // pred_check_branch
      %3078 = sbr.rel (0) target = $region161
    $region160: #{tpu_custom_call.1} parent=1 // pred_region
      %s3080 = ssub.s32 1024, 1024
      %3081 = vsyncadd [#allocation4], %s3080
      %s3082 = sshll.u32 [#allocation26], 4
      %s3083 = int_to_ptr.vmem [resolvable:$true] %s3082
      %3088 = dma.vmem_to_hbm [thread:$0]  %s3083, 1024, %s24, [#allocation4], 512, 512, 32
    $region161: #{tpu_custom_call.1} parent=1 // pred_fallthru
      _
    // Predicated region
    $region162: #{tpu_custom_call.1} parent=1 // pred_check
      _
    $region163: #{tpu_custom_call.1} parent=1 // pred_check_branch
      %3090 = sbr.rel (0) target = $region165
    $region164: #{tpu_custom_call.1} parent=1 // pred_region
      %s3092 = ssub.s32 512, 512
      %3093 = vsyncadd [#allocation28], %s3092
      %s3094 = sshll.u32 [#allocation27], 4
      %s3095 = int_to_ptr.vmem [resolvable:$true] %s3094
      %3100 = dma.vmem_to_hbm [thread:$0]  %s3095, 512, %s25, [#allocation28], 256, 256, 16
    $region165: #{tpu_custom_call.1} parent=1 // pred_fallthru
      _
    // Predicated region
    $region166: #{tpu_custom_call.1} parent=1 // pred_check
      _
    $region167: #{tpu_custom_call.1} parent=1 // pred_check_branch
      %3102 = sbr.rel (0) target = $region169
    $region168: #{tpu_custom_call.1} parent=1 // pred_region
      %3103 = dma.done [#allocation4], 1024
    $region169: #{tpu_custom_call.1} parent=1 // pred_fallthru
      _
    // Predicated region
    $region170: #{tpu_custom_call.1} parent=1 // pred_check
      _
    $region171: #{tpu_custom_call.1} parent=1 // pred_check_branch
      %3105 = sbr.rel (0) target = $region173
    $region172: #{tpu_custom_call.1} parent=1 // pred_region
      %3106 = dma.done [#allocation28], 512
    $region173: #{tpu_custom_call.1} parent=1 // pred_fallthru
      _
    %3107 = vsyncpa [#allocation3], 1
    %3108 = vsyncpa [#allocation6], 1
    %3109 = vsyncpa [#allocation9], 1
    %3110 = vsyncpa [#allocation12], 1
    %3111 = vsyncpa [#allocation15], 1
    %3112 = vsyncpa [#allocation18], 1
    %3113 = vsyncpa [#allocation21], 1
    %3114 = vsyncpa [#allocation24], 1
    %3115 = vsyncpa [#allocation4], 1
    %3116 = vsyncpa [#allocation28], 1

</llo_original>
